<compile_context>
chip_gen: v5e
topology: v5e:2x2
jax: 0.10.0
libtpu: 0.0.40
codegen_flags: <defaults>
</compile_context>

<pallas_src>
import math
from functools import partial

import jax
import jax.numpy as jnp
from jax import lax
from jax.experimental import pallas as pl
from jax.experimental.pallas import tpu as pltpu

F32 = jnp.float32


# ----------------------------------------------------------------------------
# Small in-kernel helpers (guaranteed-to-lower ops only)
# ----------------------------------------------------------------------------
def _erf(x):
    # Abramowitz & Stegun 7.1.26 (|err| <= 1.5e-7) -> exact-GELU to f32 precision.
    p = 0.3275911
    a1, a2, a3, a4, a5 = (0.254829592, -0.284496736, 1.421413741,
                          -1.453152027, 1.061405429)
    ax = jnp.abs(x)
    t = 1.0 / (1.0 + p * ax)
    poly = ((((a5 * t + a4) * t + a3) * t + a2) * t + a1) * t
    y = 1.0 - poly * jnp.exp(-ax * ax)
    return jnp.where(x >= 0.0, y, -y)


def _gelu_exact(x):
    return 0.5 * x * (1.0 + _erf(x * (1.0 / math.sqrt(2.0))))


def _mm(a, b):
    return jnp.dot(a, b, preferred_element_type=F32)


def _mm_nt(a, b):
    # a @ b.T (contract last dims of both).
    return lax.dot_general(a, b, (((1,), (1,)), ((), ())),
                           preferred_element_type=F32)


def _softmax_last(x):
    m = jnp.max(x, axis=-1, keepdims=True)
    e = jnp.exp(x - m)
    # divide on EUP instead of VALU
    return e * pl.reciprocal(jnp.sum(e, axis=-1, keepdims=True), approx=True)


# ----------------------------------------------------------------------------
# The fused kernel: one grid step == BT batch elements (BT*N rows x C channels)
# ----------------------------------------------------------------------------
def _make_block_kernel(meta):
    N, C, H, E = meta['N'], meta['C'], meta['H'], meta['E']
    BT = meta['BT']
    NT = BT * N
    Ms = meta['Ms']                       # (M0, M1, M2) memory-bank sizes
    QPAD = meta['QPAD']                   # lane-aligned stride of q/k/v groups
    o48, oq, om, ont, orr = (meta['o48'], meta['oq'], meta['om'],
                             meta['ont'], meta['orr'])
    hd = C // H
    scale = float(hd) ** -0.5

    def kernel(x_ref, s48_ref, sqkv_ref, smoe_ref, snt_ref, sel_ref, srt_ref,
               kt0_ref, kt1_ref, kt2_ref, o_ref):

        def seg(ref, off, name):
            s, r = off[name]
            return ref[s:s + r, :]

        x = x_ref[...]                                        # (NT, C)

        ln_g = seg(s48_ref, o48, 'ln_g')                      # (3, C)
        ln_b = seg(s48_ref, o48, 'ln_b')                      # (3, C)
        hm_rows = seg(s48_ref, o48, 'head_mask_rows')         # (H*NT, C)
        wsup_rows = seg(s48_ref, o48, 'wsup_rows')            # ((H+1)*NT, C)
        proj_w = seg(s48_ref, o48, 'proj_w')                  # (C, C)
        proj_b = seg(s48_ref, o48, 'proj_b')                  # (1, C)
        ew2 = seg(s48_ref, o48, 'ew2')                        # (E*De, C)
        eb2 = seg(s48_ref, o48, 'eb2')                        # (E, C)
        mem_bq = seg(s48_ref, o48, 'mem_bq')                  # (3, C)
        mem_bo = seg(s48_ref, o48, 'mem_bo')                  # (3, C)
        mem_bp = seg(s48_ref, o48, 'mem_bp')                  # (3, C)
        mw_s, _ = o48['mem_w']
        mv_s, _ = o48['mem_v']

        qkv_w = seg(sqkv_ref, oq, 'qkv_w')                    # (C, 3*QPAD)
        qkv_b = seg(sqkv_ref, oq, 'qkv_b')                    # (1, 3*QPAD)

        gate_expand = seg(smoe_ref, om, 'gate_expand')        # (E, E*De)
        ew1 = seg(smoe_ref, om, 'ew1')                        # (C, E*De)
        eb1 = seg(smoe_ref, om, 'eb1')                        # (1, E*De)

        rep = seg(snt_ref, ont, 'rep')                        # ((H+1)*NT, NT)
        rep_h = rep[0:H * NT, :]                              # (H*NT, NT)
        ent_rows = seg(snt_ref, ont, 'ent_rows')              # (H*NT, NT)
        attn_mask = seg(snt_ref, ont, 'attn_mask')            # (H*NT, NT)

        sel = sel_ref[...]                                    # (NT, H*NT)
        router_w = seg(srt_ref, orr, 'router_w')              # (C, E)
        router_b = seg(srt_ref, orr, 'router_b')              # (1, E)

        def layernorm(v, idx):
            mu = jnp.mean(v, axis=-1, keepdims=True)
            ms = jnp.mean(v * v, axis=-1, keepdims=True)
            var = ms - mu * mu
            return ((v - mu) * lax.rsqrt(var + 1e-5)
                    * ln_g[idx:idx + 1, :] + ln_b[idx:idx + 1, :])

        def head_merge(stacked):
            # stacked: (H*NT, C); out[r, c] = stacked[head(c)*NT + r, c]
            # -> one VPU lane-mask multiply + one 0/1 selection matmul on the MXU.
            return _mm(sel, stacked * hm_rows)

        # ---------------- quantum multi-head attention ----------------
        h1 = layernorm(x, 0)
        qkv = _mm(h1, qkv_w) + qkv_b                          # (NT, 3*QPAD)
        q = qkv[:, 0:C]                                       # 128-aligned lane slices
        k = qkv[:, QPAD:QPAD + C]
        v = qkv[:, 2 * QPAD:2 * QPAD + C]

        # All superposed per-head scores AND their head-sum in ONE matmul:
        # row (i*NT + r): scale * sum_c w_lane[i,c] q[r,c] k[m,c]  (i==H -> sum_i)
        q_rep = _mm(rep, q)                                   # ((H+1)NT, C)  (MXU)
        sup = _mm_nt(q_rep * wsup_rows, k) * scale            # ((H+1)NT, NT)
        sup_h = sup[0:H * NT, :]
        s_sum = sup[H * NT:(H + 1) * NT, :]
        s_sum_rep = _mm(rep_h, s_sum)                         # (H*NT, NT)    (MXU)
        ent = jnp.tanh(sup_h + ent_rows * s_sum_rep)          # literal PT broadcast
        scores = ent if BT == 1 else ent + attn_mask          # block-diag batch mask
        p_attn = _softmax_last(scores)                        # (H*NT, NT)
        o_stack = _mm(p_attn, v)                              # (H*NT, C) one matmul
        attn_out = head_merge(o_stack)                        # (NT, C)
        attn_out = _mm(attn_out, proj_w) + proj_b
        attended = x + attn_out                               # dropout = id (eval)

        # ---------------- hypercomplex MoE (dense, gate-folded) ----------------
        h2 = layernorm(attended, 1)
        logits = _mm(h2, router_w) + router_b                 # (NT, E)
        eidx = lax.broadcasted_iota(jnp.int32, (NT, E), 1).astype(F32)
        big = float(E)
        m1 = jnp.max(logits, axis=-1, keepdims=True)
        pick1 = jnp.min(jnp.where(logits == m1, eidx, big), axis=-1, keepdims=True)
        hit1 = eidx == pick1
        masked = jnp.where(hit1, -1e30, logits)
        m2 = jnp.max(masked, axis=-1, keepdims=True)
        pick2 = jnp.min(jnp.where(masked == m2, eidx, big), axis=-1, keepdims=True)
        hit2 = eidx == pick2
        z = jnp.exp(m2 - m1)                                  # softmax over top-2
        w1 = 1.0 / (1.0 + z)
        gates = jnp.where(hit1, w1, 0.0) + jnp.where(hit2, z * w1, 0.0)   # (NT, E)

        hid = _gelu_exact(_mm(h2, ew1) + eb1)                 # (NT, E*De)
        hid = hid * _mm(gates, gate_expand)                   # fold top-2 gates
        moe_out = _mm(hid, ew2) + _mm(gates, eb2)             # (NT, C)
        expert_output = attended + moe_out                    # dropout = id (eval)

        # -------- fractal memory bank (depth 3, K/V precomputed on host) --------
        kt_refs = (kt0_ref, kt1_ref, kt2_ref)

        def mem_level(y, lvl, v_start):
            base = mw_s + 3 * C * lvl
            wq = s48_ref[base:base + C, :]                    # (C, C)
            wo = s48_ref[base + C:base + 2 * C, :]            # (C, C)
            wp = s48_ref[base + 2 * C:base + 3 * C, :]        # (C, C)
            vm = s48_ref[mv_s + v_start:mv_s + v_start + Ms[lvl], :]   # (M, C)
            qm = _mm(y, wq) + mem_bq[lvl:lvl + 1, :]          # (NT, C)
            q_stack = _mm(rep_h, qm) * hm_rows                # (H*NT, C) via MXU
            s = _mm(q_stack, kt_refs[lvl][...]) * scale       # (H*NT, M) lane-dense
            p = _softmax_last(s)
            o_st = _mm(p, vm)                                 # (H*NT, C)
            o = head_merge(o_st)                              # (NT, C)
            o = _mm(o, wo) + mem_bo[lvl:lvl + 1, :]           # MHA out-proj
            o = _mm(o, wp) + mem_bp[lvl:lvl + 1, :]           # NdLinear processor
            return o

        a0 = mem_level(expert_output, 0, 0)
        a1 = mem_level(a0, 1, Ms[0])
        a2 = mem_level(a1, 2, Ms[0] + Ms[1])
        memory_output = expert_output + a0 + a1 + a2
        # TODO(synk): training-only Hebbian / plasticity update skipped (eval mode).

        o_ref[...] = layernorm(memory_output, 2)

    return kernel


# ----------------------------------------------------------------------------
# Parameters (deterministic, synthetic)
# ----------------------------------------------------------------------------
def init_params(key, dim, num_heads, num_experts, expert_dim, mem_caps):
    keys = iter(jax.random.split(key, 128))

    def rnd(shape, scl=0.05):
        return (scl * jax.random.normal(next(keys), shape)).astype(F32)

    p = {}
    for nm in ('norm1', 'norm2', 'norm3'):
        p[nm + '_g'] = jnp.ones((dim,), F32)
        p[nm + '_b'] = jnp.zeros((dim,), F32)
    # QuantumMultiHeadAttention
    p['qkv_w'] = rnd((dim, 3 * dim)); p['qkv_b'] = rnd((3 * dim,), 0.01)
    p['attn_proj_w'] = rnd((dim, dim)); p['attn_proj_b'] = rnd((dim,), 0.01)
    p['superposition'] = rnd((num_heads, num_heads), 0.5)
    p['entanglement'] = rnd((num_heads, num_heads), 0.5)
    # HypercomplexMoE
    p['router_w'] = rnd((dim, num_experts)); p['router_b'] = rnd((num_experts,), 0.01)
    p['expert_w1'] = rnd((num_experts, dim, expert_dim))
    p['expert_b1'] = rnd((num_experts, 1, expert_dim), 0.01)
    p['expert_w2'] = rnd((num_experts, expert_dim, dim))
    p['expert_b2'] = rnd((num_experts, 1, dim), 0.01)
    p['domain_routing'] = rnd((6, num_experts), 0.5)   # unused (domain_id=None)
    # FractalMemoryBank (depth = len(mem_caps))
    p['mem_banks'] = [rnd((c, dim), 0.5) for c in mem_caps]
    for nm in ('wq', 'wk', 'wv', 'wo', 'proc_w'):
        p['mem_' + nm] = [rnd((dim, dim)) for _ in mem_caps]
    for nm in ('bq', 'bk', 'bv', 'bo', 'proc_b'):
        p['mem_' + nm] = [rnd((dim,), 0.01) for _ in mem_caps]
    return p


# ----------------------------------------------------------------------------
# Host-side packing: a handful of lane-aligned, row-concatenated weight slabs
# ----------------------------------------------------------------------------
def _pack_rows(entries):
    """Row-concatenate 2-D arrays of equal lane width; 8-row-aligned offsets."""
    offsets = {}
    parts = []
    cur = 0
    for name, a in entries:
        a2 = jnp.asarray(a, F32).reshape(-1, a.shape[-1])
        r = a2.shape[0]
        offsets[name] = (cur, r)
        pad = (-r) % 8
        if pad:
            a2 = jnp.concatenate([a2, jnp.zeros((pad, a2.shape[-1]), F32)], axis=0)
        parts.append(a2)
        cur += r + pad
    return jnp.concatenate(parts, axis=0), offsets


def pick_batch_block(B, N):
    """Merge all batches per step on single-TC chips; keep grid%2==0 on v7x."""
    cap = max(1, 64 // N)                 # keep per-step row block modest
    kind = ""
    try:
        kind = jax.devices()[0].device_kind.lower()
    except Exception:
        pass
    min_grid = 2 if (("v7" in kind or "7x" in kind) and B >= 2) else 1
    bb = max(1, min(cap, B // min_grid))
    while bb > 1 and B % bb != 0:
        bb -= 1
    return bb


def pack_params(p, *, dim, num_heads, num_experts, expert_dim, seq_len, batch_block):
    C, H, E, De, N, BT = dim, num_heads, num_experts, expert_dim, seq_len, batch_block
    NT = BT * N
    assert H == N, "PyTorch entanglement broadcast requires num_heads == seq_len"
    assert C % H == 0
    hd = C // H
    lane_head = jnp.arange(C) // hd

    head_mask = (jnp.arange(H)[:, None] == lane_head[None, :]).astype(F32)   # (H, C)
    head_mask_rows = jnp.repeat(head_mask, NT, axis=0)                       # (H*NT, C)

    # superposition weights expanded over the lane axis, replicated per query row;
    # the last NT rows carry the head-sum weights (gives sum_i sup_i "for free").
    w_lane = p['superposition'][:, lane_head]                                # (H, C)
    wsup_rows = jnp.concatenate(
        [jnp.repeat(w_lane, NT, axis=0),
         jnp.broadcast_to(jnp.sum(w_lane, axis=0, keepdims=True), (NT, C))],
        axis=0)                                                              # ((H+1)NT, C)

    ent_rows = jnp.repeat(jnp.tile(p['entanglement'], (1, BT)), NT, axis=0)  # (H*NT, NT)

    # block-diagonal batch mask for merged-batch quantum attention
    row_b = jnp.arange(NT) // N
    mask_nt = jnp.where(row_b[:, None] == row_b[None, :], 0.0, -1e30).astype(F32)
    attn_mask = jnp.tile(mask_nt, (H, 1))                                    # (H*NT, NT)

    # replication / head-select 0/1 matrices (pushed onto the MXU in-kernel)
    eye = jnp.eye(NT, dtype=F32)
    rep = jnp.tile(eye, (H + 1, 1))                                          # ((H+1)NT, NT)
    sel = jnp.tile(eye, (1, H))                                              # (NT, H*NT)

    # fused QKV with each of q/k/v starting at a 128-aligned lane offset
    QPAD = ((C + 127) // 128) * 128
    qkv_w_pad = jnp.zeros((C, 3 * QPAD), F32)
    qkv_b_pad = jnp.zeros((1, 3 * QPAD), F32)
    for t in range(3):
        qkv_w_pad = qkv_w_pad.at[:, t * QPAD:t * QPAD + C].set(
            p['qkv_w'][:, t * C:(t + 1) * C])
        qkv_b_pad = qkv_b_pad.at[:, t * QPAD:t * QPAD + C].set(
            p['qkv_b'][t * C:(t + 1) * C][None, :])

    # MoE (dense experts, gate folded in-kernel)
    col_expert = jnp.arange(E * De) // De
    gate_expand = (jnp.arange(E)[:, None] == col_expert[None, :]).astype(F32)  # (E, E*De)
    ew1 = jnp.transpose(p['expert_w1'], (1, 0, 2)).reshape(C, E * De)
    eb1 = p['expert_b1'].reshape(1, E * De)
    ew2 = p['expert_w2'].reshape(E * De, C)
    eb2 = p['expert_b2'].reshape(E, C)

    # Fractal memory: precompute bank K/V projections (input-independent) on host
    depth = len(p['mem_banks'])
    assert depth == 3
    kts, vms, mem_w_blocks = [], [], []
    Ms = []
    for l in range(depth):
        bank = p['mem_banks'][l]
        km = bank @ p['mem_wk'][l] + p['mem_bk'][l][None, :]     # (M, C)
        vm = bank @ p['mem_wv'][l] + p['mem_bv'][l][None, :]     # (M, C)
        kts.append(km.T.astype(F32))                             # (C, M) pre-transposed
        vms.append(vm.astype(F32))
        Ms.append(bank.shape[0])
        mem_w_blocks.append(jnp.concatenate(
            [p['mem_wq'][l], p['mem_wo'][l], p['mem_proc_w'][l]], axis=0))  # (3C, C)
    mem_v = jnp.concatenate(vms, axis=0)                         # (sum M, C)
    mem_w = jnp.concatenate(mem_w_blocks, axis=0)                # (3*3C, C)

    slab48, o48 = _pack_rows([
        ('ln_g', jnp.stack([p['norm1_g'], p['norm2_g'], p['norm3_g']])),
        ('ln_b', jnp.stack([p['norm1_b'], p['norm2_b'], p['norm3_b']])),
        ('head_mask_rows', head_mask_rows),
        ('wsup_rows', wsup_rows),
        ('proj_w', p['attn_proj_w']),
        ('proj_b', p['attn_proj_b'].reshape(1, C)),
        ('ew2', ew2),
        ('eb2', eb2),
        ('mem_v', mem_v),
        ('mem_w', mem_w),
        ('mem_bq', jnp.stack(p['mem_bq'])),
        ('mem_bo', jnp.stack(p['mem_bo'])),
        ('mem_bp', jnp.stack(p['mem_proc_b'])),
    ])
    slab_qkv, oq = _pack_rows([('qkv_w', qkv_w_pad), ('qkv_b', qkv_b_pad)])
    slab_moe, om = _pack_rows([('gate_expand', gate_expand), ('ew1', ew1),
                               ('eb1', eb1)])
    slab_nt, ont = _pack_rows([('rep', rep), ('ent_rows', ent_rows),
                               ('attn_mask', attn_mask)])
    slab_rt, orr = _pack_rows([('router_w', p['router_w']),
                               ('router_b', p['router_b'].reshape(1, E))])

    arrays = dict(slab48=slab48, slab_qkv=slab_qkv, slab_moe=slab_moe,
                  slab_nt=slab_nt, sel=sel, slab_rt=slab_rt,
                  kt0=kts[0], kt1=kts[1], kt2=kts[2])
    meta = dict(N=N, C=C, H=H, E=E, De=De, BT=BT, Ms=tuple(Ms), QPAD=QPAD,
                o48=o48, oq=oq, om=om, ont=ont, orr=orr)
    return arrays, meta


# ----------------------------------------------------------------------------
# Forward pass (eval mode): ONE fused pallas_call, grid over batch blocks
# ----------------------------------------------------------------------------
_CONST_ORDER = ['slab48', 'slab_qkv', 'slab_moe', 'slab_nt', 'sel', 'slab_rt',
                'kt0', 'kt1', 'kt2']


def advanced_transformer_block(arrays, x, meta):
    B, N, C = x.shape
    assert N == meta['N'] and C == meta['C']
    BT = meta['BT']
    assert B % BT == 0, "batch must be divisible by the batch block"
    G = B // BT
    NT = BT * N
    x2 = x.reshape(B * N, C).astype(F32)

    consts = [arrays[k] for k in _CONST_ORDER]
    in_specs = [pl.BlockSpec((NT, C), lambda g: (g, 0))]          # x: BT batches / step
    in_specs += [pl.BlockSpec(a.shape, lambda g: (0, 0)) for a in consts]

    out = pl.pallas_call(
        _make_block_kernel(meta),
        grid=(G,),
        in_specs=in_specs,
        out_specs=pl.BlockSpec((NT, C), lambda g: (g, 0)),        # lane-dense slab
        out_shape=jax.ShapeDtypeStruct((B * N, C), F32),
        compiler_params=pltpu.CompilerParams(
            dimension_semantics=("parallel",)),                   # v7x: both TCs used
    )(x2, *consts)
    return out.reshape(B, N, C)


# ----------------------------------------------------------------------------
if __name__ == "__main__":
    key = jax.random.PRNGKey(0)
    B, N, dim = 2, 8, 48
    num_heads = 8            # == N, required by the literal entanglement broadcast
    num_experts = 8
    expert_dim = 4 * dim
    mem_caps = (64, 128, 256)   # FractalMemoryBank depth=3, capacity_base=64

    pkey, xkey = jax.random.split(key)
    params = init_params(pkey, dim=dim, num_heads=num_heads,
                         num_experts=num_experts, expert_dim=expert_dim,
                         mem_caps=mem_caps)

    bb = pick_batch_block(B, N)          # v5e/v6e -> 1 merged step; v7x -> 2 steps
    arrays, meta = pack_params(params, dim=dim, num_heads=num_heads,
                               num_experts=num_experts, expert_dim=expert_dim,
                               seq_len=N, batch_block=bb)
    x = jax.random.normal(xkey, (B, N, dim), dtype=F32)

    fwd = jax.jit(partial(advanced_transformer_block, meta=meta))
    out = jax.block_until_ready(fwd(arrays, x))

    assert out.shape == (B, N, dim)
    assert bool(jnp.all(jnp.isfinite(out)))
    print("KERNEL_OK")
</pallas_src>

<mosaic_0001>
module attributes {stable_mosaic.version = 11 : i64} {
  func.func @kernel(%arg0: i32, %arg1: memref<16x48xf32, #tpu.memory_space<vmem>>, %arg2: memref<2792x48xf32, #tpu.memory_space<vmem>>, %arg3: memref<56x384xf32, #tpu.memory_space<vmem>>, %arg4: memref<64x1536xf32, #tpu.memory_space<vmem>>, %arg5: memref<400x16xf32, #tpu.memory_space<vmem>>, %arg6: memref<16x128xf32, #tpu.memory_space<vmem>>, %arg7: memref<56x8xf32, #tpu.memory_space<vmem>>, %arg8: memref<48x64xf32, #tpu.memory_space<vmem>>, %arg9: memref<48x128xf32, #tpu.memory_space<vmem>>, %arg10: memref<48x256xf32, #tpu.memory_space<vmem>>, %arg11: memref<16x48xf32, #tpu.memory_space<vmem>>) attributes {dimension_semantics = [#tpu.dimension_semantics<parallel>], iteration_bounds = array<i64: 1>, scalar_prefetch = 0 : i64, scratch_operands = 0 : i64, tpu.core_type = #tpu.core_type<tc>, window_params = [{transform_indices = @transform_0, window_bounds = array<i64: 16, 48>}, {pipeline_mode = #tpu.pipeline_mode<synchronous>, transform_indices = @transform_1, window_bounds = array<i64: 2792, 48>}, {pipeline_mode = #tpu.pipeline_mode<synchronous>, transform_indices = @transform_2, window_bounds = array<i64: 56, 384>}, {pipeline_mode = #tpu.pipeline_mode<synchronous>, transform_indices = @transform_3, window_bounds = array<i64: 64, 1536>}, {pipeline_mode = #tpu.pipeline_mode<synchronous>, transform_indices = @transform_4, window_bounds = array<i64: 400, 16>}, {pipeline_mode = #tpu.pipeline_mode<synchronous>, transform_indices = @transform_5, window_bounds = array<i64: 16, 128>}, {pipeline_mode = #tpu.pipeline_mode<synchronous>, transform_indices = @transform_6, window_bounds = array<i64: 56, 8>}, {pipeline_mode = #tpu.pipeline_mode<synchronous>, transform_indices = @transform_7, window_bounds = array<i64: 48, 64>}, {pipeline_mode = #tpu.pipeline_mode<synchronous>, transform_indices = @transform_8, window_bounds = array<i64: 48, 128>}, {pipeline_mode = #tpu.pipeline_mode<synchronous>, transform_indices = @transform_9, window_bounds = array<i64: 48, 256>}, {transform_indices = @transform_10, window_bounds = array<i64: 16, 48>}]} {
    %c0 = arith.constant 0 : index
    %c0_0 = arith.constant 0 : index
    %0 = vector.load %arg1[%c0, %c0_0] : memref<16x48xf32, #tpu.memory_space<vmem>>, vector<16x48xf32>
    %c0_1 = arith.constant 0 : index
    %c0_2 = arith.constant 0 : index
    %1 = vector.load %arg2[%c0_1, %c0_2] : memref<2792x48xf32, #tpu.memory_space<vmem>>, vector<3x48xf32>
    %c8 = arith.constant 8 : index
    %c0_3 = arith.constant 0 : index
    %2 = vector.load %arg2[%c8, %c0_3] : memref<2792x48xf32, #tpu.memory_space<vmem>>, vector<3x48xf32>
    %c16 = arith.constant 16 : index
    %c0_4 = arith.constant 0 : index
    %3 = vector.load %arg2[%c16, %c0_4] : memref<2792x48xf32, #tpu.memory_space<vmem>>, vector<128x48xf32>
    %c144 = arith.constant 144 : index
    %c0_5 = arith.constant 0 : index
    %4 = vector.load %arg2[%c144, %c0_5] : memref<2792x48xf32, #tpu.memory_space<vmem>>, vector<144x48xf32>
    %c288 = arith.constant 288 : index
    %c0_6 = arith.constant 0 : index
    %5 = vector.load %arg2[%c288, %c0_6] : memref<2792x48xf32, #tpu.memory_space<vmem>>, vector<48x48xf32>
    %c336 = arith.constant 336 : index
    %c0_7 = arith.constant 0 : index
    %6 = vector.load %arg2[%c336, %c0_7] : memref<2792x48xf32, #tpu.memory_space<vmem>>, vector<1x48xf32>
    %c344 = arith.constant 344 : index
    %c0_8 = arith.constant 0 : index
    %7 = vector.load %arg2[%c344, %c0_8] : memref<2792x48xf32, #tpu.memory_space<vmem>>, vector<1536x48xf32>
    %c1880 = arith.constant 1880 : index
    %c0_9 = arith.constant 0 : index
    %8 = vector.load %arg2[%c1880, %c0_9] : memref<2792x48xf32, #tpu.memory_space<vmem>>, vector<8x48xf32>
    %c2768 = arith.constant 2768 : index
    %c0_10 = arith.constant 0 : index
    %9 = vector.load %arg2[%c2768, %c0_10] : memref<2792x48xf32, #tpu.memory_space<vmem>>, vector<3x48xf32>
    %c2776 = arith.constant 2776 : index
    %c0_11 = arith.constant 0 : index
    %10 = vector.load %arg2[%c2776, %c0_11] : memref<2792x48xf32, #tpu.memory_space<vmem>>, vector<3x48xf32>
    %c2784 = arith.constant 2784 : index
    %c0_12 = arith.constant 0 : index
    %11 = vector.load %arg2[%c2784, %c0_12] : memref<2792x48xf32, #tpu.memory_space<vmem>>, vector<3x48xf32>
    %c0_13 = arith.constant 0 : index
    %c0_14 = arith.constant 0 : index
    %12 = vector.load %arg3[%c0_13, %c0_14] : memref<56x384xf32, #tpu.memory_space<vmem>>, vector<48x384xf32>
    %c48 = arith.constant 48 : index
    %c0_15 = arith.constant 0 : index
    %13 = vector.load %arg3[%c48, %c0_15] : memref<56x384xf32, #tpu.memory_space<vmem>>, vector<1x384xf32>
    %c0_16 = arith.constant 0 : index
    %c0_17 = arith.constant 0 : index
    %14 = vector.load %arg4[%c0_16, %c0_17] : memref<64x1536xf32, #tpu.memory_space<vmem>>, vector<8x1536xf32>
    %c8_18 = arith.constant 8 : index
    %c0_19 = arith.constant 0 : index
    %15 = vector.load %arg4[%c8_18, %c0_19] : memref<64x1536xf32, #tpu.memory_space<vmem>>, vector<48x1536xf32>
    %c56 = arith.constant 56 : index
    %c0_20 = arith.constant 0 : index
    %16 = vector.load %arg4[%c56, %c0_20] : memref<64x1536xf32, #tpu.memory_space<vmem>>, vector<1x1536xf32>
    %c0_21 = arith.constant 0 : index
    %c0_22 = arith.constant 0 : index
    %17 = vector.load %arg5[%c0_21, %c0_22] : memref<400x16xf32, #tpu.memory_space<vmem>>, vector<144x16xf32>
    %18 = vector.extract_strided_slice %17 {offsets = [0, 0], sizes = [128, 16], strides = [1, 1]} : vector<144x16xf32> to vector<128x16xf32>
    %c144_23 = arith.constant 144 : index
    %c0_24 = arith.constant 0 : index
    %19 = vector.load %arg5[%c144_23, %c0_24] : memref<400x16xf32, #tpu.memory_space<vmem>>, vector<128x16xf32>
    %c272 = arith.constant 272 : index
    %c0_25 = arith.constant 0 : index
    %20 = vector.load %arg5[%c272, %c0_25] : memref<400x16xf32, #tpu.memory_space<vmem>>, vector<128x16xf32>
    %c0_26 = arith.constant 0 : index
    %c0_27 = arith.constant 0 : index
    %21 = vector.load %arg6[%c0_26, %c0_27] : memref<16x128xf32, #tpu.memory_space<vmem>>, vector<16x128xf32>
    %c0_28 = arith.constant 0 : index
    %c0_29 = arith.constant 0 : index
    %22 = vector.load %arg7[%c0_28, %c0_29] : memref<56x8xf32, #tpu.memory_space<vmem>>, vector<48x8xf32>
    %c48_30 = arith.constant 48 : index
    %c0_31 = arith.constant 0 : index
    %23 = vector.load %arg7[%c48_30, %c0_31] : memref<56x8xf32, #tpu.memory_space<vmem>>, vector<1x8xf32>
    %cst = arith.constant dense<0.000000e+00> : vector<16xf32>
    %24 = vector.multi_reduction <add>, %0, %cst [1] : vector<16x48xf32> to vector<16xf32>
    %25 = vector.shape_cast %24 : vector<16xf32> to vector<16x1xf32>
    %cst_32 = arith.constant 4.800000e+01 : f32
    %26 = vector.broadcast %cst_32 : f32 to vector<16x1xf32>
    %27 = arith.divf %25, %26 : vector<16x1xf32>
    %28 = arith.mulf %0, %0 : vector<16x48xf32>
    %cst_33 = arith.constant dense<0.000000e+00> : vector<16xf32>
    %29 = vector.multi_reduction <add>, %28, %cst_33 [1] : vector<16x48xf32> to vector<16xf32>
    %30 = vector.shape_cast %29 : vector<16xf32> to vector<16x1xf32>
    %cst_34 = arith.constant 4.800000e+01 : f32
    %31 = vector.broadcast %cst_34 : f32 to vector<16x1xf32>
    %32 = arith.divf %30, %31 : vector<16x1xf32>
    %33 = arith.mulf %27, %27 : vector<16x1xf32>
    %34 = arith.subf %32, %33 : vector<16x1xf32>
    %35 = vector.broadcast %27 : vector<16x1xf32> to vector<16x48xf32>
    %36 = arith.subf %0, %35 : vector<16x48xf32>
    %cst_35 = arith.constant 9.99999974E-6 : f32
    %37 = vector.broadcast %cst_35 : f32 to vector<16x1xf32>
    %38 = arith.addf %34, %37 : vector<16x1xf32>
    %39 = math.rsqrt %38 : vector<16x1xf32>
    %40 = vector.broadcast %39 : vector<16x1xf32> to vector<16x48xf32>
    %41 = arith.mulf %36, %40 : vector<16x48xf32>
    %42 = vector.extract_strided_slice %1 {offsets = [0, 0], sizes = [1, 48], strides = [1, 1]} : vector<3x48xf32> to vector<1x48xf32>
    %43 = vector.broadcast %42 : vector<1x48xf32> to vector<16x48xf32>
    %44 = arith.mulf %41, %43 : vector<16x48xf32>
    %45 = vector.extract_strided_slice %2 {offsets = [0, 0], sizes = [1, 48], strides = [1, 1]} : vector<3x48xf32> to vector<1x48xf32>
    %46 = vector.broadcast %45 : vector<1x48xf32> to vector<16x48xf32>
    %47 = arith.addf %44, %46 : vector<16x48xf32>
    %cst_36 = arith.constant dense<0.000000e+00> : vector<16x384xf32>
    %48 = tpu.matmul %47, %12, %cst_36 {dimension_numbers = #tpu.dot_dimension_numbers<[1], [0], [0], [1], [0, 0, 1, 1], [], []>} : vector<16x48xf32>, vector<48x384xf32>, vector<16x384xf32> -> vector<16x384xf32>
    %49 = vector.broadcast %13 : vector<1x384xf32> to vector<16x384xf32>
    %50 = arith.addf %48, %49 : vector<16x384xf32>
    %51 = vector.extract_strided_slice %50 {offsets = [0, 0], sizes = [16, 48], strides = [1, 1]} : vector<16x384xf32> to vector<16x48xf32>
    %52 = vector.extract_strided_slice %50 {offsets = [0, 128], sizes = [16, 48], strides = [1, 1]} : vector<16x384xf32> to vector<16x48xf32>
    %53 = vector.extract_strided_slice %50 {offsets = [0, 256], sizes = [16, 48], strides = [1, 1]} : vector<16x384xf32> to vector<16x48xf32>
    %cst_37 = arith.constant dense<0.000000e+00> : vector<144x48xf32>
    %54 = tpu.matmul %17, %51, %cst_37 {dimension_numbers = #tpu.dot_dimension_numbers<[1], [0], [0], [1], [0, 0, 1, 1], [], []>} : vector<144x16xf32>, vector<16x48xf32>, vector<144x48xf32> -> vector<144x48xf32>
    %55 = arith.mulf %54, %4 : vector<144x48xf32>
    %cst_38 = arith.constant dense<0.000000e+00> : vector<144x16xf32>
    %56 = tpu.matmul %55, %52, %cst_38 {dimension_numbers = #tpu.dot_dimension_numbers<[1], [1], [0], [0], [0, 0, 1, 0], [], []>} : vector<144x48xf32>, vector<16x48xf32>, vector<144x16xf32> -> vector<144x16xf32>
    %cst_39 = arith.constant 0.408248305 : f32
    %57 = vector.broadcast %cst_39 : f32 to vector<144x16xf32>
    %58 = arith.mulf %56, %57 : vector<144x16xf32>
    %59 = vector.extract_strided_slice %58 {offsets = [0, 0], sizes = [128, 16], strides = [1, 1]} : vector<144x16xf32> to vector<128x16xf32>
    %60 = vector.extract_strided_slice %58 {offsets = [128, 0], sizes = [16, 16], strides = [1, 1]} : vector<144x16xf32> to vector<16x16xf32>
    %cst_40 = arith.constant dense<0.000000e+00> : vector<128x16xf32>
    %61 = tpu.matmul %18, %60, %cst_40 {dimension_numbers = #tpu.dot_dimension_numbers<[1], [0], [0], [1], [0, 0, 1, 1], [], []>} : vector<128x16xf32>, vector<16x16xf32>, vector<128x16xf32> -> vector<128x16xf32>
    %62 = arith.mulf %19, %61 : vector<128x16xf32>
    %63 = arith.addf %59, %62 : vector<128x16xf32>
    %64 = math.tanh %63 : vector<128x16xf32>
    %65 = arith.addf %64, %20 : vector<128x16xf32>
    %cst_41 = arith.constant dense<0xFF800000> : vector<128xf32>
    %66 = vector.multi_reduction <maximumf>, %65, %cst_41 [1] : vector<128x16xf32> to vector<128xf32>
    %67 = vector.shape_cast %66 : vector<128xf32> to vector<128x1xf32>
    %68 = vector.broadcast %67 : vector<128x1xf32> to vector<128x16xf32>
    %69 = arith.subf %65, %68 : vector<128x16xf32>
    %70 = math.exp %69 : vector<128x16xf32>
    %cst_42 = arith.constant dense<0.000000e+00> : vector<128xf32>
    %71 = vector.multi_reduction <add>, %70, %cst_42 [1] : vector<128x16xf32> to vector<128xf32>
    %72 = vector.shape_cast %71 : vector<128xf32> to vector<128x1xf32>
    %73 = tpu.reciprocal %72 {approx = true} : vector<128x1xf32> -> vector<128x1xf32>
    %74 = vector.broadcast %73 : vector<128x1xf32> to vector<128x16xf32>
    %75 = arith.mulf %70, %74 : vector<128x16xf32>
    %cst_43 = arith.constant dense<0.000000e+00> : vector<128x48xf32>
    %76 = tpu.matmul %75, %53, %cst_43 {dimension_numbers = #tpu.dot_dimension_numbers<[1], [0], [0], [1], [0, 0, 1, 1], [], []>} : vector<128x16xf32>, vector<16x48xf32>, vector<128x48xf32> -> vector<128x48xf32>
    %77 = arith.mulf %76, %3 : vector<128x48xf32>
    %cst_44 = arith.constant dense<0.000000e+00> : vector<16x48xf32>
    %78 = tpu.matmul %21, %77, %cst_44 {dimension_numbers = #tpu.dot_dimension_numbers<[1], [0], [0], [1], [0, 0, 1, 1], [], []>} : vector<16x128xf32>, vector<128x48xf32>, vector<16x48xf32> -> vector<16x48xf32>
    %cst_45 = arith.constant dense<0.000000e+00> : vector<16x48xf32>
    %79 = tpu.matmul %78, %5, %cst_45 {dimension_numbers = #tpu.dot_dimension_numbers<[1], [0], [0], [1], [0, 0, 1, 1], [], []>} : vector<16x48xf32>, vector<48x48xf32>, vector<16x48xf32> -> vector<16x48xf32>
    %80 = vector.broadcast %6 : vector<1x48xf32> to vector<16x48xf32>
    %81 = arith.addf %79, %80 : vector<16x48xf32>
    %82 = arith.addf %0, %81 : vector<16x48xf32>
    %cst_46 = arith.constant dense<0.000000e+00> : vector<16xf32>
    %83 = vector.multi_reduction <add>, %82, %cst_46 [1] : vector<16x48xf32> to vector<16xf32>
    %84 = vector.shape_cast %83 : vector<16xf32> to vector<16x1xf32>
    %cst_47 = arith.constant 4.800000e+01 : f32
    %85 = vector.broadcast %cst_47 : f32 to vector<16x1xf32>
    %86 = arith.divf %84, %85 : vector<16x1xf32>
    %87 = arith.mulf %82, %82 : vector<16x48xf32>
    %cst_48 = arith.constant dense<0.000000e+00> : vector<16xf32>
    %88 = vector.multi_reduction <add>, %87, %cst_48 [1] : vector<16x48xf32> to vector<16xf32>
    %89 = vector.shape_cast %88 : vector<16xf32> to vector<16x1xf32>
    %cst_49 = arith.constant 4.800000e+01 : f32
    %90 = vector.broadcast %cst_49 : f32 to vector<16x1xf32>
    %91 = arith.divf %89, %90 : vector<16x1xf32>
    %92 = arith.mulf %86, %86 : vector<16x1xf32>
    %93 = arith.subf %91, %92 : vector<16x1xf32>
    %94 = vector.broadcast %86 : vector<16x1xf32> to vector<16x48xf32>
    %95 = arith.subf %82, %94 : vector<16x48xf32>
    %cst_50 = arith.constant 9.99999974E-6 : f32
    %96 = vector.broadcast %cst_50 : f32 to vector<16x1xf32>
    %97 = arith.addf %93, %96 : vector<16x1xf32>
    %98 = math.rsqrt %97 : vector<16x1xf32>
    %99 = vector.broadcast %98 : vector<16x1xf32> to vector<16x48xf32>
    %100 = arith.mulf %95, %99 : vector<16x48xf32>
    %101 = vector.extract_strided_slice %1 {offsets = [1, 0], sizes = [1, 48], strides = [1, 1]} : vector<3x48xf32> to vector<1x48xf32>
    %102 = vector.broadcast %101 : vector<1x48xf32> to vector<16x48xf32>
    %103 = arith.mulf %100, %102 : vector<16x48xf32>
    %104 = vector.extract_strided_slice %2 {offsets = [1, 0], sizes = [1, 48], strides = [1, 1]} : vector<3x48xf32> to vector<1x48xf32>
    %105 = vector.broadcast %104 : vector<1x48xf32> to vector<16x48xf32>
    %106 = arith.addf %103, %105 : vector<16x48xf32>
    %cst_51 = arith.constant dense<0.000000e+00> : vector<16x8xf32>
    %107 = tpu.matmul %106, %22, %cst_51 {dimension_numbers = #tpu.dot_dimension_numbers<[1], [0], [0], [1], [0, 0, 1, 1], [], []>} : vector<16x48xf32>, vector<48x8xf32>, vector<16x8xf32> -> vector<16x8xf32>
    %108 = vector.broadcast %23 : vector<1x8xf32> to vector<16x8xf32>
    %109 = arith.addf %107, %108 : vector<16x8xf32>
    %110 = tpu.iota {dimensions = array<i32: 1>} : vector<16x8xi32>
    %111 = arith.sitofp %110 : vector<16x8xi32> to vector<16x8xf32>
    %cst_52 = arith.constant dense<0xFF800000> : vector<16xf32>
    %112 = vector.multi_reduction <maximumf>, %109, %cst_52 [1] : vector<16x8xf32> to vector<16xf32>
    %113 = vector.shape_cast %112 : vector<16xf32> to vector<16x1xf32>
    %114 = vector.broadcast %113 : vector<16x1xf32> to vector<16x8xf32>
    %115 = arith.cmpf oeq, %109, %114 : vector<16x8xf32>
    %cst_53 = arith.constant 8.000000e+00 : f32
    %116 = vector.broadcast %cst_53 : f32 to vector<16x8xf32>
    %117 = arith.select %115, %111, %116 : vector<16x8xi1>, vector<16x8xf32>
    %cst_54 = arith.constant dense<0x7F800000> : vector<16xf32>
    %118 = vector.multi_reduction <minimumf>, %117, %cst_54 [1] : vector<16x8xf32> to vector<16xf32>
    %119 = vector.shape_cast %118 : vector<16xf32> to vector<16x1xf32>
    %120 = vector.broadcast %119 : vector<16x1xf32> to vector<16x8xf32>
    %121 = arith.cmpf oeq, %111, %120 : vector<16x8xf32>
    %cst_55 = arith.constant -1.000000e+30 : f32
    %122 = vector.broadcast %cst_55 : f32 to vector<16x8xf32>
    %123 = arith.select %121, %122, %109 : vector<16x8xi1>, vector<16x8xf32>
    %cst_56 = arith.constant dense<0xFF800000> : vector<16xf32>
    %124 = vector.multi_reduction <maximumf>, %123, %cst_56 [1] : vector<16x8xf32> to vector<16xf32>
    %125 = vector.shape_cast %124 : vector<16xf32> to vector<16x1xf32>
    %126 = vector.broadcast %125 : vector<16x1xf32> to vector<16x8xf32>
    %127 = arith.cmpf oeq, %123, %126 : vector<16x8xf32>
    %cst_57 = arith.constant 8.000000e+00 : f32
    %128 = vector.broadcast %cst_57 : f32 to vector<16x8xf32>
    %129 = arith.select %127, %111, %128 : vector<16x8xi1>, vector<16x8xf32>
    %cst_58 = arith.constant dense<0x7F800000> : vector<16xf32>
    %130 = vector.multi_reduction <minimumf>, %129, %cst_58 [1] : vector<16x8xf32> to vector<16xf32>
    %131 = vector.shape_cast %130 : vector<16xf32> to vector<16x1xf32>
    %132 = vector.broadcast %131 : vector<16x1xf32> to vector<16x8xf32>
    %133 = arith.cmpf oeq, %111, %132 : vector<16x8xf32>
    %134 = arith.subf %125, %113 : vector<16x1xf32>
    %135 = math.exp %134 : vector<16x1xf32>
    %cst_59 = arith.constant 1.000000e+00 : f32
    %136 = vector.broadcast %cst_59 : f32 to vector<16x1xf32>
    %137 = arith.addf %136, %135 : vector<16x1xf32>
    %cst_60 = arith.constant 1.000000e+00 : f32
    %138 = vector.broadcast %cst_60 : f32 to vector<16x1xf32>
    %139 = arith.divf %138, %137 : vector<16x1xf32>
    %cst_61 = arith.constant 0.000000e+00 : f32
    %140 = vector.shape_cast %139 : vector<16x1xf32> to vector<16x1xf32>
    %141 = vector.broadcast %140 : vector<16x1xf32> to vector<16x8xf32>
    %142 = vector.broadcast %cst_61 : f32 to vector<16x8xf32>
    %143 = arith.select %121, %141, %142 : vector<16x8xi1>, vector<16x8xf32>
    %144 = arith.mulf %135, %139 : vector<16x1xf32>
    %cst_62 = arith.constant 0.000000e+00 : f32
    %145 = vector.shape_cast %144 : vector<16x1xf32> to vector<16x1xf32>
    %146 = vector.broadcast %145 : vector<16x1xf32> to vector<16x8xf32>
    %147 = vector.broadcast %cst_62 : f32 to vector<16x8xf32>
    %148 = arith.select %133, %146, %147 : vector<16x8xi1>, vector<16x8xf32>
    %149 = arith.addf %143, %148 : vector<16x8xf32>
    %cst_63 = arith.constant dense<0.000000e+00> : vector<16x1536xf32>
    %150 = tpu.matmul %106, %15, %cst_63 {dimension_numbers = #tpu.dot_dimension_numbers<[1], [0], [0], [1], [0, 0, 1, 1], [], []>} : vector<16x48xf32>, vector<48x1536xf32>, vector<16x1536xf32> -> vector<16x1536xf32>
    %151 = vector.broadcast %16 : vector<1x1536xf32> to vector<16x1536xf32>
    %152 = arith.addf %150, %151 : vector<16x1536xf32>
    %cst_64 = arith.constant 5.000000e-01 : f32
    %153 = vector.broadcast %cst_64 : f32 to vector<16x1536xf32>
    %154 = arith.mulf %153, %152 : vector<16x1536xf32>
    %cst_65 = arith.constant 0.707106769 : f32
    %155 = vector.broadcast %cst_65 : f32 to vector<16x1536xf32>
    %156 = arith.mulf %152, %155 : vector<16x1536xf32>
    %157 = math.absf %156 : vector<16x1536xf32>
    %cst_66 = arith.constant 0.327591091 : f32
    %158 = vector.broadcast %cst_66 : f32 to vector<16x1536xf32>
    %159 = arith.mulf %158, %157 : vector<16x1536xf32>
    %cst_67 = arith.constant 1.000000e+00 : f32
    %160 = vector.broadcast %cst_67 : f32 to vector<16x1536xf32>
    %161 = arith.addf %160, %159 : vector<16x1536xf32>
    %cst_68 = arith.constant 1.000000e+00 : f32
    %162 = vector.broadcast %cst_68 : f32 to vector<16x1536xf32>
    %163 = arith.divf %162, %161 : vector<16x1536xf32>
    %cst_69 = arith.constant 1.06140542 : f32
    %164 = vector.broadcast %cst_69 : f32 to vector<16x1536xf32>
    %165 = arith.mulf %164, %163 : vector<16x1536xf32>
    %cst_70 = arith.constant -1.45315206 : f32
    %166 = vector.broadcast %cst_70 : f32 to vector<16x1536xf32>
    %167 = arith.addf %165, %166 : vector<16x1536xf32>
    %168 = arith.mulf %167, %163 : vector<16x1536xf32>
    %cst_71 = arith.constant 1.42141378 : f32
    %169 = vector.broadcast %cst_71 : f32 to vector<16x1536xf32>
    %170 = arith.addf %168, %169 : vector<16x1536xf32>
    %171 = arith.mulf %170, %163 : vector<16x1536xf32>
    %cst_72 = arith.constant -0.284496725 : f32
    %172 = vector.broadcast %cst_72 : f32 to vector<16x1536xf32>
    %173 = arith.addf %171, %172 : vector<16x1536xf32>
    %174 = arith.mulf %173, %163 : vector<16x1536xf32>
    %cst_73 = arith.constant 0.254829586 : f32
    %175 = vector.broadcast %cst_73 : f32 to vector<16x1536xf32>
    %176 = arith.addf %174, %175 : vector<16x1536xf32>
    %177 = arith.mulf %176, %163 : vector<16x1536xf32>
    %cst_74 = arith.constant 0.000000e+00 : f32
    %178 = vector.broadcast %cst_74 : f32 to vector<16x1536xf32>
    %179 = arith.subf %178, %157 : vector<16x1536xf32>
    %180 = arith.mulf %179, %157 : vector<16x1536xf32>
    %181 = math.exp %180 : vector<16x1536xf32>
    %182 = arith.mulf %177, %181 : vector<16x1536xf32>
    %cst_75 = arith.constant 1.000000e+00 : f32
    %183 = vector.broadcast %cst_75 : f32 to vector<16x1536xf32>
    %184 = arith.subf %183, %182 : vector<16x1536xf32>
    %cst_76 = arith.constant 0.000000e+00 : f32
    %185 = vector.broadcast %cst_76 : f32 to vector<16x1536xf32>
    %186 = arith.cmpf oge, %156, %185 : vector<16x1536xf32>
    %cst_77 = arith.constant 0.000000e+00 : f32
    %187 = vector.broadcast %cst_77 : f32 to vector<16x1536xf32>
    %188 = arith.subf %187, %184 : vector<16x1536xf32>
    %189 = arith.select %186, %184, %188 : vector<16x1536xi1>, vector<16x1536xf32>
    %cst_78 = arith.constant 1.000000e+00 : f32
    %190 = vector.broadcast %cst_78 : f32 to vector<16x1536xf32>
    %191 = arith.addf %190, %189 : vector<16x1536xf32>
    %192 = arith.mulf %154, %191 : vector<16x1536xf32>
    %cst_79 = arith.constant dense<0.000000e+00> : vector<16x1536xf32>
    %193 = tpu.matmul %149, %14, %cst_79 {dimension_numbers = #tpu.dot_dimension_numbers<[1], [0], [0], [1], [0, 0, 1, 1], [], []>} : vector<16x8xf32>, vector<8x1536xf32>, vector<16x1536xf32> -> vector<16x1536xf32>
    %194 = arith.mulf %192, %193 : vector<16x1536xf32>
    %cst_80 = arith.constant dense<0.000000e+00> : vector<16x48xf32>
    %195 = tpu.matmul %194, %7, %cst_80 {dimension_numbers = #tpu.dot_dimension_numbers<[1], [0], [0], [1], [0, 0, 1, 1], [], []>} : vector<16x1536xf32>, vector<1536x48xf32>, vector<16x48xf32> -> vector<16x48xf32>
    %cst_81 = arith.constant dense<0.000000e+00> : vector<16x48xf32>
    %196 = tpu.matmul %149, %8, %cst_81 {dimension_numbers = #tpu.dot_dimension_numbers<[1], [0], [0], [1], [0, 0, 1, 1], [], []>} : vector<16x8xf32>, vector<8x48xf32>, vector<16x48xf32> -> vector<16x48xf32>
    %197 = arith.addf %195, %196 : vector<16x48xf32>
    %198 = arith.addf %82, %197 : vector<16x48xf32>
    %c2336 = arith.constant 2336 : index
    %c0_82 = arith.constant 0 : index
    %199 = vector.load %arg2[%c2336, %c0_82] : memref<2792x48xf32, #tpu.memory_space<vmem>>, vector<48x48xf32>
    %c2384 = arith.constant 2384 : index
    %c0_83 = arith.constant 0 : index
    %200 = vector.load %arg2[%c2384, %c0_83] : memref<2792x48xf32, #tpu.memory_space<vmem>>, vector<48x48xf32>
    %c2432 = arith.constant 2432 : index
    %c0_84 = arith.constant 0 : index
    %201 = vector.load %arg2[%c2432, %c0_84] : memref<2792x48xf32, #tpu.memory_space<vmem>>, vector<48x48xf32>
    %c1888 = arith.constant 1888 : index
    %c0_85 = arith.constant 0 : index
    %202 = vector.load %arg2[%c1888, %c0_85] : memref<2792x48xf32, #tpu.memory_space<vmem>>, vector<64x48xf32>
    %cst_86 = arith.constant dense<0.000000e+00> : vector<16x48xf32>
    %203 = tpu.matmul %198, %199, %cst_86 {dimension_numbers = #tpu.dot_dimension_numbers<[1], [0], [0], [1], [0, 0, 1, 1], [], []>} : vector<16x48xf32>, vector<48x48xf32>, vector<16x48xf32> -> vector<16x48xf32>
    %204 = vector.extract_strided_slice %9 {offsets = [0, 0], sizes = [1, 48], strides = [1, 1]} : vector<3x48xf32> to vector<1x48xf32>
    %205 = vector.broadcast %204 : vector<1x48xf32> to vector<16x48xf32>
    %206 = arith.addf %203, %205 : vector<16x48xf32>
    %cst_87 = arith.constant dense<0.000000e+00> : vector<128x48xf32>
    %207 = tpu.matmul %18, %206, %cst_87 {dimension_numbers = #tpu.dot_dimension_numbers<[1], [0], [0], [1], [0, 0, 1, 1], [], []>} : vector<128x16xf32>, vector<16x48xf32>, vector<128x48xf32> -> vector<128x48xf32>
    %208 = arith.mulf %207, %3 : vector<128x48xf32>
    %c0_88 = arith.constant 0 : index
    %c0_89 = arith.constant 0 : index
    %209 = vector.load %arg8[%c0_88, %c0_89] : memref<48x64xf32, #tpu.memory_space<vmem>>, vector<48x64xf32>
    %cst_90 = arith.constant dense<0.000000e+00> : vector<128x64xf32>
    %210 = tpu.matmul %208, %209, %cst_90 {dimension_numbers = #tpu.dot_dimension_numbers<[1], [0], [0], [1], [0, 0, 1, 1], [], []>} : vector<128x48xf32>, vector<48x64xf32>, vector<128x64xf32> -> vector<128x64xf32>
    %cst_91 = arith.constant 0.408248305 : f32
    %211 = vector.broadcast %cst_91 : f32 to vector<128x64xf32>
    %212 = arith.mulf %210, %211 : vector<128x64xf32>
    %cst_92 = arith.constant dense<0xFF800000> : vector<128xf32>
    %213 = vector.multi_reduction <maximumf>, %212, %cst_92 [1] : vector<128x64xf32> to vector<128xf32>
    %214 = vector.shape_cast %213 : vector<128xf32> to vector<128x1xf32>
    %215 = vector.broadcast %214 : vector<128x1xf32> to vector<128x64xf32>
    %216 = arith.subf %212, %215 : vector<128x64xf32>
    %217 = math.exp %216 : vector<128x64xf32>
    %cst_93 = arith.constant dense<0.000000e+00> : vector<128xf32>
    %218 = vector.multi_reduction <add>, %217, %cst_93 [1] : vector<128x64xf32> to vector<128xf32>
    %219 = vector.shape_cast %218 : vector<128xf32> to vector<128x1xf32>
    %220 = tpu.reciprocal %219 {approx = true} : vector<128x1xf32> -> vector<128x1xf32>
    %221 = vector.broadcast %220 : vector<128x1xf32> to vector<128x64xf32>
    %222 = arith.mulf %217, %221 : vector<128x64xf32>
    %cst_94 = arith.constant dense<0.000000e+00> : vector<128x48xf32>
    %223 = tpu.matmul %222, %202, %cst_94 {dimension_numbers = #tpu.dot_dimension_numbers<[1], [0], [0], [1], [0, 0, 1, 1], [], []>} : vector<128x64xf32>, vector<64x48xf32>, vector<128x48xf32> -> vector<128x48xf32>
    %224 = arith.mulf %223, %3 : vector<128x48xf32>
    %cst_95 = arith.constant dense<0.000000e+00> : vector<16x48xf32>
    %225 = tpu.matmul %21, %224, %cst_95 {dimension_numbers = #tpu.dot_dimension_numbers<[1], [0], [0], [1], [0, 0, 1, 1], [], []>} : vector<16x128xf32>, vector<128x48xf32>, vector<16x48xf32> -> vector<16x48xf32>
    %cst_96 = arith.constant dense<0.000000e+00> : vector<16x48xf32>
    %226 = tpu.matmul %225, %200, %cst_96 {dimension_numbers = #tpu.dot_dimension_numbers<[1], [0], [0], [1], [0, 0, 1, 1], [], []>} : vector<16x48xf32>, vector<48x48xf32>, vector<16x48xf32> -> vector<16x48xf32>
    %227 = vector.extract_strided_slice %10 {offsets = [0, 0], sizes = [1, 48], strides = [1, 1]} : vector<3x48xf32> to vector<1x48xf32>
    %228 = vector.broadcast %227 : vector<1x48xf32> to vector<16x48xf32>
    %229 = arith.addf %226, %228 : vector<16x48xf32>
    %cst_97 = arith.constant dense<0.000000e+00> : vector<16x48xf32>
    %230 = tpu.matmul %229, %201, %cst_97 {dimension_numbers = #tpu.dot_dimension_numbers<[1], [0], [0], [1], [0, 0, 1, 1], [], []>} : vector<16x48xf32>, vector<48x48xf32>, vector<16x48xf32> -> vector<16x48xf32>
    %231 = vector.extract_strided_slice %11 {offsets = [0, 0], sizes = [1, 48], strides = [1, 1]} : vector<3x48xf32> to vector<1x48xf32>
    %232 = vector.broadcast %231 : vector<1x48xf32> to vector<16x48xf32>
    %233 = arith.addf %230, %232 : vector<16x48xf32>
    %c2480 = arith.constant 2480 : index
    %c0_98 = arith.constant 0 : index
    %234 = vector.load %arg2[%c2480, %c0_98] : memref<2792x48xf32, #tpu.memory_space<vmem>>, vector<48x48xf32>
    %c2528 = arith.constant 2528 : index
    %c0_99 = arith.constant 0 : index
    %235 = vector.load %arg2[%c2528, %c0_99] : memref<2792x48xf32, #tpu.memory_space<vmem>>, vector<48x48xf32>
    %c2576 = arith.constant 2576 : index
    %c0_100 = arith.constant 0 : index
    %236 = vector.load %arg2[%c2576, %c0_100] : memref<2792x48xf32, #tpu.memory_space<vmem>>, vector<48x48xf32>
    %c1952 = arith.constant 1952 : index
    %c0_101 = arith.constant 0 : index
    %237 = vector.load %arg2[%c1952, %c0_101] : memref<2792x48xf32, #tpu.memory_space<vmem>>, vector<128x48xf32>
    %cst_102 = arith.constant dense<0.000000e+00> : vector<16x48xf32>
    %238 = tpu.matmul %233, %234, %cst_102 {dimension_numbers = #tpu.dot_dimension_numbers<[1], [0], [0], [1], [0, 0, 1, 1], [], []>} : vector<16x48xf32>, vector<48x48xf32>, vector<16x48xf32> -> vector<16x48xf32>
    %239 = vector.extract_strided_slice %9 {offsets = [1, 0], sizes = [1, 48], strides = [1, 1]} : vector<3x48xf32> to vector<1x48xf32>
    %240 = vector.broadcast %239 : vector<1x48xf32> to vector<16x48xf32>
    %241 = arith.addf %238, %240 : vector<16x48xf32>
    %cst_103 = arith.constant dense<0.000000e+00> : vector<128x48xf32>
    %242 = tpu.matmul %18, %241, %cst_103 {dimension_numbers = #tpu.dot_dimension_numbers<[1], [0], [0], [1], [0, 0, 1, 1], [], []>} : vector<128x16xf32>, vector<16x48xf32>, vector<128x48xf32> -> vector<128x48xf32>
    %243 = arith.mulf %242, %3 : vector<128x48xf32>
    %c0_104 = arith.constant 0 : index
    %c0_105 = arith.constant 0 : index
    %244 = vector.load %arg9[%c0_104, %c0_105] : memref<48x128xf32, #tpu.memory_space<vmem>>, vector<48x128xf32>
    %cst_106 = arith.constant dense<0.000000e+00> : vector<128x128xf32>
    %245 = tpu.matmul %243, %244, %cst_106 {dimension_numbers = #tpu.dot_dimension_numbers<[1], [0], [0], [1], [0, 0, 1, 1], [], []>} : vector<128x48xf32>, vector<48x128xf32>, vector<128x128xf32> -> vector<128x128xf32>
    %cst_107 = arith.constant 0.408248305 : f32
    %246 = vector.broadcast %cst_107 : f32 to vector<128x128xf32>
    %247 = arith.mulf %245, %246 : vector<128x128xf32>
    %cst_108 = arith.constant dense<0xFF800000> : vector<128xf32>
    %248 = vector.multi_reduction <maximumf>, %247, %cst_108 [1] : vector<128x128xf32> to vector<128xf32>
    %249 = vector.shape_cast %248 : vector<128xf32> to vector<128x1xf32>
    %250 = vector.broadcast %249 : vector<128x1xf32> to vector<128x128xf32>
    %251 = arith.subf %247, %250 : vector<128x128xf32>
    %252 = math.exp %251 : vector<128x128xf32>
    %cst_109 = arith.constant dense<0.000000e+00> : vector<128xf32>
    %253 = vector.multi_reduction <add>, %252, %cst_109 [1] : vector<128x128xf32> to vector<128xf32>
    %254 = vector.shape_cast %253 : vector<128xf32> to vector<128x1xf32>
    %255 = tpu.reciprocal %254 {approx = true} : vector<128x1xf32> -> vector<128x1xf32>
    %256 = vector.broadcast %255 : vector<128x1xf32> to vector<128x128xf32>
    %257 = arith.mulf %252, %256 : vector<128x128xf32>
    %cst_110 = arith.constant dense<0.000000e+00> : vector<128x48xf32>
    %258 = tpu.matmul %257, %237, %cst_110 {dimension_numbers = #tpu.dot_dimension_numbers<[1], [0], [0], [1], [0, 0, 1, 1], [], []>} : vector<128x128xf32>, vector<128x48xf32>, vector<128x48xf32> -> vector<128x48xf32>
    %259 = arith.mulf %258, %3 : vector<128x48xf32>
    %cst_111 = arith.constant dense<0.000000e+00> : vector<16x48xf32>
    %260 = tpu.matmul %21, %259, %cst_111 {dimension_numbers = #tpu.dot_dimension_numbers<[1], [0], [0], [1], [0, 0, 1, 1], [], []>} : vector<16x128xf32>, vector<128x48xf32>, vector<16x48xf32> -> vector<16x48xf32>
    %cst_112 = arith.constant dense<0.000000e+00> : vector<16x48xf32>
    %261 = tpu.matmul %260, %235, %cst_112 {dimension_numbers = #tpu.dot_dimension_numbers<[1], [0], [0], [1], [0, 0, 1, 1], [], []>} : vector<16x48xf32>, vector<48x48xf32>, vector<16x48xf32> -> vector<16x48xf32>
    %262 = vector.extract_strided_slice %10 {offsets = [1, 0], sizes = [1, 48], strides = [1, 1]} : vector<3x48xf32> to vector<1x48xf32>
    %263 = vector.broadcast %262 : vector<1x48xf32> to vector<16x48xf32>
    %264 = arith.addf %261, %263 : vector<16x48xf32>
    %cst_113 = arith.constant dense<0.000000e+00> : vector<16x48xf32>
    %265 = tpu.matmul %264, %236, %cst_113 {dimension_numbers = #tpu.dot_dimension_numbers<[1], [0], [0], [1], [0, 0, 1, 1], [], []>} : vector<16x48xf32>, vector<48x48xf32>, vector<16x48xf32> -> vector<16x48xf32>
    %266 = vector.extract_strided_slice %11 {offsets = [1, 0], sizes = [1, 48], strides = [1, 1]} : vector<3x48xf32> to vector<1x48xf32>
    %267 = vector.broadcast %266 : vector<1x48xf32> to vector<16x48xf32>
    %268 = arith.addf %265, %267 : vector<16x48xf32>
    %c2624 = arith.constant 2624 : index
    %c0_114 = arith.constant 0 : index
    %269 = vector.load %arg2[%c2624, %c0_114] : memref<2792x48xf32, #tpu.memory_space<vmem>>, vector<48x48xf32>
    %c2672 = arith.constant 2672 : index
    %c0_115 = arith.constant 0 : index
    %270 = vector.load %arg2[%c2672, %c0_115] : memref<2792x48xf32, #tpu.memory_space<vmem>>, vector<48x48xf32>
    %c2720 = arith.constant 2720 : index
    %c0_116 = arith.constant 0 : index
    %271 = vector.load %arg2[%c2720, %c0_116] : memref<2792x48xf32, #tpu.memory_space<vmem>>, vector<48x48xf32>
    %c2080 = arith.constant 2080 : index
    %c0_117 = arith.constant 0 : index
    %272 = vector.load %arg2[%c2080, %c0_117] : memref<2792x48xf32, #tpu.memory_space<vmem>>, vector<256x48xf32>
    %cst_118 = arith.constant dense<0.000000e+00> : vector<16x48xf32>
    %273 = tpu.matmul %268, %269, %cst_118 {dimension_numbers = #tpu.dot_dimension_numbers<[1], [0], [0], [1], [0, 0, 1, 1], [], []>} : vector<16x48xf32>, vector<48x48xf32>, vector<16x48xf32> -> vector<16x48xf32>
    %274 = vector.extract_strided_slice %9 {offsets = [2, 0], sizes = [1, 48], strides = [1, 1]} : vector<3x48xf32> to vector<1x48xf32>
    %275 = vector.broadcast %274 : vector<1x48xf32> to vector<16x48xf32>
    %276 = arith.addf %273, %275 : vector<16x48xf32>
    %cst_119 = arith.constant dense<0.000000e+00> : vector<128x48xf32>
    %277 = tpu.matmul %18, %276, %cst_119 {dimension_numbers = #tpu.dot_dimension_numbers<[1], [0], [0], [1], [0, 0, 1, 1], [], []>} : vector<128x16xf32>, vector<16x48xf32>, vector<128x48xf32> -> vector<128x48xf32>
    %278 = arith.mulf %277, %3 : vector<128x48xf32>
    %c0_120 = arith.constant 0 : index
    %c0_121 = arith.constant 0 : index
    %279 = vector.load %arg10[%c0_120, %c0_121] : memref<48x256xf32, #tpu.memory_space<vmem>>, vector<48x256xf32>
    %cst_122 = arith.constant dense<0.000000e+00> : vector<128x256xf32>
    %280 = tpu.matmul %278, %279, %cst_122 {dimension_numbers = #tpu.dot_dimension_numbers<[1], [0], [0], [1], [0, 0, 1, 1], [], []>} : vector<128x48xf32>, vector<48x256xf32>, vector<128x256xf32> -> vector<128x256xf32>
    %cst_123 = arith.constant 0.408248305 : f32
    %281 = vector.broadcast %cst_123 : f32 to vector<128x256xf32>
    %282 = arith.mulf %280, %281 : vector<128x256xf32>
    %cst_124 = arith.constant dense<0xFF800000> : vector<128xf32>
    %283 = vector.multi_reduction <maximumf>, %282, %cst_124 [1] : vector<128x256xf32> to vector<128xf32>
    %284 = vector.shape_cast %283 : vector<128xf32> to vector<128x1xf32>
    %285 = vector.broadcast %284 : vector<128x1xf32> to vector<128x256xf32>
    %286 = arith.subf %282, %285 : vector<128x256xf32>
    %287 = math.exp %286 : vector<128x256xf32>
    %cst_125 = arith.constant dense<0.000000e+00> : vector<128xf32>
    %288 = vector.multi_reduction <add>, %287, %cst_125 [1] : vector<128x256xf32> to vector<128xf32>
    %289 = vector.shape_cast %288 : vector<128xf32> to vector<128x1xf32>
    %290 = tpu.reciprocal %289 {approx = true} : vector<128x1xf32> -> vector<128x1xf32>
    %291 = vector.broadcast %290 : vector<128x1xf32> to vector<128x256xf32>
    %292 = arith.mulf %287, %291 : vector<128x256xf32>
    %cst_126 = arith.constant dense<0.000000e+00> : vector<128x48xf32>
    %293 = tpu.matmul %292, %272, %cst_126 {dimension_numbers = #tpu.dot_dimension_numbers<[1], [0], [0], [1], [0, 0, 1, 1], [], []>} : vector<128x256xf32>, vector<256x48xf32>, vector<128x48xf32> -> vector<128x48xf32>
    %294 = arith.mulf %293, %3 : vector<128x48xf32>
    %cst_127 = arith.constant dense<0.000000e+00> : vector<16x48xf32>
    %295 = tpu.matmul %21, %294, %cst_127 {dimension_numbers = #tpu.dot_dimension_numbers<[1], [0], [0], [1], [0, 0, 1, 1], [], []>} : vector<16x128xf32>, vector<128x48xf32>, vector<16x48xf32> -> vector<16x48xf32>
    %cst_128 = arith.constant dense<0.000000e+00> : vector<16x48xf32>
    %296 = tpu.matmul %295, %270, %cst_128 {dimension_numbers = #tpu.dot_dimension_numbers<[1], [0], [0], [1], [0, 0, 1, 1], [], []>} : vector<16x48xf32>, vector<48x48xf32>, vector<16x48xf32> -> vector<16x48xf32>
    %297 = vector.extract_strided_slice %10 {offsets = [2, 0], sizes = [1, 48], strides = [1, 1]} : vector<3x48xf32> to vector<1x48xf32>
    %298 = vector.broadcast %297 : vector<1x48xf32> to vector<16x48xf32>
    %299 = arith.addf %296, %298 : vector<16x48xf32>
    %cst_129 = arith.constant dense<0.000000e+00> : vector<16x48xf32>
    %300 = tpu.matmul %299, %271, %cst_129 {dimension_numbers = #tpu.dot_dimension_numbers<[1], [0], [0], [1], [0, 0, 1, 1], [], []>} : vector<16x48xf32>, vector<48x48xf32>, vector<16x48xf32> -> vector<16x48xf32>
    %301 = vector.extract_strided_slice %11 {offsets = [2, 0], sizes = [1, 48], strides = [1, 1]} : vector<3x48xf32> to vector<1x48xf32>
    %302 = vector.broadcast %301 : vector<1x48xf32> to vector<16x48xf32>
    %303 = arith.addf %300, %302 : vector<16x48xf32>
    %304 = arith.addf %198, %233 : vector<16x48xf32>
    %305 = arith.addf %304, %268 : vector<16x48xf32>
    %306 = arith.addf %305, %303 : vector<16x48xf32>
    %cst_130 = arith.constant dense<0.000000e+00> : vector<16xf32>
    %307 = vector.multi_reduction <add>, %306, %cst_130 [1] : vector<16x48xf32> to vector<16xf32>
    %308 = vector.shape_cast %307 : vector<16xf32> to vector<16x1xf32>
    %cst_131 = arith.constant 4.800000e+01 : f32
    %309 = vector.broadcast %cst_131 : f32 to vector<16x1xf32>
    %310 = arith.divf %308, %309 : vector<16x1xf32>
    %311 = arith.mulf %306, %306 : vector<16x48xf32>
    %cst_132 = arith.constant dense<0.000000e+00> : vector<16xf32>
    %312 = vector.multi_reduction <add>, %311, %cst_132 [1] : vector<16x48xf32> to vector<16xf32>
    %313 = vector.shape_cast %312 : vector<16xf32> to vector<16x1xf32>
    %cst_133 = arith.constant 4.800000e+01 : f32
    %314 = vector.broadcast %cst_133 : f32 to vector<16x1xf32>
    %315 = arith.divf %313, %314 : vector<16x1xf32>
    %316 = arith.mulf %310, %310 : vector<16x1xf32>
    %317 = arith.subf %315, %316 : vector<16x1xf32>
    %318 = vector.broadcast %310 : vector<16x1xf32> to vector<16x48xf32>
    %319 = arith.subf %306, %318 : vector<16x48xf32>
    %cst_134 = arith.constant 9.99999974E-6 : f32
    %320 = vector.broadcast %cst_134 : f32 to vector<16x1xf32>
    %321 = arith.addf %317, %320 : vector<16x1xf32>
    %322 = math.rsqrt %321 : vector<16x1xf32>
    %323 = vector.broadcast %322 : vector<16x1xf32> to vector<16x48xf32>
    %324 = arith.mulf %319, %323 : vector<16x48xf32>
    %325 = vector.extract_strided_slice %1 {offsets = [2, 0], sizes = [1, 48], strides = [1, 1]} : vector<3x48xf32> to vector<1x48xf32>
    %326 = vector.broadcast %325 : vector<1x48xf32> to vector<16x48xf32>
    %327 = arith.mulf %324, %326 : vector<16x48xf32>
    %328 = vector.extract_strided_slice %2 {offsets = [2, 0], sizes = [1, 48], strides = [1, 1]} : vector<3x48xf32> to vector<1x48xf32>
    %329 = vector.broadcast %328 : vector<1x48xf32> to vector<16x48xf32>
    %330 = arith.addf %327, %329 : vector<16x48xf32>
    %c0_135 = arith.constant 0 : index
    %c0_136 = arith.constant 0 : index
    %331 = vector.load %arg11[%c0_135, %c0_136] : memref<16x48xf32, #tpu.memory_space<vmem>>, vector<16x48xf32>
    tpu.vector_store %arg11[%c0_135, %c0_136], %330 {strides = array<i32>} : memref<16x48xf32, #tpu.memory_space<vmem>>, vector<16x48xf32>,
    return
  }
  func.func @transform_0(%arg0: i32) -> (i32, i32) {
    %c0_i32 = arith.constant 0 : i32
    %c0_i32_0 = arith.constant 0 : i32
    return %arg0, %c0_i32 : i32, i32
  }
  func.func @transform_1(%arg0: i32) -> (i32, i32) {
    %c0_i32 = arith.constant 0 : i32
    %c0_i32_0 = arith.constant 0 : i32
    %c0_i32_1 = arith.constant 0 : i32
    return %c0_i32, %c0_i32_0 : i32, i32
  }
  func.func @transform_2(%arg0: i32) -> (i32, i32) {
    %c0_i32 = arith.constant 0 : i32
    %c0_i32_0 = arith.constant 0 : i32
    %c0_i32_1 = arith.constant 0 : i32
    return %c0_i32, %c0_i32_0 : i32, i32
  }
  func.func @transform_3(%arg0: i32) -> (i32, i32) {
    %c0_i32 = arith.constant 0 : i32
    %c0_i32_0 = arith.constant 0 : i32
    %c0_i32_1 = arith.constant 0 : i32
    return %c0_i32, %c0_i32_0 : i32, i32
  }
  func.func @transform_4(%arg0: i32) -> (i32, i32) {
    %c0_i32 = arith.constant 0 : i32
    %c0_i32_0 = arith.constant 0 : i32
    %c0_i32_1 = arith.constant 0 : i32
    return %c0_i32, %c0_i32_0 : i32, i32
  }
  func.func @transform_5(%arg0: i32) -> (i32, i32) {
    %c0_i32 = arith.constant 0 : i32
    %c0_i32_0 = arith.constant 0 : i32
    %c0_i32_1 = arith.constant 0 : i32
    return %c0_i32, %c0_i32_0 : i32, i32
  }
  func.func @transform_6(%arg0: i32) -> (i32, i32) {
    %c0_i32 = arith.constant 0 : i32
    %c0_i32_0 = arith.constant 0 : i32
    %c0_i32_1 = arith.constant 0 : i32
    return %c0_i32, %c0_i32_0 : i32, i32
  }
  func.func @transform_7(%arg0: i32) -> (i32, i32) {
    %c0_i32 = arith.constant 0 : i32
    %c0_i32_0 = arith.constant 0 : i32
    %c0_i32_1 = arith.constant 0 : i32
    return %c0_i32, %c0_i32_0 : i32, i32
  }
  func.func @transform_8(%arg0: i32) -> (i32, i32) {
    %c0_i32 = arith.constant 0 : i32
    %c0_i32_0 = arith.constant 0 : i32
    %c0_i32_1 = arith.constant 0 : i32
    return %c0_i32, %c0_i32_0 : i32, i32
  }
  func.func @transform_9(%arg0: i32) -> (i32, i32) {
    %c0_i32 = arith.constant 0 : i32
    %c0_i32_0 = arith.constant 0 : i32
    %c0_i32_1 = arith.constant 0 : i32
    return %c0_i32, %c0_i32_0 : i32, i32
  }
  func.func @transform_10(%arg0: i32) -> (i32, i32) {
    %c0_i32 = arith.constant 0 : i32
    %c0_i32_0 = arith.constant 0 : i32
    return %arg0, %c0_i32 : i32, i32
  }
}

</mosaic_0001>

<llo_original>
// kernel: advanced_transformer_block.1
$region0: #{advanced_transformer_block.1}
  #allocation0 [shape = 'u32[]', space=smem, size = 0x4, offset = 0x4, fixed_abs, tag = 'smem constant byte address 0x4 - core index']
  #allocation1 [shape = 'u32[72,128]{1,0:T(1,128)}', space=vmem, size = 0x9000, scoped, tag = 'internal scratch']
  %s0 = inlined_call_operand.vmem [shape: f32[16,48], index: 0, kind: input, shape index: {}]
  %s1 = inlined_call_operand.vmem [shape: f32[2792,48], index: 1, kind: input, shape index: {}]
  %s2 = inlined_call_operand.vmem [shape: f32[56,384], index: 2, kind: input, shape index: {}]
  %s3 = inlined_call_operand.vmem [shape: f32[64,1536], index: 3, kind: input, shape index: {}]
  %s4 = inlined_call_operand.vmem [shape: f32[400,16], index: 4, kind: input, shape index: {}]
  %s5 = inlined_call_operand.vmem [shape: f32[16,128], index: 5, kind: input, shape index: {}]
  %s6 = inlined_call_operand.vmem [shape: f32[56,8], index: 6, kind: input, shape index: {}]
  %s7 = inlined_call_operand.vmem [shape: f32[48,64], index: 7, kind: input, shape index: {}]
  %s8 = inlined_call_operand.vmem [shape: f32[48,128], index: 8, kind: input, shape index: {}]
  %s9 = inlined_call_operand.vmem [shape: f32[48,256], index: 9, kind: input, shape index: {}]
  %s10 = inlined_call_operand.hbm [shape: f32[16,48], index: 10, kind: output, shape index: {}]
  %s11 = sld [smem:[#allocation0]]
  $region50: #{advanced_transformer_block.1} parent=0
    _
  %s13 = ssub.s32 1, %s11
  %s14 = scalar_select 0, %s13, %s11
  $region1: #{advanced_transformer_block.1} parent=0
    #allocation2 [shape = 'u8[8192]{0}', space=vmem, size = 0x2000, scoped, tag = 'output window, operand 0, single buffered']
    #allocation3 [shape = 's32[1]{0}', space=sflag, size = 0x4, scoped, tag = 'scoped memory for advanced_transformer_block.1']
    %15 = vsyncpa [#allocation3], 0
    // Predicated region
    $region2: #{advanced_transformer_block.1} parent=1 // pred_check
      _
    $region3: #{advanced_transformer_block.1} parent=1 // pred_check_branch
      %17 = sbr.rel (0) target = $region5
    $region4: #{advanced_transformer_block.1} parent=1 // pred_region
      _
    $region5: #{advanced_transformer_block.1} parent=1 // pred_fallthru
      _
    // Predicated region
    $region6: #{advanced_transformer_block.1} parent=1 // pred_check
      _
    $region7: #{advanced_transformer_block.1} parent=1 // pred_check_branch
      %19 = sbr.rel (0) target = $region9
    $region8: #{advanced_transformer_block.1} parent=1 // pred_region
      _
    $region9: #{advanced_transformer_block.1} parent=1 // pred_fallthru
      _
    // Predicated region
    $region10: #{advanced_transformer_block.1} parent=1 // pred_check
      _
    $region11: #{advanced_transformer_block.1} parent=1 // pred_check_branch
      %21 = sbr.rel (0) target = $region13
    $region12: #{advanced_transformer_block.1} parent=1 // pred_region
      _
    $region13: #{advanced_transformer_block.1} parent=1 // pred_fallthru
      _
    // Predicated region
    $region14: #{advanced_transformer_block.1} parent=1 // pred_check
      _
    $region15: #{advanced_transformer_block.1} parent=1 // pred_check_branch
      %23 = sbr.rel (0) target = $region17
    $region16: #{advanced_transformer_block.1} parent=1 // pred_region
      _
    $region17: #{advanced_transformer_block.1} parent=1 // pred_fallthru
      _
    // Predicated region
    $region18: #{advanced_transformer_block.1} parent=1 // pred_check
      _
    $region19: #{advanced_transformer_block.1} parent=1 // pred_check_branch
      %25 = sbr.rel (0) target = $region21
    $region20: #{advanced_transformer_block.1} parent=1 // pred_region
      _
    $region21: #{advanced_transformer_block.1} parent=1 // pred_fallthru
      _
    // Predicated region
    $region22: #{advanced_transformer_block.1} parent=1 // pred_check
      _
    $region23: #{advanced_transformer_block.1} parent=1 // pred_check_branch
      %27 = sbr.rel (0) target = $region25
    $region24: #{advanced_transformer_block.1} parent=1 // pred_region
      _
    $region25: #{advanced_transformer_block.1} parent=1 // pred_fallthru
      _
    // Predicated region
    $region26: #{advanced_transformer_block.1} parent=1 // pred_check
      _
    $region27: #{advanced_transformer_block.1} parent=1 // pred_check_branch
      %29 = sbr.rel (0) target = $region29
    $region28: #{advanced_transformer_block.1} parent=1 // pred_region
      _
    $region29: #{advanced_transformer_block.1} parent=1 // pred_fallthru
      _
    // Predicated region
    $region30: #{advanced_transformer_block.1} parent=1 // pred_check
      _
    $region31: #{advanced_transformer_block.1} parent=1 // pred_check_branch
      %31 = sbr.rel (0) target = $region33
    $region32: #{advanced_transformer_block.1} parent=1 // pred_region
      _
    $region33: #{advanced_transformer_block.1} parent=1 // pred_fallthru
      _
    // Predicated region
    $region34: #{advanced_transformer_block.1} parent=1 // pred_check
      _
    $region35: #{advanced_transformer_block.1} parent=1 // pred_check_branch
      %33 = sbr.rel (0) target = $region37
    $region36: #{advanced_transformer_block.1} parent=1 // pred_region
      _
    $region37: #{advanced_transformer_block.1} parent=1 // pred_fallthru
      _
    // Predicated region
    $region38: #{advanced_transformer_block.1} parent=1 // pred_check
      _
    $region39: #{advanced_transformer_block.1} parent=1 // pred_check_branch
      %35 = sbr.rel (0) target = $region41
    $region40: #{advanced_transformer_block.1} parent=1 // pred_region
      _
    $region41: #{advanced_transformer_block.1} parent=1 // pred_fallthru
      _
    %v36 = vld [vmem:[%s0] sm:$0xff]
    %v37 = vld [vmem:[%s0 + $0x8] sm:$0xff]
    %v38 = vld [vmem:[%s1] sm:$0x7]
    %v39 = vld [vmem:[%s1 + $0x8] sm:$0x7]
    %v40 = vld [vmem:[%s1 + $0x10] sm:$0xff]
    %v41 = vld [vmem:[%s1 + $0x18] sm:$0xff]
    %v42 = vld [vmem:[%s1 + $0x20] sm:$0xff]
    %v43 = vld [vmem:[%s1 + $0x28] sm:$0xff]
    %v44 = vld [vmem:[%s1 + $0x30] sm:$0xff]
    %v45 = vld [vmem:[%s1 + $0x38] sm:$0xff]
    %v46 = vld [vmem:[%s1 + $0x40] sm:$0xff]
    %v47 = vld [vmem:[%s1 + $0x48] sm:$0xff]
    %v48 = vld [vmem:[%s1 + $0x50] sm:$0xff]
    %v49 = vld [vmem:[%s1 + $0x58] sm:$0xff]
    %v50 = vld [vmem:[%s1 + $0x60] sm:$0xff]
    %v51 = vld [vmem:[%s1 + $0x68] sm:$0xff]
    %v52 = vld [vmem:[%s1 + $0x70] sm:$0xff]
    %v53 = vld [vmem:[%s1 + $0x78] sm:$0xff]
    %v54 = vld [vmem:[%s1 + $0x80] sm:$0xff]
    %v55 = vld [vmem:[%s1 + $0x88] sm:$0xff]
    %v56 = vld [vmem:[%s1 + $0x90] sm:$0xff]
    %v57 = vld [vmem:[%s1 + $0x98] sm:$0xff]
    %v58 = vld [vmem:[%s1 + $0xa0] sm:$0xff]
    %v59 = vld [vmem:[%s1 + $0xa8] sm:$0xff]
    %v60 = vld [vmem:[%s1 + $0xb0] sm:$0xff]
    %v61 = vld [vmem:[%s1 + $0xb8] sm:$0xff]
    %v62 = vld [vmem:[%s1 + $0xc0] sm:$0xff]
    %v63 = vld [vmem:[%s1 + $0xc8] sm:$0xff]
    %v64 = vld [vmem:[%s1 + $0xd0] sm:$0xff]
    %v65 = vld [vmem:[%s1 + $0xd8] sm:$0xff]
    %v66 = vld [vmem:[%s1 + $0xe0] sm:$0xff]
    %v67 = vld [vmem:[%s1 + $0xe8] sm:$0xff]
    %v68 = vld [vmem:[%s1 + $0xf0] sm:$0xff]
    %v69 = vld [vmem:[%s1 + $0xf8] sm:$0xff]
    %v70 = vld [vmem:[%s1 + $0x100] sm:$0xff]
    %v71 = vld [vmem:[%s1 + $0x108] sm:$0xff]
    %v72 = vld [vmem:[%s1 + $0x110] sm:$0xff]
    %v73 = vld [vmem:[%s1 + $0x118] sm:$0xff]
    %v74 = vld [vmem:[%s1 + $0x120] sm:$0xff]
    %v75 = vld [vmem:[%s1 + $0x128] sm:$0xff]
    %v76 = vld [vmem:[%s1 + $0x130] sm:$0xff]
    %v77 = vld [vmem:[%s1 + $0x138] sm:$0xff]
    %v78 = vld [vmem:[%s1 + $0x140] sm:$0xff]
    %v79 = vld [vmem:[%s1 + $0x148] sm:$0xff]
    %v80 = vld [vmem:[%s1 + $0x150] sm:$0x1]
    %v81 = vld [vmem:[%s1 + $0x158] sm:$0xff]
    %v82 = vld [vmem:[%s1 + $0x160] sm:$0xff]
    %v83 = vld [vmem:[%s1 + $0x168] sm:$0xff]
    %v84 = vld [vmem:[%s1 + $0x170] sm:$0xff]
    %v85 = vld [vmem:[%s1 + $0x178] sm:$0xff]
    %v86 = vld [vmem:[%s1 + $0x180] sm:$0xff]
    %v87 = vld [vmem:[%s1 + $0x188] sm:$0xff]
    %v88 = vld [vmem:[%s1 + $0x190] sm:$0xff]
    %v89 = vld [vmem:[%s1 + $0x198] sm:$0xff]
    %v90 = vld [vmem:[%s1 + $0x1a0] sm:$0xff]
    %v91 = vld [vmem:[%s1 + $0x1a8] sm:$0xff]
    %v92 = vld [vmem:[%s1 + $0x1b0] sm:$0xff]
    %v93 = vld [vmem:[%s1 + $0x1b8] sm:$0xff]
    %v94 = vld [vmem:[%s1 + $0x1c0] sm:$0xff]
    %v95 = vld [vmem:[%s1 + $0x1c8] sm:$0xff]
    %v96 = vld [vmem:[%s1 + $0x1d0] sm:$0xff]
    %v97 = vld [vmem:[%s1 + $0x1d8] sm:$0xff]
    %v98 = vld [vmem:[%s1 + $0x1e0] sm:$0xff]
    %v99 = vld [vmem:[%s1 + $0x1e8] sm:$0xff]
    %v100 = vld [vmem:[%s1 + $0x1f0] sm:$0xff]
    %v101 = vld [vmem:[%s1 + $0x1f8] sm:$0xff]
    %v102 = vld [vmem:[%s1 + $0x200] sm:$0xff]
    %v103 = vld [vmem:[%s1 + $0x208] sm:$0xff]
    %v104 = vld [vmem:[%s1 + $0x210] sm:$0xff]
    %v105 = vld [vmem:[%s1 + $0x218] sm:$0xff]
    %v106 = vld [vmem:[%s1 + $0x220] sm:$0xff]
    %v107 = vld [vmem:[%s1 + $0x228] sm:$0xff]
    %v108 = vld [vmem:[%s1 + $0x230] sm:$0xff]
    %v109 = vld [vmem:[%s1 + $0x238] sm:$0xff]
    %v110 = vld [vmem:[%s1 + $0x240] sm:$0xff]
    %v111 = vld [vmem:[%s1 + $0x248] sm:$0xff]
    %v112 = vld [vmem:[%s1 + $0x250] sm:$0xff]
    %v113 = vld [vmem:[%s1 + $0x258] sm:$0xff]
    %v114 = vld [vmem:[%s1 + $0x260] sm:$0xff]
    %v115 = vld [vmem:[%s1 + $0x268] sm:$0xff]
    %v116 = vld [vmem:[%s1 + $0x270] sm:$0xff]
    %v117 = vld [vmem:[%s1 + $0x278] sm:$0xff]
    %v118 = vld [vmem:[%s1 + $0x280] sm:$0xff]
    %v119 = vld [vmem:[%s1 + $0x288] sm:$0xff]
    %v120 = vld [vmem:[%s1 + $0x290] sm:$0xff]
    %v121 = vld [vmem:[%s1 + $0x298] sm:$0xff]
    %v122 = vld [vmem:[%s1 + $0x2a0] sm:$0xff]
    %v123 = vld [vmem:[%s1 + $0x2a8] sm:$0xff]
    %v124 = vld [vmem:[%s1 + $0x2b0] sm:$0xff]
    %v125 = vld [vmem:[%s1 + $0x2b8] sm:$0xff]
    %v126 = vld [vmem:[%s1 + $0x2c0] sm:$0xff]
    %v127 = vld [vmem:[%s1 + $0x2c8] sm:$0xff]
    %v128 = vld [vmem:[%s1 + $0x2d0] sm:$0xff]
    %v129 = vld [vmem:[%s1 + $0x2d8] sm:$0xff]
    %v130 = vld [vmem:[%s1 + $0x2e0] sm:$0xff]
    %v131 = vld [vmem:[%s1 + $0x2e8] sm:$0xff]
    %v132 = vld [vmem:[%s1 + $0x2f0] sm:$0xff]
    %v133 = vld [vmem:[%s1 + $0x2f8] sm:$0xff]
    %v134 = vld [vmem:[%s1 + $0x300] sm:$0xff]
    %v135 = vld [vmem:[%s1 + $0x308] sm:$0xff]
    %v136 = vld [vmem:[%s1 + $0x310] sm:$0xff]
    %v137 = vld [vmem:[%s1 + $0x318] sm:$0xff]
    %v138 = vld [vmem:[%s1 + $0x320] sm:$0xff]
    %v139 = vld [vmem:[%s1 + $0x328] sm:$0xff]
    %v140 = vld [vmem:[%s1 + $0x330] sm:$0xff]
    %v141 = vld [vmem:[%s1 + $0x338] sm:$0xff]
    %v142 = vld [vmem:[%s1 + $0x340] sm:$0xff]
    %v143 = vld [vmem:[%s1 + $0x348] sm:$0xff]
    %v144 = vld [vmem:[%s1 + $0x350] sm:$0xff]
    %v145 = vld [vmem:[%s1 + $0x358] sm:$0xff]
    %v146 = vld [vmem:[%s1 + $0x360] sm:$0xff]
    %v147 = vld [vmem:[%s1 + $0x368] sm:$0xff]
    %v148 = vld [vmem:[%s1 + $0x370] sm:$0xff]
    %v149 = vld [vmem:[%s1 + $0x378] sm:$0xff]
    %v150 = vld [vmem:[%s1 + $0x380] sm:$0xff]
    %v151 = vld [vmem:[%s1 + $0x388] sm:$0xff]
    %v152 = vld [vmem:[%s1 + $0x390] sm:$0xff]
    %v153 = vld [vmem:[%s1 + $0x398] sm:$0xff]
    %v154 = vld [vmem:[%s1 + $0x3a0] sm:$0xff]
    %v155 = vld [vmem:[%s1 + $0x3a8] sm:$0xff]
    %v156 = vld [vmem:[%s1 + $0x3b0] sm:$0xff]
    %v157 = vld [vmem:[%s1 + $0x3b8] sm:$0xff]
    %v158 = vld [vmem:[%s1 + $0x3c0] sm:$0xff]
    %v159 = vld [vmem:[%s1 + $0x3c8] sm:$0xff]
    %v160 = vld [vmem:[%s1 + $0x3d0] sm:$0xff]
    %v161 = vld [vmem:[%s1 + $0x3d8] sm:$0xff]
    %v162 = vld [vmem:[%s1 + $0x3e0] sm:$0xff]
    %v163 = vld [vmem:[%s1 + $0x3e8] sm:$0xff]
    %v164 = vld [vmem:[%s1 + $0x3f0] sm:$0xff]
    %v165 = vld [vmem:[%s1 + $0x3f8] sm:$0xff]
    %v166 = vld [vmem:[%s1 + $0x400] sm:$0xff]
    %v167 = vld [vmem:[%s1 + $0x408] sm:$0xff]
    %v168 = vld [vmem:[%s1 + $0x410] sm:$0xff]
    %v169 = vld [vmem:[%s1 + $0x418] sm:$0xff]
    %v170 = vld [vmem:[%s1 + $0x420] sm:$0xff]
    %v171 = vld [vmem:[%s1 + $0x428] sm:$0xff]
    %v172 = vld [vmem:[%s1 + $0x430] sm:$0xff]
    %v173 = vld [vmem:[%s1 + $0x438] sm:$0xff]
    %v174 = vld [vmem:[%s1 + $0x440] sm:$0xff]
    %v175 = vld [vmem:[%s1 + $0x448] sm:$0xff]
    %v176 = vld [vmem:[%s1 + $0x450] sm:$0xff]
    %v177 = vld [vmem:[%s1 + $0x458] sm:$0xff]
    %v178 = vld [vmem:[%s1 + $0x460] sm:$0xff]
    %v179 = vld [vmem:[%s1 + $0x468] sm:$0xff]
    %v180 = vld [vmem:[%s1 + $0x470] sm:$0xff]
    %v181 = vld [vmem:[%s1 + $0x478] sm:$0xff]
    %v182 = vld [vmem:[%s1 + $0x480] sm:$0xff]
    %v183 = vld [vmem:[%s1 + $0x488] sm:$0xff]
    %v184 = vld [vmem:[%s1 + $0x490] sm:$0xff]
    %v185 = vld [vmem:[%s1 + $0x498] sm:$0xff]
    %v186 = vld [vmem:[%s1 + $0x4a0] sm:$0xff]
    %v187 = vld [vmem:[%s1 + $0x4a8] sm:$0xff]
    %v188 = vld [vmem:[%s1 + $0x4b0] sm:$0xff]
    %v189 = vld [vmem:[%s1 + $0x4b8] sm:$0xff]
    %v190 = vld [vmem:[%s1 + $0x4c0] sm:$0xff]
    %v191 = vld [vmem:[%s1 + $0x4c8] sm:$0xff]
    %v192 = vld [vmem:[%s1 + $0x4d0] sm:$0xff]
    %v193 = vld [vmem:[%s1 + $0x4d8] sm:$0xff]
    %v194 = vld [vmem:[%s1 + $0x4e0] sm:$0xff]
    %v195 = vld [vmem:[%s1 + $0x4e8] sm:$0xff]
    %v196 = vld [vmem:[%s1 + $0x4f0] sm:$0xff]
    %v197 = vld [vmem:[%s1 + $0x4f8] sm:$0xff]
    %v198 = vld [vmem:[%s1 + $0x500] sm:$0xff]
    %v199 = vld [vmem:[%s1 + $0x508] sm:$0xff]
    %v200 = vld [vmem:[%s1 + $0x510] sm:$0xff]
    %v201 = vld [vmem:[%s1 + $0x518] sm:$0xff]
    %v202 = vld [vmem:[%s1 + $0x520] sm:$0xff]
    %v203 = vld [vmem:[%s1 + $0x528] sm:$0xff]
    %v204 = vld [vmem:[%s1 + $0x530] sm:$0xff]
    %v205 = vld [vmem:[%s1 + $0x538] sm:$0xff]
    %v206 = vld [vmem:[%s1 + $0x540] sm:$0xff]
    %v207 = vld [vmem:[%s1 + $0x548] sm:$0xff]
    %v208 = vld [vmem:[%s1 + $0x550] sm:$0xff]
    %v209 = vld [vmem:[%s1 + $0x558] sm:$0xff]
    %v210 = vld [vmem:[%s1 + $0x560] sm:$0xff]
    %v211 = vld [vmem:[%s1 + $0x568] sm:$0xff]
    %v212 = vld [vmem:[%s1 + $0x570] sm:$0xff]
    %v213 = vld [vmem:[%s1 + $0x578] sm:$0xff]
    %v214 = vld [vmem:[%s1 + $0x580] sm:$0xff]
    %v215 = vld [vmem:[%s1 + $0x588] sm:$0xff]
    %v216 = vld [vmem:[%s1 + $0x590] sm:$0xff]
    %v217 = vld [vmem:[%s1 + $0x598] sm:$0xff]
    %v218 = vld [vmem:[%s1 + $0x5a0] sm:$0xff]
    %v219 = vld [vmem:[%s1 + $0x5a8] sm:$0xff]
    %v220 = vld [vmem:[%s1 + $0x5b0] sm:$0xff]
    %v221 = vld [vmem:[%s1 + $0x5b8] sm:$0xff]
    %v222 = vld [vmem:[%s1 + $0x5c0] sm:$0xff]
    %v223 = vld [vmem:[%s1 + $0x5c8] sm:$0xff]
    %v224 = vld [vmem:[%s1 + $0x5d0] sm:$0xff]
    %v225 = vld [vmem:[%s1 + $0x5d8] sm:$0xff]
    %v226 = vld [vmem:[%s1 + $0x5e0] sm:$0xff]
    %v227 = vld [vmem:[%s1 + $0x5e8] sm:$0xff]
    %v228 = vld [vmem:[%s1 + $0x5f0] sm:$0xff]
    %v229 = vld [vmem:[%s1 + $0x5f8] sm:$0xff]
    %v230 = vld [vmem:[%s1 + $0x600] sm:$0xff]
    %v231 = vld [vmem:[%s1 + $0x608] sm:$0xff]
    %v232 = vld [vmem:[%s1 + $0x610] sm:$0xff]
    %v233 = vld [vmem:[%s1 + $0x618] sm:$0xff]
    %v234 = vld [vmem:[%s1 + $0x620] sm:$0xff]
    %v235 = vld [vmem:[%s1 + $0x628] sm:$0xff]
    %v236 = vld [vmem:[%s1 + $0x630] sm:$0xff]
    %v237 = vld [vmem:[%s1 + $0x638] sm:$0xff]
    %v238 = vld [vmem:[%s1 + $0x640] sm:$0xff]
    %v239 = vld [vmem:[%s1 + $0x648] sm:$0xff]
    %v240 = vld [vmem:[%s1 + $0x650] sm:$0xff]
    %v241 = vld [vmem:[%s1 + $0x658] sm:$0xff]
    %v242 = vld [vmem:[%s1 + $0x660] sm:$0xff]
    %v243 = vld [vmem:[%s1 + $0x668] sm:$0xff]
    %v244 = vld [vmem:[%s1 + $0x670] sm:$0xff]
    %v245 = vld [vmem:[%s1 + $0x678] sm:$0xff]
    %v246 = vld [vmem:[%s1 + $0x680] sm:$0xff]
    %v247 = vld [vmem:[%s1 + $0x688] sm:$0xff]
    %v248 = vld [vmem:[%s1 + $0x690] sm:$0xff]
    %v249 = vld [vmem:[%s1 + $0x698] sm:$0xff]
    %v250 = vld [vmem:[%s1 + $0x6a0] sm:$0xff]
    %v251 = vld [vmem:[%s1 + $0x6a8] sm:$0xff]
    %v252 = vld [vmem:[%s1 + $0x6b0] sm:$0xff]
    %v253 = vld [vmem:[%s1 + $0x6b8] sm:$0xff]
    %v254 = vld [vmem:[%s1 + $0x6c0] sm:$0xff]
    %v255 = vld [vmem:[%s1 + $0x6c8] sm:$0xff]
    %v256 = vld [vmem:[%s1 + $0x6d0] sm:$0xff]
    %v257 = vld [vmem:[%s1 + $0x6d8] sm:$0xff]
    %v258 = vld [vmem:[%s1 + $0x6e0] sm:$0xff]
    %v259 = vld [vmem:[%s1 + $0x6e8] sm:$0xff]
    %v260 = vld [vmem:[%s1 + $0x6f0] sm:$0xff]
    %v261 = vld [vmem:[%s1 + $0x6f8] sm:$0xff]
    %v262 = vld [vmem:[%s1 + $0x700] sm:$0xff]
    %v263 = vld [vmem:[%s1 + $0x708] sm:$0xff]
    %v264 = vld [vmem:[%s1 + $0x710] sm:$0xff]
    %v265 = vld [vmem:[%s1 + $0x718] sm:$0xff]
    %v266 = vld [vmem:[%s1 + $0x720] sm:$0xff]
    %v267 = vld [vmem:[%s1 + $0x728] sm:$0xff]
    %v268 = vld [vmem:[%s1 + $0x730] sm:$0xff]
    %v269 = vld [vmem:[%s1 + $0x738] sm:$0xff]
    %v270 = vld [vmem:[%s1 + $0x740] sm:$0xff]
    %v271 = vld [vmem:[%s1 + $0x748] sm:$0xff]
    %v272 = vld [vmem:[%s1 + $0x750] sm:$0xff]
    %v273 = vld [vmem:[%s1 + $0x758] sm:$0xff]
    %v274 = vld [vmem:[%s1 + $0xad0] sm:$0x7]
    %v275 = vld [vmem:[%s1 + $0xad8] sm:$0x7]
    %v276 = vld [vmem:[%s1 + $0xae0] sm:$0x7]
    %v277 = vld [vmem:[%s2] sm:$0xff]
    %v278 = vld [vmem:[%s2 + $0x8] sm:$0xff]
    %v279 = vld [vmem:[%s2 + $0x10] sm:$0xff]
    %v280 = vld [vmem:[%s2 + $0x18] sm:$0xff]
    %v281 = vld [vmem:[%s2 + $0x20] sm:$0xff]
    %v282 = vld [vmem:[%s2 + $0x28] sm:$0xff]
    %v283 = vld [vmem:[%s2 + $0x30] sm:$0xff]
    %v284 = vld [vmem:[%s2 + $0x38] sm:$0xff]
    %v285 = vld [vmem:[%s2 + $0x40] sm:$0xff]
    %v286 = vld [vmem:[%s2 + $0x48] sm:$0xff]
    %v287 = vld [vmem:[%s2 + $0x50] sm:$0xff]
    %v288 = vld [vmem:[%s2 + $0x58] sm:$0xff]
    %v289 = vld [vmem:[%s2 + $0x60] sm:$0xff]
    %v290 = vld [vmem:[%s2 + $0x68] sm:$0xff]
    %v291 = vld [vmem:[%s2 + $0x70] sm:$0xff]
    %v292 = vld [vmem:[%s2 + $0x78] sm:$0xff]
    %v293 = vld [vmem:[%s2 + $0x80] sm:$0xff]
    %v294 = vld [vmem:[%s2 + $0x88] sm:$0xff]
    %s295 = scalar_lea.vmem %s2, 144
    %v296 = vld [vmem:[%s295] ss:$8 sm:$0x7]
    %v297 = vld [vmem:[%s3] sm:$0xff]
    %v298 = vld [vmem:[%s3 + $0x8] sm:$0xff]
    %v299 = vld [vmem:[%s3 + $0x10] sm:$0xff]
    %v300 = vld [vmem:[%s3 + $0x18] sm:$0xff]
    %v301 = vld [vmem:[%s3 + $0x20] sm:$0xff]
    %v302 = vld [vmem:[%s3 + $0x28] sm:$0xff]
    %v303 = vld [vmem:[%s3 + $0x30] sm:$0xff]
    %v304 = vld [vmem:[%s3 + $0x38] sm:$0xff]
    %v305 = vld [vmem:[%s3 + $0x40] sm:$0xff]
    %v306 = vld [vmem:[%s3 + $0x48] sm:$0xff]
    %v307 = vld [vmem:[%s3 + $0x50] sm:$0xff]
    %v308 = vld [vmem:[%s3 + $0x58] sm:$0xff]
    %v309 = vld [vmem:[%s3 + $0x60] sm:$0xff]
    %v310 = vld [vmem:[%s3 + $0x68] sm:$0xff]
    %v311 = vld [vmem:[%s3 + $0x70] sm:$0xff]
    %v312 = vld [vmem:[%s3 + $0x78] sm:$0xff]
    %v313 = vld [vmem:[%s3 + $0x80] sm:$0xff]
    %v314 = vld [vmem:[%s3 + $0x88] sm:$0xff]
    %v315 = vld [vmem:[%s3 + $0x90] sm:$0xff]
    %v316 = vld [vmem:[%s3 + $0x98] sm:$0xff]
    %v317 = vld [vmem:[%s3 + $0xa0] sm:$0xff]
    %v318 = vld [vmem:[%s3 + $0xa8] sm:$0xff]
    %v319 = vld [vmem:[%s3 + $0xb0] sm:$0xff]
    %v320 = vld [vmem:[%s3 + $0xb8] sm:$0xff]
    %v321 = vld [vmem:[%s3 + $0xc0] sm:$0xff]
    %v322 = vld [vmem:[%s3 + $0xc8] sm:$0xff]
    %v323 = vld [vmem:[%s3 + $0xd0] sm:$0xff]
    %v324 = vld [vmem:[%s3 + $0xd8] sm:$0xff]
    %v325 = vld [vmem:[%s3 + $0xe0] sm:$0xff]
    %v326 = vld [vmem:[%s3 + $0xe8] sm:$0xff]
    %v327 = vld [vmem:[%s3 + $0xf0] sm:$0xff]
    %v328 = vld [vmem:[%s3 + $0xf8] sm:$0xff]
    %v329 = vld [vmem:[%s3 + $0x100] sm:$0xff]
    %v330 = vld [vmem:[%s3 + $0x108] sm:$0xff]
    %v331 = vld [vmem:[%s3 + $0x110] sm:$0xff]
    %v332 = vld [vmem:[%s3 + $0x118] sm:$0xff]
    %v333 = vld [vmem:[%s3 + $0x120] sm:$0xff]
    %v334 = vld [vmem:[%s3 + $0x128] sm:$0xff]
    %v335 = vld [vmem:[%s3 + $0x130] sm:$0xff]
    %v336 = vld [vmem:[%s3 + $0x138] sm:$0xff]
    %v337 = vld [vmem:[%s3 + $0x140] sm:$0xff]
    %v338 = vld [vmem:[%s3 + $0x148] sm:$0xff]
    %v339 = vld [vmem:[%s3 + $0x150] sm:$0xff]
    %v340 = vld [vmem:[%s3 + $0x158] sm:$0xff]
    %v341 = vld [vmem:[%s3 + $0x160] sm:$0xff]
    %v342 = vld [vmem:[%s3 + $0x168] sm:$0xff]
    %v343 = vld [vmem:[%s3 + $0x170] sm:$0xff]
    %v344 = vld [vmem:[%s3 + $0x178] sm:$0xff]
    %v345 = vld [vmem:[%s3 + $0x180] sm:$0xff]
    %v346 = vld [vmem:[%s3 + $0x188] sm:$0xff]
    %v347 = vld [vmem:[%s3 + $0x190] sm:$0xff]
    %v348 = vld [vmem:[%s3 + $0x198] sm:$0xff]
    %v349 = vld [vmem:[%s3 + $0x1a0] sm:$0xff]
    %v350 = vld [vmem:[%s3 + $0x1a8] sm:$0xff]
    %v351 = vld [vmem:[%s3 + $0x1b0] sm:$0xff]
    %v352 = vld [vmem:[%s3 + $0x1b8] sm:$0xff]
    %v353 = vld [vmem:[%s3 + $0x1c0] sm:$0xff]
    %v354 = vld [vmem:[%s3 + $0x1c8] sm:$0xff]
    %v355 = vld [vmem:[%s3 + $0x1d0] sm:$0xff]
    %v356 = vld [vmem:[%s3 + $0x1d8] sm:$0xff]
    %v357 = vld [vmem:[%s3 + $0x1e0] sm:$0xff]
    %v358 = vld [vmem:[%s3 + $0x1e8] sm:$0xff]
    %v359 = vld [vmem:[%s3 + $0x1f0] sm:$0xff]
    %v360 = vld [vmem:[%s3 + $0x1f8] sm:$0xff]
    %v361 = vld [vmem:[%s3 + $0x200] sm:$0xff]
    %v362 = vld [vmem:[%s3 + $0x208] sm:$0xff]
    %v363 = vld [vmem:[%s3 + $0x210] sm:$0xff]
    %v364 = vld [vmem:[%s3 + $0x218] sm:$0xff]
    %v365 = vld [vmem:[%s3 + $0x220] sm:$0xff]
    %v366 = vld [vmem:[%s3 + $0x228] sm:$0xff]
    %v367 = vld [vmem:[%s3 + $0x230] sm:$0xff]
    %v368 = vld [vmem:[%s3 + $0x238] sm:$0xff]
    %v369 = vld [vmem:[%s3 + $0x240] sm:$0xff]
    %v370 = vld [vmem:[%s3 + $0x248] sm:$0xff]
    %v371 = vld [vmem:[%s3 + $0x250] sm:$0xff]
    %v372 = vld [vmem:[%s3 + $0x258] sm:$0xff]
    %v373 = vld [vmem:[%s3 + $0x260] sm:$0xff]
    %v374 = vld [vmem:[%s3 + $0x268] sm:$0xff]
    %v375 = vld [vmem:[%s3 + $0x270] sm:$0xff]
    %v376 = vld [vmem:[%s3 + $0x278] sm:$0xff]
    %v377 = vld [vmem:[%s3 + $0x280] sm:$0xff]
    %v378 = vld [vmem:[%s3 + $0x288] sm:$0xff]
    %v379 = vld [vmem:[%s3 + $0x290] sm:$0xff]
    %v380 = vld [vmem:[%s3 + $0x298] sm:$0xff]
    %s381 = scalar_lea.vmem %s3, 672
    %v382 = vld [vmem:[%s381] ss:$8 sm:$0xf]
    %v383 = vld [vmem:[%s381] ss:$8 sm:$0xf0]
    %v384 = vor.u32 %v382, %v383
    %s385 = scalar_lea.vmem %s3, 736
    %v386 = vld [vmem:[%s385] ss:$8 sm:$0xf]
    %v387 = vld [vmem:[%s4] sm:$0xff]
    %v388 = vld [vmem:[%s4 + $0x8] sm:$0xff]
    %v389 = vld [vmem:[%s4 + $0x10] sm:$0xff]
    %v390 = vld [vmem:[%s4 + $0x18] sm:$0xff]
    %v391 = vld [vmem:[%s4 + $0x20] sm:$0xff]
    %v392 = vld [vmem:[%s4 + $0x28] sm:$0xff]
    %v393 = vld [vmem:[%s4 + $0x30] sm:$0xff]
    %v394 = vld [vmem:[%s4 + $0x38] sm:$0xff]
    %v395 = vld [vmem:[%s4 + $0x40] sm:$0xff]
    %v396 = vld [vmem:[%s4 + $0x48] sm:$0xff]
    %v397 = vld [vmem:[%s4 + $0x50] sm:$0xff]
    %v398 = vld [vmem:[%s4 + $0x58] sm:$0xff]
    %v399 = vld [vmem:[%s4 + $0x60] sm:$0xff]
    %v400 = vld [vmem:[%s4 + $0x68] sm:$0xff]
    %v401 = vld [vmem:[%s4 + $0x70] sm:$0xff]
    %v402 = vld [vmem:[%s4 + $0x78] sm:$0xff]
    %v403 = vld [vmem:[%s4 + $0x80] sm:$0xff]
    %v404 = vld [vmem:[%s4 + $0x88] sm:$0xff]
    %v405 = vld [vmem:[%s4 + $0x90] sm:$0xff]
    %v406 = vld [vmem:[%s4 + $0x98] sm:$0xff]
    %v407 = vld [vmem:[%s4 + $0xa0] sm:$0xff]
    %v408 = vld [vmem:[%s4 + $0xa8] sm:$0xff]
    %v409 = vld [vmem:[%s4 + $0xb0] sm:$0xff]
    %v410 = vld [vmem:[%s4 + $0xb8] sm:$0xff]
    %v411 = vld [vmem:[%s4 + $0xc0] sm:$0xff]
    %v412 = vld [vmem:[%s4 + $0xc8] sm:$0xff]
    %v413 = vld [vmem:[%s4 + $0xd0] sm:$0xff]
    %v414 = vld [vmem:[%s4 + $0xd8] sm:$0xff]
    %v415 = vld [vmem:[%s4 + $0xe0] sm:$0xff]
    %v416 = vld [vmem:[%s4 + $0xe8] sm:$0xff]
    %v417 = vld [vmem:[%s4 + $0xf0] sm:$0xff]
    %v418 = vld [vmem:[%s4 + $0xf8] sm:$0xff]
    %v419 = vld [vmem:[%s4 + $0x100] sm:$0xff]
    %v420 = vld [vmem:[%s4 + $0x108] sm:$0xff]
    %v421 = vld [vmem:[%s4 + $0x110] sm:$0xff]
    %v422 = vld [vmem:[%s4 + $0x118] sm:$0xff]
    %v423 = vld [vmem:[%s4 + $0x120] sm:$0xff]
    %v424 = vld [vmem:[%s4 + $0x128] sm:$0xff]
    %v425 = vld [vmem:[%s4 + $0x130] sm:$0xff]
    %v426 = vld [vmem:[%s4 + $0x138] sm:$0xff]
    %v427 = vld [vmem:[%s4 + $0x140] sm:$0xff]
    %v428 = vld [vmem:[%s4 + $0x148] sm:$0xff]
    %v429 = vld [vmem:[%s4 + $0x150] sm:$0xff]
    %v430 = vld [vmem:[%s4 + $0x158] sm:$0xff]
    %v431 = vld [vmem:[%s4 + $0x160] sm:$0xff]
    %v432 = vld [vmem:[%s4 + $0x168] sm:$0xff]
    %v433 = vld [vmem:[%s4 + $0x170] sm:$0xff]
    %v434 = vld [vmem:[%s4 + $0x178] sm:$0xff]
    %v435 = vld [vmem:[%s4 + $0x180] sm:$0xff]
    %v436 = vld [vmem:[%s4 + $0x188] sm:$0xff]
    %v437 = vld [vmem:[%s5] sm:$0xff]
    %v438 = vld [vmem:[%s5 + $0x8] sm:$0xff]
    %v439 = vld [vmem:[%s6] sm:$0xff]
    %v440 = vld [vmem:[%s6 + $0x8] sm:$0xff]
    %v441 = vld [vmem:[%s6 + $0x10] sm:$0xff]
    %v442 = vld [vmem:[%s6 + $0x18] sm:$0xff]
    %v443 = vld [vmem:[%s6 + $0x20] sm:$0xff]
    %v444 = vld [vmem:[%s6 + $0x28] sm:$0xff]
    %v445 = vld [vmem:[%s6 + $0x30] sm:$0x1]
    %vm446 = vcmask 392192
    %v447 = vsel %vm446, %v36, 0.0
    %448 = vadd.xlane.f32.xlu0 %v447
    %v449 = vpop.xlane.xlu0 %448
    %v450 = vsel %vm446, %v37, 0.0
    %451 = vadd.xlane.f32.xlu0 %v450
    %v452 = vpop.xlane.xlu0 %451
    %v453 = vrcp.pop 48.0
    %v454 = vmul.f32 48.0, %v453
    %v455 = vsub.f32 1.0, %v454
    %v456 = vmul.f32 %v453, %v455
    %v457 = vadd.f32 %v453, %v456
    %vm458 = vweird.f32 %v453
    %v459 = vsel %vm458, %v453, %v457
    %v460 = vmul.f32 %v449, %v459
    %v461 = vmul.f32 %v452, %v459
    %v462 = vmul.f32 %v36, %v36
    %v463 = vmul.f32 %v37, %v37
    %v464 = vsel %vm446, %v462, 0.0
    %465 = vadd.xlane.f32.xlu0 %v464
    %v466 = vpop.xlane.xlu0 %465
    %v467 = vsel %vm446, %v463, 0.0
    %468 = vadd.xlane.f32.xlu0 %v467
    %v469 = vpop.xlane.xlu0 %468
    %v470 = vmul.f32 %v466, %v459
    %v471 = vmul.f32 %v469, %v459
    %v472 = vmul.f32 %v460, %v460
    %v473 = vmul.f32 %v461, %v461
    %v474 = vsub.f32 %v470, %v472
    %v475 = vsub.f32 %v471, %v473
    %v476 = vsub.f32 %v36, %v460
    %v477 = vsub.f32 %v37, %v461
    %v478 = vadd.f32 %v474, 1e-05
    %v479 = vadd.f32 %v475, 1e-05
    %v480 = vrsqrt.pop %v478
    %v481 = vmul.f32 %v480, %v478
    %v482 = vmul.f32 %v481, %v480
    %v483 = vmul.f32 0.5, %v482
    %v484 = vsub.f32 1.5, %v483
    %v485 = vmul.f32 %v480, %v484
    %vm486 = vweird.f32 %v478
    %vm487 = vweird.f32 %v480
    %vm488 = vmor %vm486, %vm487
    %v489 = vsel %vm488, %v480, %v485
    %v490 = vrsqrt.pop %v479
    %v491 = vmul.f32 %v490, %v479
    %v492 = vmul.f32 %v491, %v490
    %v493 = vmul.f32 0.5, %v492
    %v494 = vsub.f32 1.5, %v493
    %v495 = vmul.f32 %v490, %v494
    %vm496 = vweird.f32 %v479
    %vm497 = vweird.f32 %v490
    %vm498 = vmor %vm496, %vm497
    %v499 = vsel %vm498, %v490, %v495
    %v500 = vmul.f32 %v476, %v489
    %v501 = vmul.f32 %v477, %v499
    %v502 = vperm.slane %v38, 0
    %v503 = vmul.f32 %v500, %v502
    %v504 = vmul.f32 %v501, %v502
    %v505 = vperm.slane %v39, 0
    %v506 = vadd.f32 %v503, %v505
    %v507 = vadd.f32 %v504, %v505
    %v509 = vperm.slane %v296, 0
    %v510 = vperm.slane %v296, 1
    %v511 = vperm.slane %v296, 2
    %v516 = vsel %vm446, %v506, 0
    %v519 = vsel %vm446, %v507, 0
    %521 = vmatpush.msra.mxu0 0.0
    %522 = vmatpush.msra.mxu0 0.0
    %523 = vmatpush.msra.mxu0 0.0
    %524 = vmatpush.msra.mxu0 0.0
    %525 = vmatpush.msra.mxu0 0.0
    %526 = vmatpush.msra.mxu0 0.0
    %527 = vmatpush.msra.mxu0 0.0
    %528 = vmatpush.msra.mxu0 0.0
    %529 = vmatpush.msra.mxu0 0.0
    %530 = vmatpush.msra.mxu0 0.0
    %531 = vmatpush.msra.mxu0 %v292
    %532 = vmatpush.msra.mxu0 %v289
    %533 = vmatpush.msra.mxu0 %v286
    %534 = vmatpush.msra.mxu0 %v283
    %535 = vmatpush.msra.mxu0 %v280
    %536 = vmatpush.msra.mxu0 %v277
    %537 = vmatmul.f32.gmra.mxu0 %v516
    %v538 = vpop.f32.mrf.mxu0
    %v539 = vadd.f32 %v509, %v538
    %540 = vmatmul.f32.gmra.mxu0 %v519
    %v541 = vpop.f32.mrf.mxu0
    %v542 = vadd.f32 %v509, %v541
    %543 = vdwg.mxu0
    %544 = vmatpush.msra.mxu0 0.0
    %545 = vmatpush.msra.mxu0 0.0
    %546 = vmatpush.msra.mxu0 0.0
    %547 = vmatpush.msra.mxu0 0.0
    %548 = vmatpush.msra.mxu0 0.0
    %549 = vmatpush.msra.mxu0 0.0
    %550 = vmatpush.msra.mxu0 0.0
    %551 = vmatpush.msra.mxu0 0.0
    %552 = vmatpush.msra.mxu0 0.0
    %553 = vmatpush.msra.mxu0 0.0
    %554 = vmatpush.msra.mxu0 %v293
    %555 = vmatpush.msra.mxu0 %v290
    %556 = vmatpush.msra.mxu0 %v287
    %557 = vmatpush.msra.mxu0 %v284
    %558 = vmatpush.msra.mxu0 %v281
    %559 = vmatpush.msra.mxu0 %v278
    %560 = vmatmul.f32.gmra.mxu0 %v516
    %v561 = vpop.f32.mrf.mxu0
    %v562 = vadd.f32 %v510, %v561
    %563 = vmatmul.f32.gmra.mxu0 %v519
    %v564 = vpop.f32.mrf.mxu0
    %v565 = vadd.f32 %v510, %v564
    %566 = vdwg.mxu0
    %567 = vmatpush.msra.mxu0 0.0
    %568 = vmatpush.msra.mxu0 0.0
    %569 = vmatpush.msra.mxu0 0.0
    %570 = vmatpush.msra.mxu0 0.0
    %571 = vmatpush.msra.mxu0 0.0
    %572 = vmatpush.msra.mxu0 0.0
    %573 = vmatpush.msra.mxu0 0.0
    %574 = vmatpush.msra.mxu0 0.0
    %575 = vmatpush.msra.mxu0 0.0
    %576 = vmatpush.msra.mxu0 0.0
    %577 = vmatpush.msra.mxu0 %v294
    %578 = vmatpush.msra.mxu0 %v291
    %579 = vmatpush.msra.mxu0 %v288
    %580 = vmatpush.msra.mxu0 %v285
    %581 = vmatpush.msra.mxu0 %v282
    %582 = vmatpush.msra.mxu0 %v279
    %583 = vmatmul.f32.gmra.mxu0 %v516
    %v584 = vpop.f32.mrf.mxu0
    %v585 = vadd.f32 %v511, %v584
    %586 = vmatmul.f32.gmra.mxu0 %v519
    %v587 = vpop.f32.mrf.mxu0
    %v588 = vadd.f32 %v511, %v587
    %589 = vdwg.mxu0
    %vm590 = vcmask 130048
    %v592 = vsel %vm590, %v387, 0
    %v595 = vsel %vm590, %v388, 0
    %v598 = vsel %vm590, %v389, 0
    %v601 = vsel %vm590, %v390, 0
    %v604 = vsel %vm590, %v391, 0
    %v607 = vsel %vm590, %v392, 0
    %v610 = vsel %vm590, %v393, 0
    %v613 = vsel %vm590, %v394, 0
    %v616 = vsel %vm590, %v395, 0
    %v619 = vsel %vm590, %v396, 0
    %v622 = vsel %vm590, %v397, 0
    %v625 = vsel %vm590, %v398, 0
    %v628 = vsel %vm590, %v399, 0
    %v631 = vsel %vm590, %v400, 0
    %v634 = vsel %vm590, %v401, 0
    %v637 = vsel %vm590, %v402, 0
    %v640 = vsel %vm590, %v403, 0
    %v643 = vsel %vm590, %v404, 0
    %645 = vmatpush.msra.mxu0 0.0
    %646 = vmatpush.msra.mxu0 0.0
    %647 = vmatpush.msra.mxu0 0.0
    %648 = vmatpush.msra.mxu0 0.0
    %649 = vmatpush.msra.mxu0 0.0
    %650 = vmatpush.msra.mxu0 0.0
    %651 = vmatpush.msra.mxu0 0.0
    %652 = vmatpush.msra.mxu0 0.0
    %653 = vmatpush.msra.mxu0 0.0
    %654 = vmatpush.msra.mxu0 0.0
    %655 = vmatpush.msra.mxu0 0.0
    %656 = vmatpush.msra.mxu0 0.0
    %657 = vmatpush.msra.mxu0 0.0
    %658 = vmatpush.msra.mxu0 0.0
    %659 = vmatpush.msra.mxu0 %v542
    %660 = vmatpush.msra.mxu0 %v539
    %661 = vmatmul.f32.gmra.mxu0 %v592
    %v662 = vpop.f32.mrf.mxu0
    %v663 = vadd.f32 0.0, %v662
    %664 = vmatmul.f32.gmra.mxu0 %v595
    %v665 = vpop.f32.mrf.mxu0
    %v666 = vadd.f32 0.0, %v665
    %667 = vmatmul.f32.gmra.mxu0 %v598
    %v668 = vpop.f32.mrf.mxu0
    %v669 = vadd.f32 0.0, %v668
    %670 = vmatmul.f32.gmra.mxu0 %v601
    %v671 = vpop.f32.mrf.mxu0
    %v672 = vadd.f32 0.0, %v671
    %673 = vmatmul.f32.gmra.mxu0 %v604
    %v674 = vpop.f32.mrf.mxu0
    %v675 = vadd.f32 0.0, %v674
    %676 = vmatmul.f32.gmra.mxu0 %v607
    %v677 = vpop.f32.mrf.mxu0
    %v678 = vadd.f32 0.0, %v677
    %679 = vmatmul.f32.gmra.mxu0 %v610
    %v680 = vpop.f32.mrf.mxu0
    %v681 = vadd.f32 0.0, %v680
    %682 = vmatmul.f32.gmra.mxu0 %v613
    %v683 = vpop.f32.mrf.mxu0
    %v684 = vadd.f32 0.0, %v683
    %685 = vmatmul.f32.gmra.mxu0 %v616
    %v686 = vpop.f32.mrf.mxu0
    %v687 = vadd.f32 0.0, %v686
    %688 = vmatmul.f32.gmra.mxu0 %v619
    %v689 = vpop.f32.mrf.mxu0
    %v690 = vadd.f32 0.0, %v689
    %691 = vmatmul.f32.gmra.mxu0 %v622
    %v692 = vpop.f32.mrf.mxu0
    %v693 = vadd.f32 0.0, %v692
    %694 = vmatmul.f32.gmra.mxu0 %v625
    %v695 = vpop.f32.mrf.mxu0
    %v696 = vadd.f32 0.0, %v695
    %697 = vmatmul.f32.gmra.mxu0 %v628
    %v698 = vpop.f32.mrf.mxu0
    %v699 = vadd.f32 0.0, %v698
    %700 = vmatmul.f32.gmra.mxu0 %v631
    %v701 = vpop.f32.mrf.mxu0
    %v702 = vadd.f32 0.0, %v701
    %703 = vmatmul.f32.gmra.mxu0 %v634
    %v704 = vpop.f32.mrf.mxu0
    %v705 = vadd.f32 0.0, %v704
    %706 = vmatmul.f32.gmra.mxu0 %v637
    %v707 = vpop.f32.mrf.mxu0
    %v708 = vadd.f32 0.0, %v707
    %709 = vmatmul.f32.gmra.mxu0 %v640
    %v710 = vpop.f32.mrf.mxu0
    %v711 = vadd.f32 0.0, %v710
    %712 = vmatmul.f32.gmra.mxu0 %v643
    %v713 = vpop.f32.mrf.mxu0
    %v714 = vadd.f32 0.0, %v713
    %715 = vdwg.mxu0
    %v716 = vmul.f32 %v663, %v56
    %v717 = vmul.f32 %v666, %v57
    %v718 = vmul.f32 %v669, %v58
    %v719 = vmul.f32 %v672, %v59
    %v720 = vmul.f32 %v675, %v60
    %v721 = vmul.f32 %v678, %v61
    %v722 = vmul.f32 %v681, %v62
    %v723 = vmul.f32 %v684, %v63
    %v724 = vmul.f32 %v687, %v64
    %v725 = vmul.f32 %v690, %v65
    %v726 = vmul.f32 %v693, %v66
    %v727 = vmul.f32 %v696, %v67
    %v728 = vmul.f32 %v699, %v68
    %v729 = vmul.f32 %v702, %v69
    %v730 = vmul.f32 %v705, %v70
    %v731 = vmul.f32 %v708, %v71
    %v732 = vmul.f32 %v711, %v72
    %v733 = vmul.f32 %v714, %v73
    %v735 = vsel %vm446, %v716, 0
    %v738 = vsel %vm446, %v717, 0
    %v741 = vsel %vm446, %v718, 0
    %v744 = vsel %vm446, %v719, 0
    %v747 = vsel %vm446, %v720, 0
    %v750 = vsel %vm446, %v721, 0
    %v753 = vsel %vm446, %v722, 0
    %v756 = vsel %vm446, %v723, 0
    %v759 = vsel %vm446, %v724, 0
    %v762 = vsel %vm446, %v725, 0
    %v765 = vsel %vm446, %v726, 0
    %v768 = vsel %vm446, %v727, 0
    %v771 = vsel %vm446, %v728, 0
    %v774 = vsel %vm446, %v729, 0
    %v777 = vsel %vm446, %v730, 0
    %v780 = vsel %vm446, %v731, 0
    %v783 = vsel %vm446, %v732, 0
    %v786 = vsel %vm446, %v733, 0
    %v789 = vsel %vm446, %v562, 0
    %v792 = vsel %vm446, %v565, 0
    %794 = vmatpush.xpose.msra.mxu0 0.0
    %795 = vmatpush.xpose.msra.mxu0 0.0
    %796 = vmatpush.xpose.msra.mxu0 0.0
    %797 = vmatpush.xpose.msra.mxu0 0.0
    %798 = vmatpush.xpose.msra.mxu0 0.0
    %799 = vmatpush.xpose.msra.mxu0 0.0
    %800 = vmatpush.xpose.msra.mxu0 0.0
    %801 = vmatpush.xpose.msra.mxu0 0.0
    %802 = vmatpush.xpose.msra.mxu0 0.0
    %803 = vmatpush.xpose.msra.mxu0 0.0
    %804 = vmatpush.xpose.msra.mxu0 0.0
    %805 = vmatpush.xpose.msra.mxu0 0.0
    %806 = vmatpush.xpose.msra.mxu0 0.0
    %807 = vmatpush.xpose.msra.mxu0 0.0
    %808 = vmatpush.xpose.msra.mxu0 %v792
    %809 = vmatpush.xpose.msra.mxu0 %v789
    %810 = vmatmul.f32.gmra.mxu0 %v735
    %v811 = vpop.f32.mrf.mxu0
    %v812 = vadd.f32 0.0, %v811
    %813 = vmatmul.f32.gmra.mxu0 %v738
    %v814 = vpop.f32.mrf.mxu0
    %v815 = vadd.f32 0.0, %v814
    %816 = vmatmul.f32.gmra.mxu0 %v741
    %v817 = vpop.f32.mrf.mxu0
    %v818 = vadd.f32 0.0, %v817
    %819 = vmatmul.f32.gmra.mxu0 %v744
    %v820 = vpop.f32.mrf.mxu0
    %v821 = vadd.f32 0.0, %v820
    %822 = vmatmul.f32.gmra.mxu0 %v747
    %v823 = vpop.f32.mrf.mxu0
    %v824 = vadd.f32 0.0, %v823
    %825 = vmatmul.f32.gmra.mxu0 %v750
    %v826 = vpop.f32.mrf.mxu0
    %v827 = vadd.f32 0.0, %v826
    %828 = vmatmul.f32.gmra.mxu0 %v753
    %v829 = vpop.f32.mrf.mxu0
    %v830 = vadd.f32 0.0, %v829
    %831 = vmatmul.f32.gmra.mxu0 %v756
    %v832 = vpop.f32.mrf.mxu0
    %v833 = vadd.f32 0.0, %v832
    %834 = vmatmul.f32.gmra.mxu0 %v759
    %v835 = vpop.f32.mrf.mxu0
    %v836 = vadd.f32 0.0, %v835
    %837 = vmatmul.f32.gmra.mxu0 %v762
    %v838 = vpop.f32.mrf.mxu0
    %v839 = vadd.f32 0.0, %v838
    %840 = vmatmul.f32.gmra.mxu0 %v765
    %v841 = vpop.f32.mrf.mxu0
    %v842 = vadd.f32 0.0, %v841
    %843 = vmatmul.f32.gmra.mxu0 %v768
    %v844 = vpop.f32.mrf.mxu0
    %v845 = vadd.f32 0.0, %v844
    %846 = vmatmul.f32.gmra.mxu0 %v771
    %v847 = vpop.f32.mrf.mxu0
    %v848 = vadd.f32 0.0, %v847
    %849 = vmatmul.f32.gmra.mxu0 %v774
    %v850 = vpop.f32.mrf.mxu0
    %v851 = vadd.f32 0.0, %v850
    %852 = vmatmul.f32.gmra.mxu0 %v777
    %v853 = vpop.f32.mrf.mxu0
    %v854 = vadd.f32 0.0, %v853
    %855 = vmatmul.f32.gmra.mxu0 %v780
    %v856 = vpop.f32.mrf.mxu0
    %v857 = vadd.f32 0.0, %v856
    %858 = vmatmul.f32.gmra.mxu0 %v783
    %v859 = vpop.f32.mrf.mxu0
    %v860 = vadd.f32 0.0, %v859
    %861 = vmatmul.f32.gmra.mxu0 %v786
    %v862 = vpop.f32.mrf.mxu0
    %v863 = vadd.f32 0.0, %v862
    %864 = vdwg.mxu0
    %v865 = vmul.f32 %v812, 0.4082483
    %v866 = vmul.f32 %v815, 0.4082483
    %v867 = vmul.f32 %v818, 0.4082483
    %v868 = vmul.f32 %v821, 0.4082483
    %v869 = vmul.f32 %v824, 0.4082483
    %v870 = vmul.f32 %v827, 0.4082483
    %v871 = vmul.f32 %v830, 0.4082483
    %v872 = vmul.f32 %v833, 0.4082483
    %v873 = vmul.f32 %v836, 0.4082483
    %v874 = vmul.f32 %v839, 0.4082483
    %v875 = vmul.f32 %v842, 0.4082483
    %v876 = vmul.f32 %v845, 0.4082483
    %v877 = vmul.f32 %v848, 0.4082483
    %v878 = vmul.f32 %v851, 0.4082483
    %v879 = vmul.f32 %v854, 0.4082483
    %v880 = vmul.f32 %v857, 0.4082483
    %v881 = vmul.f32 %v860, 0.4082483
    %v882 = vmul.f32 %v863, 0.4082483
    %883 = vmatpush.msra.mxu0 0.0
    %884 = vmatpush.msra.mxu0 0.0
    %885 = vmatpush.msra.mxu0 0.0
    %886 = vmatpush.msra.mxu0 0.0
    %887 = vmatpush.msra.mxu0 0.0
    %888 = vmatpush.msra.mxu0 0.0
    %889 = vmatpush.msra.mxu0 0.0
    %890 = vmatpush.msra.mxu0 0.0
    %891 = vmatpush.msra.mxu0 0.0
    %892 = vmatpush.msra.mxu0 0.0
    %893 = vmatpush.msra.mxu0 0.0
    %894 = vmatpush.msra.mxu0 0.0
    %895 = vmatpush.msra.mxu0 0.0
    %896 = vmatpush.msra.mxu0 0.0
    %897 = vmatpush.msra.mxu0 %v882
    %898 = vmatpush.msra.mxu0 %v881
    %899 = vmatmul.f32.gmra.mxu0 %v592
    %v900 = vpop.f32.mrf.mxu0
    %v901 = vadd.f32 0.0, %v900
    %902 = vmatmul.f32.gmra.mxu0 %v595
    %v903 = vpop.f32.mrf.mxu0
    %v904 = vadd.f32 0.0, %v903
    %905 = vmatmul.f32.gmra.mxu0 %v598
    %v906 = vpop.f32.mrf.mxu0
    %v907 = vadd.f32 0.0, %v906
    %908 = vmatmul.f32.gmra.mxu0 %v601
    %v909 = vpop.f32.mrf.mxu0
    %v910 = vadd.f32 0.0, %v909
    %911 = vmatmul.f32.gmra.mxu0 %v604
    %v912 = vpop.f32.mrf.mxu0
    %v913 = vadd.f32 0.0, %v912
    %914 = vmatmul.f32.gmra.mxu0 %v607
    %v915 = vpop.f32.mrf.mxu0
    %v916 = vadd.f32 0.0, %v915
    %917 = vmatmul.f32.gmra.mxu0 %v610
    %v918 = vpop.f32.mrf.mxu0
    %v919 = vadd.f32 0.0, %v918
    %920 = vmatmul.f32.gmra.mxu0 %v613
    %v921 = vpop.f32.mrf.mxu0
    %v922 = vadd.f32 0.0, %v921
    %923 = vmatmul.f32.gmra.mxu0 %v616
    %v924 = vpop.f32.mrf.mxu0
    %v925 = vadd.f32 0.0, %v924
    %926 = vmatmul.f32.gmra.mxu0 %v619
    %v927 = vpop.f32.mrf.mxu0
    %v928 = vadd.f32 0.0, %v927
    %929 = vmatmul.f32.gmra.mxu0 %v622
    %v930 = vpop.f32.mrf.mxu0
    %v931 = vadd.f32 0.0, %v930
    %932 = vmatmul.f32.gmra.mxu0 %v625
    %v933 = vpop.f32.mrf.mxu0
    %v934 = vadd.f32 0.0, %v933
    %935 = vmatmul.f32.gmra.mxu0 %v628
    %v936 = vpop.f32.mrf.mxu0
    %v937 = vadd.f32 0.0, %v936
    %938 = vmatmul.f32.gmra.mxu0 %v631
    %v939 = vpop.f32.mrf.mxu0
    %v940 = vadd.f32 0.0, %v939
    %941 = vmatmul.f32.gmra.mxu0 %v634
    %v942 = vpop.f32.mrf.mxu0
    %v943 = vadd.f32 0.0, %v942
    %944 = vmatmul.f32.gmra.mxu0 %v637
    %v945 = vpop.f32.mrf.mxu0
    %v946 = vadd.f32 0.0, %v945
    %947 = vdwg.mxu0
    %v948 = vmul.f32 %v405, %v901
    %v949 = vmul.f32 %v406, %v904
    %v950 = vmul.f32 %v407, %v907
    %v951 = vmul.f32 %v408, %v910
    %v952 = vmul.f32 %v409, %v913
    %v953 = vmul.f32 %v410, %v916
    %v954 = vmul.f32 %v411, %v919
    %v955 = vmul.f32 %v412, %v922
    %v956 = vmul.f32 %v413, %v925
    %v957 = vmul.f32 %v414, %v928
    %v958 = vmul.f32 %v415, %v931
    %v959 = vmul.f32 %v416, %v934
    %v960 = vmul.f32 %v417, %v937
    %v961 = vmul.f32 %v418, %v940
    %v962 = vmul.f32 %v419, %v943
    %v963 = vmul.f32 %v420, %v946
    %v964 = vadd.f32 %v865, %v948
    %v965 = vadd.f32 %v866, %v949
    %v966 = vadd.f32 %v867, %v950
    %v967 = vadd.f32 %v868, %v951
    %v968 = vadd.f32 %v869, %v952
    %v969 = vadd.f32 %v870, %v953
    %v970 = vadd.f32 %v871, %v954
    %v971 = vadd.f32 %v872, %v955
    %v972 = vadd.f32 %v873, %v956
    %v973 = vadd.f32 %v874, %v957
    %v974 = vadd.f32 %v875, %v958
    %v975 = vadd.f32 %v876, %v959
    %v976 = vadd.f32 %v877, %v960
    %v977 = vadd.f32 %v878, %v961
    %v978 = vadd.f32 %v879, %v962
    %v979 = vadd.f32 %v880, %v963
    %v980 = vtanh.pop %v964
    %v981 = vtanh.pop %v965
    %v982 = vtanh.pop %v966
    %v983 = vtanh.pop %v967
    %v984 = vtanh.pop %v968
    %v985 = vtanh.pop %v969
    %v986 = vtanh.pop %v970
    %v987 = vtanh.pop %v971
    %v988 = vtanh.pop %v972
    %v989 = vtanh.pop %v973
    %v990 = vtanh.pop %v974
    %v991 = vtanh.pop %v975
    %v992 = vtanh.pop %v976
    %v993 = vtanh.pop %v977
    %v994 = vtanh.pop %v978
    %v995 = vtanh.pop %v979
    %v996 = vadd.f32 %v980, %v421
    %v997 = vadd.f32 %v981, %v422
    %v998 = vadd.f32 %v982, %v423
    %v999 = vadd.f32 %v983, %v424
    %v1000 = vadd.f32 %v984, %v425
    %v1001 = vadd.f32 %v985, %v426
    %v1002 = vadd.f32 %v986, %v427
    %v1003 = vadd.f32 %v987, %v428
    %v1004 = vadd.f32 %v988, %v429
    %v1005 = vadd.f32 %v989, %v430
    %v1006 = vadd.f32 %v990, %v431
    %v1007 = vadd.f32 %v991, %v432
    %v1008 = vadd.f32 %v992, %v433
    %v1009 = vadd.f32 %v993, %v434
    %v1010 = vadd.f32 %v994, %v435
    %v1011 = vadd.f32 %v995, %v436
    %v1012 = vsel %vm590, %v996, -inf
    %1013 = vmax.xlane.f32.xlu0 %v1012
    %v1014 = vpop.xlane.xlu0 %1013
    %v1015 = vsel %vm590, %v997, -inf
    %1016 = vmax.xlane.f32.xlu0 %v1015
    %v1017 = vpop.xlane.xlu0 %1016
    %v1018 = vsel %vm590, %v998, -inf
    %1019 = vmax.xlane.f32.xlu0 %v1018
    %v1020 = vpop.xlane.xlu0 %1019
    %v1021 = vsel %vm590, %v999, -inf
    %1022 = vmax.xlane.f32.xlu0 %v1021
    %v1023 = vpop.xlane.xlu0 %1022
    %v1024 = vsel %vm590, %v1000, -inf
    %1025 = vmax.xlane.f32.xlu0 %v1024
    %v1026 = vpop.xlane.xlu0 %1025
    %v1027 = vsel %vm590, %v1001, -inf
    %1028 = vmax.xlane.f32.xlu0 %v1027
    %v1029 = vpop.xlane.xlu0 %1028
    %v1030 = vsel %vm590, %v1002, -inf
    %1031 = vmax.xlane.f32.xlu0 %v1030
    %v1032 = vpop.xlane.xlu0 %1031
    %v1033 = vsel %vm590, %v1003, -inf
    %1034 = vmax.xlane.f32.xlu0 %v1033
    %v1035 = vpop.xlane.xlu0 %1034
    %v1036 = vsel %vm590, %v1004, -inf
    %1037 = vmax.xlane.f32.xlu0 %v1036
    %v1038 = vpop.xlane.xlu0 %1037
    %v1039 = vsel %vm590, %v1005, -inf
    %1040 = vmax.xlane.f32.xlu0 %v1039
    %v1041 = vpop.xlane.xlu0 %1040
    %v1042 = vsel %vm590, %v1006, -inf
    %1043 = vmax.xlane.f32.xlu0 %v1042
    %v1044 = vpop.xlane.xlu0 %1043
    %v1045 = vsel %vm590, %v1007, -inf
    %1046 = vmax.xlane.f32.xlu0 %v1045
    %v1047 = vpop.xlane.xlu0 %1046
    %v1048 = vsel %vm590, %v1008, -inf
    %1049 = vmax.xlane.f32.xlu0 %v1048
    %v1050 = vpop.xlane.xlu0 %1049
    %v1051 = vsel %vm590, %v1009, -inf
    %1052 = vmax.xlane.f32.xlu0 %v1051
    %v1053 = vpop.xlane.xlu0 %1052
    %v1054 = vsel %vm590, %v1010, -inf
    %1055 = vmax.xlane.f32.xlu0 %v1054
    %v1056 = vpop.xlane.xlu0 %1055
    %v1057 = vsel %vm590, %v1011, -inf
    %1058 = vmax.xlane.f32.xlu0 %v1057
    %v1059 = vpop.xlane.xlu0 %1058
    %v1060 = vsub.f32 %v996, %v1014
    %v1061 = vsub.f32 %v997, %v1017
    %v1062 = vsub.f32 %v998, %v1020
    %v1063 = vsub.f32 %v999, %v1023
    %v1064 = vsub.f32 %v1000, %v1026
    %v1065 = vsub.f32 %v1001, %v1029
    %v1066 = vsub.f32 %v1002, %v1032
    %v1067 = vsub.f32 %v1003, %v1035
    %v1068 = vsub.f32 %v1004, %v1038
    %v1069 = vsub.f32 %v1005, %v1041
    %v1070 = vsub.f32 %v1006, %v1044
    %v1071 = vsub.f32 %v1007, %v1047
    %v1072 = vsub.f32 %v1008, %v1050
    %v1073 = vsub.f32 %v1009, %v1053
    %v1074 = vsub.f32 %v1010, %v1056
    %v1075 = vsub.f32 %v1011, %v1059
    %v1076 = vmul.f32 %v1060, 1.442695
    %v1077 = vpow.pop %v1076
    %v1078 = vmul.f32 %v1061, 1.442695
    %v1079 = vpow.pop %v1078
    %v1080 = vmul.f32 %v1062, 1.442695
    %v1081 = vpow.pop %v1080
    %v1082 = vmul.f32 %v1063, 1.442695
    %v1083 = vpow.pop %v1082
    %v1084 = vmul.f32 %v1064, 1.442695
    %v1085 = vpow.pop %v1084
    %v1086 = vmul.f32 %v1065, 1.442695
    %v1087 = vpow.pop %v1086
    %v1088 = vmul.f32 %v1066, 1.442695
    %v1089 = vpow.pop %v1088
    %v1090 = vmul.f32 %v1067, 1.442695
    %v1091 = vpow.pop %v1090
    %v1092 = vmul.f32 %v1068, 1.442695
    %v1093 = vpow.pop %v1092
    %v1094 = vmul.f32 %v1069, 1.442695
    %v1095 = vpow.pop %v1094
    %v1096 = vmul.f32 %v1070, 1.442695
    %v1097 = vpow.pop %v1096
    %v1098 = vmul.f32 %v1071, 1.442695
    %v1099 = vpow.pop %v1098
    %v1100 = vmul.f32 %v1072, 1.442695
    %v1101 = vpow.pop %v1100
    %v1102 = vmul.f32 %v1073, 1.442695
    %v1103 = vpow.pop %v1102
    %v1104 = vmul.f32 %v1074, 1.442695
    %v1105 = vpow.pop %v1104
    %v1106 = vmul.f32 %v1075, 1.442695
    %v1107 = vpow.pop %v1106
    %v1108 = vsel %vm590, %v1077, 0.0
    %1109 = vadd.xlane.f32.xlu0 %v1108
    %v1110 = vpop.xlane.xlu0 %1109
    %v1111 = vsel %vm590, %v1079, 0.0
    %1112 = vadd.xlane.f32.xlu0 %v1111
    %v1113 = vpop.xlane.xlu0 %1112
    %v1114 = vsel %vm590, %v1081, 0.0
    %1115 = vadd.xlane.f32.xlu0 %v1114
    %v1116 = vpop.xlane.xlu0 %1115
    %v1117 = vsel %vm590, %v1083, 0.0
    %1118 = vadd.xlane.f32.xlu0 %v1117
    %v1119 = vpop.xlane.xlu0 %1118
    %v1120 = vsel %vm590, %v1085, 0.0
    %1121 = vadd.xlane.f32.xlu0 %v1120
    %v1122 = vpop.xlane.xlu0 %1121
    %v1123 = vsel %vm590, %v1087, 0.0
    %1124 = vadd.xlane.f32.xlu0 %v1123
    %v1125 = vpop.xlane.xlu0 %1124
    %v1126 = vsel %vm590, %v1089, 0.0
    %1127 = vadd.xlane.f32.xlu0 %v1126
    %v1128 = vpop.xlane.xlu0 %1127
    %v1129 = vsel %vm590, %v1091, 0.0
    %1130 = vadd.xlane.f32.xlu0 %v1129
    %v1131 = vpop.xlane.xlu0 %1130
    %v1132 = vsel %vm590, %v1093, 0.0
    %1133 = vadd.xlane.f32.xlu0 %v1132
    %v1134 = vpop.xlane.xlu0 %1133
    %v1135 = vsel %vm590, %v1095, 0.0
    %1136 = vadd.xlane.f32.xlu0 %v1135
    %v1137 = vpop.xlane.xlu0 %1136
    %v1138 = vsel %vm590, %v1097, 0.0
    %1139 = vadd.xlane.f32.xlu0 %v1138
    %v1140 = vpop.xlane.xlu0 %1139
    %v1141 = vsel %vm590, %v1099, 0.0
    %1142 = vadd.xlane.f32.xlu0 %v1141
    %v1143 = vpop.xlane.xlu0 %1142
    %v1144 = vsel %vm590, %v1101, 0.0
    %1145 = vadd.xlane.f32.xlu0 %v1144
    %v1146 = vpop.xlane.xlu0 %1145
    %v1147 = vsel %vm590, %v1103, 0.0
    %1148 = vadd.xlane.f32.xlu0 %v1147
    %v1149 = vpop.xlane.xlu0 %1148
    %v1150 = vsel %vm590, %v1105, 0.0
    %1151 = vadd.xlane.f32.xlu0 %v1150
    %v1152 = vpop.xlane.xlu0 %1151
    %v1153 = vsel %vm590, %v1107, 0.0
    %1154 = vadd.xlane.f32.xlu0 %v1153
    %v1155 = vpop.xlane.xlu0 %1154
    %v1156 = vrcp.pop %v1110
    %v1157 = vrcp.pop %v1113
    %v1158 = vrcp.pop %v1116
    %v1159 = vrcp.pop %v1119
    %v1160 = vrcp.pop %v1122
    %v1161 = vrcp.pop %v1125
    %v1162 = vrcp.pop %v1128
    %v1163 = vrcp.pop %v1131
    %v1164 = vrcp.pop %v1134
    %v1165 = vrcp.pop %v1137
    %v1166 = vrcp.pop %v1140
    %v1167 = vrcp.pop %v1143
    %v1168 = vrcp.pop %v1146
    %v1169 = vrcp.pop %v1149
    %v1170 = vrcp.pop %v1152
    %v1171 = vrcp.pop %v1155
    %v1172 = vmul.f32 %v1077, %v1156
    %v1173 = vmul.f32 %v1079, %v1157
    %v1174 = vmul.f32 %v1081, %v1158
    %v1175 = vmul.f32 %v1083, %v1159
    %v1176 = vmul.f32 %v1085, %v1160
    %v1177 = vmul.f32 %v1087, %v1161
    %v1178 = vmul.f32 %v1089, %v1162
    %v1179 = vmul.f32 %v1091, %v1163
    %v1180 = vmul.f32 %v1093, %v1164
    %v1181 = vmul.f32 %v1095, %v1165
    %v1182 = vmul.f32 %v1097, %v1166
    %v1183 = vmul.f32 %v1099, %v1167
    %v1184 = vmul.f32 %v1101, %v1168
    %v1185 = vmul.f32 %v1103, %v1169
    %v1186 = vmul.f32 %v1105, %v1170
    %v1187 = vmul.f32 %v1107, %v1171
    %v1189 = vsel %vm590, %v1172, 0
    %v1192 = vsel %vm590, %v1173, 0
    %v1195 = vsel %vm590, %v1174, 0
    %v1198 = vsel %vm590, %v1175, 0
    %v1201 = vsel %vm590, %v1176, 0
    %v1204 = vsel %vm590, %v1177, 0
    %v1207 = vsel %vm590, %v1178, 0
    %v1210 = vsel %vm590, %v1179, 0
    %v1213 = vsel %vm590, %v1180, 0
    %v1216 = vsel %vm590, %v1181, 0
    %v1219 = vsel %vm590, %v1182, 0
    %v1222 = vsel %vm590, %v1183, 0
    %v1225 = vsel %vm590, %v1184, 0
    %v1228 = vsel %vm590, %v1185, 0
    %v1231 = vsel %vm590, %v1186, 0
    %v1234 = vsel %vm590, %v1187, 0
    %1236 = vmatpush.msra.mxu0 0.0
    %1237 = vmatpush.msra.mxu0 0.0
    %1238 = vmatpush.msra.mxu0 0.0
    %1239 = vmatpush.msra.mxu0 0.0
    %1240 = vmatpush.msra.mxu0 0.0
    %1241 = vmatpush.msra.mxu0 0.0
    %1242 = vmatpush.msra.mxu0 0.0
    %1243 = vmatpush.msra.mxu0 0.0
    %1244 = vmatpush.msra.mxu0 0.0
    %1245 = vmatpush.msra.mxu0 0.0
    %1246 = vmatpush.msra.mxu0 0.0
    %1247 = vmatpush.msra.mxu0 0.0
    %1248 = vmatpush.msra.mxu0 0.0
    %1249 = vmatpush.msra.mxu0 0.0
    %1250 = vmatpush.msra.mxu0 %v588
    %1251 = vmatpush.msra.mxu0 %v585
    %1252 = vmatmul.f32.gmra.mxu0 %v1189
    %v1253 = vpop.f32.mrf.mxu0
    %v1254 = vadd.f32 0.0, %v1253
    %1255 = vmatmul.f32.gmra.mxu0 %v1192
    %v1256 = vpop.f32.mrf.mxu0
    %v1257 = vadd.f32 0.0, %v1256
    %1258 = vmatmul.f32.gmra.mxu0 %v1195
    %v1259 = vpop.f32.mrf.mxu0
    %v1260 = vadd.f32 0.0, %v1259
    %1261 = vmatmul.f32.gmra.mxu0 %v1198
    %v1262 = vpop.f32.mrf.mxu0
    %v1263 = vadd.f32 0.0, %v1262
    %1264 = vmatmul.f32.gmra.mxu0 %v1201
    %v1265 = vpop.f32.mrf.mxu0
    %v1266 = vadd.f32 0.0, %v1265
    %1267 = vmatmul.f32.gmra.mxu0 %v1204
    %v1268 = vpop.f32.mrf.mxu0
    %v1269 = vadd.f32 0.0, %v1268
    %1270 = vmatmul.f32.gmra.mxu0 %v1207
    %v1271 = vpop.f32.mrf.mxu0
    %v1272 = vadd.f32 0.0, %v1271
    %1273 = vmatmul.f32.gmra.mxu0 %v1210
    %v1274 = vpop.f32.mrf.mxu0
    %v1275 = vadd.f32 0.0, %v1274
    %1276 = vmatmul.f32.gmra.mxu0 %v1213
    %v1277 = vpop.f32.mrf.mxu0
    %v1278 = vadd.f32 0.0, %v1277
    %1279 = vmatmul.f32.gmra.mxu0 %v1216
    %v1280 = vpop.f32.mrf.mxu0
    %v1281 = vadd.f32 0.0, %v1280
    %1282 = vmatmul.f32.gmra.mxu0 %v1219
    %v1283 = vpop.f32.mrf.mxu0
    %v1284 = vadd.f32 0.0, %v1283
    %1285 = vmatmul.f32.gmra.mxu0 %v1222
    %v1286 = vpop.f32.mrf.mxu0
    %v1287 = vadd.f32 0.0, %v1286
    %1288 = vmatmul.f32.gmra.mxu0 %v1225
    %v1289 = vpop.f32.mrf.mxu0
    %v1290 = vadd.f32 0.0, %v1289
    %1291 = vmatmul.f32.gmra.mxu0 %v1228
    %v1292 = vpop.f32.mrf.mxu0
    %v1293 = vadd.f32 0.0, %v1292
    %1294 = vmatmul.f32.gmra.mxu0 %v1231
    %v1295 = vpop.f32.mrf.mxu0
    %v1296 = vadd.f32 0.0, %v1295
    %1297 = vmatmul.f32.gmra.mxu0 %v1234
    %v1298 = vpop.f32.mrf.mxu0
    %v1299 = vadd.f32 0.0, %v1298
    %1300 = vdwg.mxu0
    %v1301 = vmul.f32 %v1254, %v40
    %v1302 = vmul.f32 %v1257, %v41
    %v1303 = vmul.f32 %v1260, %v42
    %v1304 = vmul.f32 %v1263, %v43
    %v1305 = vmul.f32 %v1266, %v44
    %v1306 = vmul.f32 %v1269, %v45
    %v1307 = vmul.f32 %v1272, %v46
    %v1308 = vmul.f32 %v1275, %v47
    %v1309 = vmul.f32 %v1278, %v48
    %v1310 = vmul.f32 %v1281, %v49
    %v1311 = vmul.f32 %v1284, %v50
    %v1312 = vmul.f32 %v1287, %v51
    %v1313 = vmul.f32 %v1290, %v52
    %v1314 = vmul.f32 %v1293, %v53
    %v1315 = vmul.f32 %v1296, %v54
    %v1316 = vmul.f32 %v1299, %v55
    %1317 = vmatpush.msra.mxu0 %v1316
    %1318 = vmatpush.msra.mxu0 %v1315
    %1319 = vmatpush.msra.mxu0 %v1314
    %1320 = vmatpush.msra.mxu0 %v1313
    %1321 = vmatpush.msra.mxu0 %v1312
    %1322 = vmatpush.msra.mxu0 %v1311
    %1323 = vmatpush.msra.mxu0 %v1310
    %1324 = vmatpush.msra.mxu0 %v1309
    %1325 = vmatpush.msra.mxu0 %v1308
    %1326 = vmatpush.msra.mxu0 %v1307
    %1327 = vmatpush.msra.mxu0 %v1306
    %1328 = vmatpush.msra.mxu0 %v1305
    %1329 = vmatpush.msra.mxu0 %v1304
    %1330 = vmatpush.msra.mxu0 %v1303
    %1331 = vmatpush.msra.mxu0 %v1302
    %1332 = vmatpush.msra.mxu0 %v1301
    %1333 = vmatmul.f32.gmra.mxu0 %v437
    %v1334 = vpop.f32.mrf.mxu0
    %v1335 = vadd.f32 0.0, %v1334
    %1336 = vmatmul.f32.gmra.mxu0 %v438
    %v1337 = vpop.f32.mrf.mxu0
    %v1338 = vadd.f32 0.0, %v1337
    %1339 = vdwg.mxu0
    %v1340 = vperm.slane %v80, 0
    %v1342 = vsel %vm446, %v1335, 0
    %v1345 = vsel %vm446, %v1338, 0
    %1347 = vmatpush.msra.mxu0 0.0
    %1348 = vmatpush.msra.mxu0 0.0
    %1349 = vmatpush.msra.mxu0 0.0
    %1350 = vmatpush.msra.mxu0 0.0
    %1351 = vmatpush.msra.mxu0 0.0
    %1352 = vmatpush.msra.mxu0 0.0
    %1353 = vmatpush.msra.mxu0 0.0
    %1354 = vmatpush.msra.mxu0 0.0
    %1355 = vmatpush.msra.mxu0 0.0
    %1356 = vmatpush.msra.mxu0 0.0
    %1357 = vmatpush.msra.mxu0 %v79
    %1358 = vmatpush.msra.mxu0 %v78
    %1359 = vmatpush.msra.mxu0 %v77
    %1360 = vmatpush.msra.mxu0 %v76
    %1361 = vmatpush.msra.mxu0 %v75
    %1362 = vmatpush.msra.mxu0 %v74
    %1363 = vmatmul.f32.gmra.mxu0 %v1342
    %v1364 = vpop.f32.mrf.mxu0
    %v1365 = vadd.f32 %v1340, %v1364
    %1366 = vmatmul.f32.gmra.mxu0 %v1345
    %v1367 = vpop.f32.mrf.mxu0
    %v1368 = vadd.f32 %v1340, %v1367
    %1369 = vdwg.mxu0
    %v1370 = vadd.f32 %v36, %v1365
    %v1371 = vadd.f32 %v37, %v1368
    %v1372 = vsel %vm446, %v1370, 0.0
    %1373 = vadd.xlane.f32.xlu0 %v1372
    %v1374 = vpop.xlane.xlu0 %1373
    %v1375 = vsel %vm446, %v1371, 0.0
    %1376 = vadd.xlane.f32.xlu0 %v1375
    %v1377 = vpop.xlane.xlu0 %1376
    %v1378 = vmul.f32 %v1374, %v459
    %v1379 = vmul.f32 %v1377, %v459
    %v1380 = vmul.f32 %v1370, %v1370
    %v1381 = vmul.f32 %v1371, %v1371
    %v1382 = vsel %vm446, %v1380, 0.0
    %1383 = vadd.xlane.f32.xlu0 %v1382
    %v1384 = vpop.xlane.xlu0 %1383
    %v1385 = vsel %vm446, %v1381, 0.0
    %1386 = vadd.xlane.f32.xlu0 %v1385
    %v1387 = vpop.xlane.xlu0 %1386
    %v1388 = vmul.f32 %v1384, %v459
    %v1389 = vmul.f32 %v1387, %v459
    %v1390 = vmul.f32 %v1378, %v1378
    %v1391 = vmul.f32 %v1379, %v1379
    %v1392 = vsub.f32 %v1388, %v1390
    %v1393 = vsub.f32 %v1389, %v1391
    %v1394 = vsub.f32 %v1370, %v1378
    %v1395 = vsub.f32 %v1371, %v1379
    %v1396 = vadd.f32 %v1392, 1e-05
    %v1397 = vadd.f32 %v1393, 1e-05
    %v1398 = vrsqrt.pop %v1396
    %v1399 = vmul.f32 %v1398, %v1396
    %v1400 = vmul.f32 %v1399, %v1398
    %v1401 = vmul.f32 0.5, %v1400
    %v1402 = vsub.f32 1.5, %v1401
    %v1403 = vmul.f32 %v1398, %v1402
    %vm1404 = vweird.f32 %v1396
    %vm1405 = vweird.f32 %v1398
    %vm1406 = vmor %vm1404, %vm1405
    %v1407 = vsel %vm1406, %v1398, %v1403
    %v1408 = vrsqrt.pop %v1397
    %v1409 = vmul.f32 %v1408, %v1397
    %v1410 = vmul.f32 %v1409, %v1408
    %v1411 = vmul.f32 0.5, %v1410
    %v1412 = vsub.f32 1.5, %v1411
    %v1413 = vmul.f32 %v1408, %v1412
    %vm1414 = vweird.f32 %v1397
    %vm1415 = vweird.f32 %v1408
    %vm1416 = vmor %vm1414, %vm1415
    %v1417 = vsel %vm1416, %v1408, %v1413
    %v1418 = vmul.f32 %v1394, %v1407
    %v1419 = vmul.f32 %v1395, %v1417
    %v1420 = vperm.slane %v38, 1
    %v1421 = vmul.f32 %v1418, %v1420
    %v1422 = vmul.f32 %v1419, %v1420
    %v1423 = vperm.slane %v39, 1
    %v1424 = vadd.f32 %v1421, %v1423
    %v1425 = vadd.f32 %v1422, %v1423
    %v1426 = vperm.slane %v445, 0
    %v1428 = vsel %vm446, %v1424, 0
    %v1431 = vsel %vm446, %v1425, 0
    %1433 = vmatpush.msra.mxu0 0.0
    %1434 = vmatpush.msra.mxu0 0.0
    %1435 = vmatpush.msra.mxu0 0.0
    %1436 = vmatpush.msra.mxu0 0.0
    %1437 = vmatpush.msra.mxu0 0.0
    %1438 = vmatpush.msra.mxu0 0.0
    %1439 = vmatpush.msra.mxu0 0.0
    %1440 = vmatpush.msra.mxu0 0.0
    %1441 = vmatpush.msra.mxu0 0.0
    %1442 = vmatpush.msra.mxu0 0.0
    %1443 = vmatpush.msra.mxu0 %v444
    %1444 = vmatpush.msra.mxu0 %v443
    %1445 = vmatpush.msra.mxu0 %v442
    %1446 = vmatpush.msra.mxu0 %v441
    %1447 = vmatpush.msra.mxu0 %v440
    %1448 = vmatpush.msra.mxu0 %v439
    %1449 = vmatmul.f32.gmra.mxu0 %v1428
    %v1450 = vpop.f32.mrf.mxu0
    %v1451 = vadd.f32 %v1426, %v1450
    %1452 = vmatmul.f32.gmra.mxu0 %v1431
    %v1453 = vpop.f32.mrf.mxu0
    %v1454 = vadd.f32 %v1426, %v1453
    %1455 = vdwg.mxu0
    %v1456 = vlaneseq
    %v1457 = vand.u32 %v1456, 127
    %v1458 = vcvt.s32.f32 %v1457
    %vm1459 = vcmask 64512
    %v1460 = vsel %vm1459, %v1451, -inf
    %1461 = vmax.xlane.f32.xlu0 %v1460
    %v1462 = vpop.xlane.xlu0 %1461
    %v1463 = vsel %vm1459, %v1454, -inf
    %1464 = vmax.xlane.f32.xlu0 %v1463
    %v1465 = vpop.xlane.xlu0 %1464
    %vm1466 = vcmp.eq.f32.partialorder %v1451, %v1462
    %vm1467 = vcmp.eq.f32.partialorder %v1454, %v1465
    %v1468 = vsel %vm1466, %v1458, 8.0
    %v1469 = vsel %vm1467, %v1458, 8.0
    %v1470 = vsel %vm1459, %v1468, inf
    %1471 = vmin.xlane.f32.xlu0 %v1470
    %v1472 = vpop.xlane.xlu0 %1471
    %v1473 = vsel %vm1459, %v1469, inf
    %1474 = vmin.xlane.f32.xlu0 %v1473
    %v1475 = vpop.xlane.xlu0 %1474
    %vm1476 = vcmp.eq.f32.partialorder %v1458, %v1472
    %vm1477 = vcmp.eq.f32.partialorder %v1458, %v1475
    %v1478 = vsel %vm1476, -1e+30, %v1451
    %v1479 = vsel %vm1477, -1e+30, %v1454
    %v1480 = vsel %vm1459, %v1478, -inf
    %1481 = vmax.xlane.f32.xlu0 %v1480
    %v1482 = vpop.xlane.xlu0 %1481
    %v1483 = vsel %vm1459, %v1479, -inf
    %1484 = vmax.xlane.f32.xlu0 %v1483
    %v1485 = vpop.xlane.xlu0 %1484
    %vm1486 = vcmp.eq.f32.partialorder %v1478, %v1482
    %vm1487 = vcmp.eq.f32.partialorder %v1479, %v1485
    %v1488 = vsel %vm1486, %v1458, 8.0
    %v1489 = vsel %vm1487, %v1458, 8.0
    %v1490 = vsel %vm1459, %v1488, inf
    %1491 = vmin.xlane.f32.xlu0 %v1490
    %v1492 = vpop.xlane.xlu0 %1491
    %v1493 = vsel %vm1459, %v1489, inf
    %1494 = vmin.xlane.f32.xlu0 %v1493
    %v1495 = vpop.xlane.xlu0 %1494
    %vm1496 = vcmp.eq.f32.partialorder %v1458, %v1492
    %vm1497 = vcmp.eq.f32.partialorder %v1458, %v1495
    %v1498 = vsub.f32 %v1482, %v1462
    %v1499 = vsub.f32 %v1485, %v1465
    %v1500 = vmul.f32 %v1498, 1.442695
    %v1501 = vpow.pop %v1500
    %v1502 = vmul.f32 %v1499, 1.442695
    %v1503 = vpow.pop %v1502
    %v1504 = vadd.f32 %v1501, 1.0
    %v1505 = vadd.f32 %v1503, 1.0
    %v1506 = vrcp.pop %v1504
    %v1507 = vmul.f32 %v1504, %v1506
    %v1508 = vsub.f32 1.0, %v1507
    %v1509 = vmul.f32 %v1506, %v1508
    %v1510 = vadd.f32 %v1506, %v1509
    %vm1511 = vweird.f32 %v1504
    %vm1512 = vweird.f32 %v1506
    %vm1513 = vmor %vm1511, %vm1512
    %v1514 = vsel %vm1513, %v1506, %v1510
    %v1515 = vand.u32 2147483647, %v1504
    %vm1516 = vcmp.eq.f32.partialorder %v1515, 8.507059e+37
    %v1517 = vand.u32 %v1504, 2147483648
    %v1518 = vor.u32 1.1754944e-38, %v1517
    %v1519 = vsel %vm1516, %v1518, %v1514
    %v1520 = vmul.f32 1.0, %v1519
    %v1521 = vrcp.pop %v1505
    %v1522 = vmul.f32 %v1505, %v1521
    %v1523 = vsub.f32 1.0, %v1522
    %v1524 = vmul.f32 %v1521, %v1523
    %v1525 = vadd.f32 %v1521, %v1524
    %vm1526 = vweird.f32 %v1505
    %vm1527 = vweird.f32 %v1521
    %vm1528 = vmor %vm1526, %vm1527
    %v1529 = vsel %vm1528, %v1521, %v1525
    %v1530 = vand.u32 2147483647, %v1505
    %vm1531 = vcmp.eq.f32.partialorder %v1530, 8.507059e+37
    %v1532 = vand.u32 %v1505, 2147483648
    %v1533 = vor.u32 1.1754944e-38, %v1532
    %v1534 = vsel %vm1531, %v1533, %v1529
    %v1535 = vmul.f32 1.0, %v1534
    %v1536 = vsel %vm1476, %v1520, 0.0
    %v1537 = vsel %vm1477, %v1535, 0.0
    %v1538 = vmul.f32 %v1501, %v1520
    %v1539 = vmul.f32 %v1503, %v1535
    %v1540 = vsel %vm1496, %v1538, 0.0
    %v1541 = vsel %vm1497, %v1539, 0.0
    %v1542 = vadd.f32 %v1536, %v1540
    %v1543 = vadd.f32 %v1537, %v1541
    %v1546 = vperm.slane %v384, 0
    %v1547 = vperm.slane %v384, 1
    %v1548 = vperm.slane %v384, 2
    %v1549 = vperm.slane %v384, 3
    %v1550 = vperm.slane %v384, 4
    %v1551 = vperm.slane %v384, 5
    %v1552 = vperm.slane %v384, 6
    %v1553 = vperm.slane %v384, 7
    %v1554 = vperm.slane %v386, 0
    %v1555 = vperm.slane %v386, 1
    %v1556 = vperm.slane %v386, 2
    %v1557 = vperm.slane %v386, 3
    %1570 = vmatpush.msra.mxu0 0.0
    %1571 = vmatpush.msra.mxu0 0.0
    %1572 = vmatpush.msra.mxu0 0.0
    %1573 = vmatpush.msra.mxu0 0.0
    %1574 = vmatpush.msra.mxu0 0.0
    %1575 = vmatpush.msra.mxu0 0.0
    %1576 = vmatpush.msra.mxu0 0.0
    %1577 = vmatpush.msra.mxu0 0.0
    %1578 = vmatpush.msra.mxu0 0.0
    %1579 = vmatpush.msra.mxu0 0.0
    %1580 = vmatpush.msra.mxu0 %v369
    %1581 = vmatpush.msra.mxu0 %v357
    %1582 = vmatpush.msra.mxu0 %v345
    %1583 = vmatpush.msra.mxu0 %v333
    %1584 = vmatpush.msra.mxu0 %v321
    %1585 = vmatpush.msra.mxu0 %v309
    %1586 = vmatmul.f32.gmra.mxu0 %v1428
    %v1587 = vpop.f32.mrf.mxu0
    %v1588 = vadd.f32 %v1546, %v1587
    %1589 = vmatmul.f32.gmra.mxu0 %v1431
    %v1590 = vpop.f32.mrf.mxu0
    %v1591 = vadd.f32 %v1546, %v1590
    %1592 = vdwg.mxu0
    %1593 = vmatpush.msra.mxu0 0.0
    %1594 = vmatpush.msra.mxu0 0.0
    %1595 = vmatpush.msra.mxu0 0.0
    %1596 = vmatpush.msra.mxu0 0.0
    %1597 = vmatpush.msra.mxu0 0.0
    %1598 = vmatpush.msra.mxu0 0.0
    %1599 = vmatpush.msra.mxu0 0.0
    %1600 = vmatpush.msra.mxu0 0.0
    %1601 = vmatpush.msra.mxu0 0.0
    %1602 = vmatpush.msra.mxu0 0.0
    %1603 = vmatpush.msra.mxu0 %v370
    %1604 = vmatpush.msra.mxu0 %v358
    %1605 = vmatpush.msra.mxu0 %v346
    %1606 = vmatpush.msra.mxu0 %v334
    %1607 = vmatpush.msra.mxu0 %v322
    %1608 = vmatpush.msra.mxu0 %v310
    %1609 = vmatmul.f32.gmra.mxu0 %v1428
    %v1610 = vpop.f32.mrf.mxu0
    %v1611 = vadd.f32 %v1547, %v1610
    %1612 = vmatmul.f32.gmra.mxu0 %v1431
    %v1613 = vpop.f32.mrf.mxu0
    %v1614 = vadd.f32 %v1547, %v1613
    %1615 = vdwg.mxu0
    %1616 = vmatpush.msra.mxu0 0.0
    %1617 = vmatpush.msra.mxu0 0.0
    %1618 = vmatpush.msra.mxu0 0.0
    %1619 = vmatpush.msra.mxu0 0.0
    %1620 = vmatpush.msra.mxu0 0.0
    %1621 = vmatpush.msra.mxu0 0.0
    %1622 = vmatpush.msra.mxu0 0.0
    %1623 = vmatpush.msra.mxu0 0.0
    %1624 = vmatpush.msra.mxu0 0.0
    %1625 = vmatpush.msra.mxu0 0.0
    %1626 = vmatpush.msra.mxu0 %v371
    %1627 = vmatpush.msra.mxu0 %v359
    %1628 = vmatpush.msra.mxu0 %v347
    %1629 = vmatpush.msra.mxu0 %v335
    %1630 = vmatpush.msra.mxu0 %v323
    %1631 = vmatpush.msra.mxu0 %v311
    %1632 = vmatmul.f32.gmra.mxu0 %v1428
    %v1633 = vpop.f32.mrf.mxu0
    %v1634 = vadd.f32 %v1548, %v1633
    %1635 = vmatmul.f32.gmra.mxu0 %v1431
    %v1636 = vpop.f32.mrf.mxu0
    %v1637 = vadd.f32 %v1548, %v1636
    %1638 = vdwg.mxu0
    %1639 = vmatpush.msra.mxu0 0.0
    %1640 = vmatpush.msra.mxu0 0.0
    %1641 = vmatpush.msra.mxu0 0.0
    %1642 = vmatpush.msra.mxu0 0.0
    %1643 = vmatpush.msra.mxu0 0.0
    %1644 = vmatpush.msra.mxu0 0.0
    %1645 = vmatpush.msra.mxu0 0.0
    %1646 = vmatpush.msra.mxu0 0.0
    %1647 = vmatpush.msra.mxu0 0.0
    %1648 = vmatpush.msra.mxu0 0.0
    %1649 = vmatpush.msra.mxu0 %v372
    %1650 = vmatpush.msra.mxu0 %v360
    %1651 = vmatpush.msra.mxu0 %v348
    %1652 = vmatpush.msra.mxu0 %v336
    %1653 = vmatpush.msra.mxu0 %v324
    %1654 = vmatpush.msra.mxu0 %v312
    %1655 = vmatmul.f32.gmra.mxu0 %v1428
    %v1656 = vpop.f32.mrf.mxu0
    %v1657 = vadd.f32 %v1549, %v1656
    %1658 = vmatmul.f32.gmra.mxu0 %v1431
    %v1659 = vpop.f32.mrf.mxu0
    %v1660 = vadd.f32 %v1549, %v1659
    %1661 = vdwg.mxu0
    %1662 = vmatpush.msra.mxu0 0.0
    %1663 = vmatpush.msra.mxu0 0.0
    %1664 = vmatpush.msra.mxu0 0.0
    %1665 = vmatpush.msra.mxu0 0.0
    %1666 = vmatpush.msra.mxu0 0.0
    %1667 = vmatpush.msra.mxu0 0.0
    %1668 = vmatpush.msra.mxu0 0.0
    %1669 = vmatpush.msra.mxu0 0.0
    %1670 = vmatpush.msra.mxu0 0.0
    %1671 = vmatpush.msra.mxu0 0.0
    %1672 = vmatpush.msra.mxu0 %v373
    %1673 = vmatpush.msra.mxu0 %v361
    %1674 = vmatpush.msra.mxu0 %v349
    %1675 = vmatpush.msra.mxu0 %v337
    %1676 = vmatpush.msra.mxu0 %v325
    %1677 = vmatpush.msra.mxu0 %v313
    %1678 = vmatmul.f32.gmra.mxu0 %v1428
    %v1679 = vpop.f32.mrf.mxu0
    %v1680 = vadd.f32 %v1550, %v1679
    %1681 = vmatmul.f32.gmra.mxu0 %v1431
    %v1682 = vpop.f32.mrf.mxu0
    %v1683 = vadd.f32 %v1550, %v1682
    %1684 = vdwg.mxu0
    %1685 = vmatpush.msra.mxu0 0.0
    %1686 = vmatpush.msra.mxu0 0.0
    %1687 = vmatpush.msra.mxu0 0.0
    %1688 = vmatpush.msra.mxu0 0.0
    %1689 = vmatpush.msra.mxu0 0.0
    %1690 = vmatpush.msra.mxu0 0.0
    %1691 = vmatpush.msra.mxu0 0.0
    %1692 = vmatpush.msra.mxu0 0.0
    %1693 = vmatpush.msra.mxu0 0.0
    %1694 = vmatpush.msra.mxu0 0.0
    %1695 = vmatpush.msra.mxu0 %v374
    %1696 = vmatpush.msra.mxu0 %v362
    %1697 = vmatpush.msra.mxu0 %v350
    %1698 = vmatpush.msra.mxu0 %v338
    %1699 = vmatpush.msra.mxu0 %v326
    %1700 = vmatpush.msra.mxu0 %v314
    %1701 = vmatmul.f32.gmra.mxu0 %v1428
    %v1702 = vpop.f32.mrf.mxu0
    %v1703 = vadd.f32 %v1551, %v1702
    %1704 = vmatmul.f32.gmra.mxu0 %v1431
    %v1705 = vpop.f32.mrf.mxu0
    %v1706 = vadd.f32 %v1551, %v1705
    %1707 = vdwg.mxu0
    %1708 = vmatpush.msra.mxu0 0.0
    %1709 = vmatpush.msra.mxu0 0.0
    %1710 = vmatpush.msra.mxu0 0.0
    %1711 = vmatpush.msra.mxu0 0.0
    %1712 = vmatpush.msra.mxu0 0.0
    %1713 = vmatpush.msra.mxu0 0.0
    %1714 = vmatpush.msra.mxu0 0.0
    %1715 = vmatpush.msra.mxu0 0.0
    %1716 = vmatpush.msra.mxu0 0.0
    %1717 = vmatpush.msra.mxu0 0.0
    %1718 = vmatpush.msra.mxu0 %v375
    %1719 = vmatpush.msra.mxu0 %v363
    %1720 = vmatpush.msra.mxu0 %v351
    %1721 = vmatpush.msra.mxu0 %v339
    %1722 = vmatpush.msra.mxu0 %v327
    %1723 = vmatpush.msra.mxu0 %v315
    %1724 = vmatmul.f32.gmra.mxu0 %v1428
    %v1725 = vpop.f32.mrf.mxu0
    %v1726 = vadd.f32 %v1552, %v1725
    %1727 = vmatmul.f32.gmra.mxu0 %v1431
    %v1728 = vpop.f32.mrf.mxu0
    %v1729 = vadd.f32 %v1552, %v1728
    %1730 = vdwg.mxu0
    %1731 = vmatpush.msra.mxu0 0.0
    %1732 = vmatpush.msra.mxu0 0.0
    %1733 = vmatpush.msra.mxu0 0.0
    %1734 = vmatpush.msra.mxu0 0.0
    %1735 = vmatpush.msra.mxu0 0.0
    %1736 = vmatpush.msra.mxu0 0.0
    %1737 = vmatpush.msra.mxu0 0.0
    %1738 = vmatpush.msra.mxu0 0.0
    %1739 = vmatpush.msra.mxu0 0.0
    %1740 = vmatpush.msra.mxu0 0.0
    %1741 = vmatpush.msra.mxu0 %v376
    %1742 = vmatpush.msra.mxu0 %v364
    %1743 = vmatpush.msra.mxu0 %v352
    %1744 = vmatpush.msra.mxu0 %v340
    %1745 = vmatpush.msra.mxu0 %v328
    %1746 = vmatpush.msra.mxu0 %v316
    %1747 = vmatmul.f32.gmra.mxu0 %v1428
    %v1748 = vpop.f32.mrf.mxu0
    %v1749 = vadd.f32 %v1553, %v1748
    %1750 = vmatmul.f32.gmra.mxu0 %v1431
    %v1751 = vpop.f32.mrf.mxu0
    %v1752 = vadd.f32 %v1553, %v1751
    %1753 = vdwg.mxu0
    %1754 = vmatpush.msra.mxu0 0.0
    %1755 = vmatpush.msra.mxu0 0.0
    %1756 = vmatpush.msra.mxu0 0.0
    %1757 = vmatpush.msra.mxu0 0.0
    %1758 = vmatpush.msra.mxu0 0.0
    %1759 = vmatpush.msra.mxu0 0.0
    %1760 = vmatpush.msra.mxu0 0.0
    %1761 = vmatpush.msra.mxu0 0.0
    %1762 = vmatpush.msra.mxu0 0.0
    %1763 = vmatpush.msra.mxu0 0.0
    %1764 = vmatpush.msra.mxu0 %v377
    %1765 = vmatpush.msra.mxu0 %v365
    %1766 = vmatpush.msra.mxu0 %v353
    %1767 = vmatpush.msra.mxu0 %v341
    %1768 = vmatpush.msra.mxu0 %v329
    %1769 = vmatpush.msra.mxu0 %v317
    %1770 = vmatmul.f32.gmra.mxu0 %v1428
    %v1771 = vpop.f32.mrf.mxu0
    %v1772 = vadd.f32 %v1554, %v1771
    %1773 = vmatmul.f32.gmra.mxu0 %v1431
    %v1774 = vpop.f32.mrf.mxu0
    %v1775 = vadd.f32 %v1554, %v1774
    %1776 = vdwg.mxu0
    %1777 = vmatpush.msra.mxu0 0.0
    %1778 = vmatpush.msra.mxu0 0.0
    %1779 = vmatpush.msra.mxu0 0.0
    %1780 = vmatpush.msra.mxu0 0.0
    %1781 = vmatpush.msra.mxu0 0.0
    %1782 = vmatpush.msra.mxu0 0.0
    %1783 = vmatpush.msra.mxu0 0.0
    %1784 = vmatpush.msra.mxu0 0.0
    %1785 = vmatpush.msra.mxu0 0.0
    %1786 = vmatpush.msra.mxu0 0.0
    %1787 = vmatpush.msra.mxu0 %v378
    %1788 = vmatpush.msra.mxu0 %v366
    %1789 = vmatpush.msra.mxu0 %v354
    %1790 = vmatpush.msra.mxu0 %v342
    %1791 = vmatpush.msra.mxu0 %v330
    %1792 = vmatpush.msra.mxu0 %v318
    %1793 = vmatmul.f32.gmra.mxu0 %v1428
    %v1794 = vpop.f32.mrf.mxu0
    %v1795 = vadd.f32 %v1555, %v1794
    %1796 = vmatmul.f32.gmra.mxu0 %v1431
    %v1797 = vpop.f32.mrf.mxu0
    %v1798 = vadd.f32 %v1555, %v1797
    %1799 = vdwg.mxu0
    %1800 = vmatpush.msra.mxu0 0.0
    %1801 = vmatpush.msra.mxu0 0.0
    %1802 = vmatpush.msra.mxu0 0.0
    %1803 = vmatpush.msra.mxu0 0.0
    %1804 = vmatpush.msra.mxu0 0.0
    %1805 = vmatpush.msra.mxu0 0.0
    %1806 = vmatpush.msra.mxu0 0.0
    %1807 = vmatpush.msra.mxu0 0.0
    %1808 = vmatpush.msra.mxu0 0.0
    %1809 = vmatpush.msra.mxu0 0.0
    %1810 = vmatpush.msra.mxu0 %v379
    %1811 = vmatpush.msra.mxu0 %v367
    %1812 = vmatpush.msra.mxu0 %v355
    %1813 = vmatpush.msra.mxu0 %v343
    %1814 = vmatpush.msra.mxu0 %v331
    %1815 = vmatpush.msra.mxu0 %v319
    %1816 = vmatmul.f32.gmra.mxu0 %v1428
    %v1817 = vpop.f32.mrf.mxu0
    %v1818 = vadd.f32 %v1556, %v1817
    %1819 = vmatmul.f32.gmra.mxu0 %v1431
    %v1820 = vpop.f32.mrf.mxu0
    %v1821 = vadd.f32 %v1556, %v1820
    %1822 = vdwg.mxu0
    %1823 = vmatpush.msra.mxu0 0.0
    %1824 = vmatpush.msra.mxu0 0.0
    %1825 = vmatpush.msra.mxu0 0.0
    %1826 = vmatpush.msra.mxu0 0.0
    %1827 = vmatpush.msra.mxu0 0.0
    %1828 = vmatpush.msra.mxu0 0.0
    %1829 = vmatpush.msra.mxu0 0.0
    %1830 = vmatpush.msra.mxu0 0.0
    %1831 = vmatpush.msra.mxu0 0.0
    %1832 = vmatpush.msra.mxu0 0.0
    %1833 = vmatpush.msra.mxu0 %v380
    %1834 = vmatpush.msra.mxu0 %v368
    %1835 = vmatpush.msra.mxu0 %v356
    %1836 = vmatpush.msra.mxu0 %v344
    %1837 = vmatpush.msra.mxu0 %v332
    %1838 = vmatpush.msra.mxu0 %v320
    %1839 = vmatmul.f32.gmra.mxu0 %v1428
    %v1840 = vpop.f32.mrf.mxu0
    %v1841 = vadd.f32 %v1557, %v1840
    %1842 = vmatmul.f32.gmra.mxu0 %v1431
    %v1843 = vpop.f32.mrf.mxu0
    %v1844 = vadd.f32 %v1557, %v1843
    %1845 = vdwg.mxu0
    %v1846 = vmul.f32 %v1588, 0.5
    %v1847 = vmul.f32 %v1611, 0.5
    %v1848 = vmul.f32 %v1634, 0.5
    %v1849 = vmul.f32 %v1657, 0.5
    %v1850 = vmul.f32 %v1680, 0.5
    %v1851 = vmul.f32 %v1703, 0.5
    %v1852 = vmul.f32 %v1726, 0.5
    %v1853 = vmul.f32 %v1749, 0.5
    %v1854 = vmul.f32 %v1772, 0.5
    %v1855 = vmul.f32 %v1795, 0.5
    %v1856 = vmul.f32 %v1818, 0.5
    %v1857 = vmul.f32 %v1841, 0.5
    %v1858 = vmul.f32 %v1591, 0.5
    %v1859 = vmul.f32 %v1614, 0.5
    %v1860 = vmul.f32 %v1637, 0.5
    %v1861 = vmul.f32 %v1660, 0.5
    %v1862 = vmul.f32 %v1683, 0.5
    %v1863 = vmul.f32 %v1706, 0.5
    %v1864 = vmul.f32 %v1729, 0.5
    %v1865 = vmul.f32 %v1752, 0.5
    %v1866 = vmul.f32 %v1775, 0.5
    %v1867 = vmul.f32 %v1798, 0.5
    %v1868 = vmul.f32 %v1821, 0.5
    %v1869 = vmul.f32 %v1844, 0.5
    %v1870 = vmul.f32 %v1588, 0.70710677
    %v1871 = vmul.f32 %v1611, 0.70710677
    %v1872 = vmul.f32 %v1634, 0.70710677
    %v1873 = vmul.f32 %v1657, 0.70710677
    %v1874 = vmul.f32 %v1680, 0.70710677
    %v1875 = vmul.f32 %v1703, 0.70710677
    %v1876 = vmul.f32 %v1726, 0.70710677
    %v1877 = vmul.f32 %v1749, 0.70710677
    %v1878 = vmul.f32 %v1772, 0.70710677
    %v1879 = vmul.f32 %v1795, 0.70710677
    %v1880 = vmul.f32 %v1818, 0.70710677
    %v1881 = vmul.f32 %v1841, 0.70710677
    %v1882 = vmul.f32 %v1591, 0.70710677
    %v1883 = vmul.f32 %v1614, 0.70710677
    %v1884 = vmul.f32 %v1637, 0.70710677
    %v1885 = vmul.f32 %v1660, 0.70710677
    %v1886 = vmul.f32 %v1683, 0.70710677
    %v1887 = vmul.f32 %v1706, 0.70710677
    %v1888 = vmul.f32 %v1729, 0.70710677
    %v1889 = vmul.f32 %v1752, 0.70710677
    %v1890 = vmul.f32 %v1775, 0.70710677
    %v1891 = vmul.f32 %v1798, 0.70710677
    %v1892 = vmul.f32 %v1821, 0.70710677
    %v1893 = vmul.f32 %v1844, 0.70710677
    %v1894 = vand.u32 2147483647, %v1870
    %v1895 = vand.u32 2147483647, %v1871
    %v1896 = vand.u32 2147483647, %v1872
    %v1897 = vand.u32 2147483647, %v1873
    %v1898 = vand.u32 2147483647, %v1874
    %v1899 = vand.u32 2147483647, %v1875
    %v1900 = vand.u32 2147483647, %v1876
    %v1901 = vand.u32 2147483647, %v1877
    %v1902 = vand.u32 2147483647, %v1878
    %v1903 = vand.u32 2147483647, %v1879
    %v1904 = vand.u32 2147483647, %v1880
    %v1905 = vand.u32 2147483647, %v1881
    %v1906 = vand.u32 2147483647, %v1882
    %v1907 = vand.u32 2147483647, %v1883
    %v1908 = vand.u32 2147483647, %v1884
    %v1909 = vand.u32 2147483647, %v1885
    %v1910 = vand.u32 2147483647, %v1886
    %v1911 = vand.u32 2147483647, %v1887
    %v1912 = vand.u32 2147483647, %v1888
    %v1913 = vand.u32 2147483647, %v1889
    %v1914 = vand.u32 2147483647, %v1890
    %v1915 = vand.u32 2147483647, %v1891
    %v1916 = vand.u32 2147483647, %v1892
    %v1917 = vand.u32 2147483647, %v1893
    %v1918 = vmul.f32 %v1894, 0.3275911
    %v1919 = vmul.f32 %v1895, 0.3275911
    %v1920 = vmul.f32 %v1896, 0.3275911
    %v1921 = vmul.f32 %v1897, 0.3275911
    %v1922 = vmul.f32 %v1898, 0.3275911
    %v1923 = vmul.f32 %v1899, 0.3275911
    %v1924 = vmul.f32 %v1900, 0.3275911
    %v1925 = vmul.f32 %v1901, 0.3275911
    %v1926 = vmul.f32 %v1902, 0.3275911
    %v1927 = vmul.f32 %v1903, 0.3275911
    %v1928 = vmul.f32 %v1904, 0.3275911
    %v1929 = vmul.f32 %v1905, 0.3275911
    %v1930 = vmul.f32 %v1906, 0.3275911
    %v1931 = vmul.f32 %v1907, 0.3275911
    %v1932 = vmul.f32 %v1908, 0.3275911
    %v1933 = vmul.f32 %v1909, 0.3275911
    %v1934 = vmul.f32 %v1910, 0.3275911
    %v1935 = vmul.f32 %v1911, 0.3275911
    %v1936 = vmul.f32 %v1912, 0.3275911
    %v1937 = vmul.f32 %v1913, 0.3275911
    %v1938 = vmul.f32 %v1914, 0.3275911
    %v1939 = vmul.f32 %v1915, 0.3275911
    %v1940 = vmul.f32 %v1916, 0.3275911
    %v1941 = vmul.f32 %v1917, 0.3275911
    %v1942 = vadd.f32 %v1918, 1.0
    %v1943 = vadd.f32 %v1919, 1.0
    %v1944 = vadd.f32 %v1920, 1.0
    %v1945 = vadd.f32 %v1921, 1.0
    %v1946 = vadd.f32 %v1922, 1.0
    %v1947 = vadd.f32 %v1923, 1.0
    %v1948 = vadd.f32 %v1924, 1.0
    %v1949 = vadd.f32 %v1925, 1.0
    %v1950 = vadd.f32 %v1926, 1.0
    %v1951 = vadd.f32 %v1927, 1.0
    %v1952 = vadd.f32 %v1928, 1.0
    %v1953 = vadd.f32 %v1929, 1.0
    %v1954 = vadd.f32 %v1930, 1.0
    %v1955 = vadd.f32 %v1931, 1.0
    %v1956 = vadd.f32 %v1932, 1.0
    %v1957 = vadd.f32 %v1933, 1.0
    %v1958 = vadd.f32 %v1934, 1.0
    %v1959 = vadd.f32 %v1935, 1.0
    %v1960 = vadd.f32 %v1936, 1.0
    %v1961 = vadd.f32 %v1937, 1.0
    %v1962 = vadd.f32 %v1938, 1.0
    %v1963 = vadd.f32 %v1939, 1.0
    %v1964 = vadd.f32 %v1940, 1.0
    %v1965 = vadd.f32 %v1941, 1.0
    %v1966 = vrcp.pop %v1942
    %v1967 = vmul.f32 %v1942, %v1966
    %v1968 = vsub.f32 1.0, %v1967
    %v1969 = vmul.f32 %v1966, %v1968
    %v1970 = vadd.f32 %v1966, %v1969
    %vm1971 = vweird.f32 %v1942
    %vm1972 = vweird.f32 %v1966
    %vm1973 = vmor %vm1971, %vm1972
    %v1974 = vsel %vm1973, %v1966, %v1970
    %v1975 = vand.u32 2147483647, %v1942
    %vm1976 = vcmp.eq.f32.partialorder %v1975, 8.507059e+37
    %v1977 = vand.u32 %v1942, 2147483648
    %v1978 = vor.u32 1.1754944e-38, %v1977
    %v1979 = vsel %vm1976, %v1978, %v1974
    %v1980 = vmul.f32 1.0, %v1979
    %v1981 = vrcp.pop %v1943
    %v1982 = vmul.f32 %v1943, %v1981
    %v1983 = vsub.f32 1.0, %v1982
    %v1984 = vmul.f32 %v1981, %v1983
    %v1985 = vadd.f32 %v1981, %v1984
    %vm1986 = vweird.f32 %v1943
    %vm1987 = vweird.f32 %v1981
    %vm1988 = vmor %vm1986, %vm1987
    %v1989 = vsel %vm1988, %v1981, %v1985
    %v1990 = vand.u32 2147483647, %v1943
    %vm1991 = vcmp.eq.f32.partialorder %v1990, 8.507059e+37
    %v1992 = vand.u32 %v1943, 2147483648
    %v1993 = vor.u32 1.1754944e-38, %v1992
    %v1994 = vsel %vm1991, %v1993, %v1989
    %v1995 = vmul.f32 1.0, %v1994
    %v1996 = vrcp.pop %v1944
    %v1997 = vmul.f32 %v1944, %v1996
    %v1998 = vsub.f32 1.0, %v1997
    %v1999 = vmul.f32 %v1996, %v1998
    %v2000 = vadd.f32 %v1996, %v1999
    %vm2001 = vweird.f32 %v1944
    %vm2002 = vweird.f32 %v1996
    %vm2003 = vmor %vm2001, %vm2002
    %v2004 = vsel %vm2003, %v1996, %v2000
    %v2005 = vand.u32 2147483647, %v1944
    %vm2006 = vcmp.eq.f32.partialorder %v2005, 8.507059e+37
    %v2007 = vand.u32 %v1944, 2147483648
    %v2008 = vor.u32 1.1754944e-38, %v2007
    %v2009 = vsel %vm2006, %v2008, %v2004
    %v2010 = vmul.f32 1.0, %v2009
    %v2011 = vrcp.pop %v1945
    %v2012 = vmul.f32 %v1945, %v2011
    %v2013 = vsub.f32 1.0, %v2012
    %v2014 = vmul.f32 %v2011, %v2013
    %v2015 = vadd.f32 %v2011, %v2014
    %vm2016 = vweird.f32 %v1945
    %vm2017 = vweird.f32 %v2011
    %vm2018 = vmor %vm2016, %vm2017
    %v2019 = vsel %vm2018, %v2011, %v2015
    %v2020 = vand.u32 2147483647, %v1945
    %vm2021 = vcmp.eq.f32.partialorder %v2020, 8.507059e+37
    %v2022 = vand.u32 %v1945, 2147483648
    %v2023 = vor.u32 1.1754944e-38, %v2022
    %v2024 = vsel %vm2021, %v2023, %v2019
    %v2025 = vmul.f32 1.0, %v2024
    %v2026 = vrcp.pop %v1946
    %v2027 = vmul.f32 %v1946, %v2026
    %v2028 = vsub.f32 1.0, %v2027
    %v2029 = vmul.f32 %v2026, %v2028
    %v2030 = vadd.f32 %v2026, %v2029
    %vm2031 = vweird.f32 %v1946
    %vm2032 = vweird.f32 %v2026
    %vm2033 = vmor %vm2031, %vm2032
    %v2034 = vsel %vm2033, %v2026, %v2030
    %v2035 = vand.u32 2147483647, %v1946
    %vm2036 = vcmp.eq.f32.partialorder %v2035, 8.507059e+37
    %v2037 = vand.u32 %v1946, 2147483648
    %v2038 = vor.u32 1.1754944e-38, %v2037
    %v2039 = vsel %vm2036, %v2038, %v2034
    %v2040 = vmul.f32 1.0, %v2039
    %v2041 = vrcp.pop %v1947
    %v2042 = vmul.f32 %v1947, %v2041
    %v2043 = vsub.f32 1.0, %v2042
    %v2044 = vmul.f32 %v2041, %v2043
    %v2045 = vadd.f32 %v2041, %v2044
    %vm2046 = vweird.f32 %v1947
    %vm2047 = vweird.f32 %v2041
    %vm2048 = vmor %vm2046, %vm2047
    %v2049 = vsel %vm2048, %v2041, %v2045
    %v2050 = vand.u32 2147483647, %v1947
    %vm2051 = vcmp.eq.f32.partialorder %v2050, 8.507059e+37
    %v2052 = vand.u32 %v1947, 2147483648
    %v2053 = vor.u32 1.1754944e-38, %v2052
    %v2054 = vsel %vm2051, %v2053, %v2049
    %v2055 = vmul.f32 1.0, %v2054
    %v2056 = vrcp.pop %v1948
    %v2057 = vmul.f32 %v1948, %v2056
    %v2058 = vsub.f32 1.0, %v2057
    %v2059 = vmul.f32 %v2056, %v2058
    %v2060 = vadd.f32 %v2056, %v2059
    %vm2061 = vweird.f32 %v1948
    %vm2062 = vweird.f32 %v2056
    %vm2063 = vmor %vm2061, %vm2062
    %v2064 = vsel %vm2063, %v2056, %v2060
    %v2065 = vand.u32 2147483647, %v1948
    %vm2066 = vcmp.eq.f32.partialorder %v2065, 8.507059e+37
    %v2067 = vand.u32 %v1948, 2147483648
    %v2068 = vor.u32 1.1754944e-38, %v2067
    %v2069 = vsel %vm2066, %v2068, %v2064
    %v2070 = vmul.f32 1.0, %v2069
    %v2071 = vrcp.pop %v1949
    %v2072 = vmul.f32 %v1949, %v2071
    %v2073 = vsub.f32 1.0, %v2072
    %v2074 = vmul.f32 %v2071, %v2073
    %v2075 = vadd.f32 %v2071, %v2074
    %vm2076 = vweird.f32 %v1949
    %vm2077 = vweird.f32 %v2071
    %vm2078 = vmor %vm2076, %vm2077
    %v2079 = vsel %vm2078, %v2071, %v2075
    %v2080 = vand.u32 2147483647, %v1949
    %vm2081 = vcmp.eq.f32.partialorder %v2080, 8.507059e+37
    %v2082 = vand.u32 %v1949, 2147483648
    %v2083 = vor.u32 1.1754944e-38, %v2082
    %v2084 = vsel %vm2081, %v2083, %v2079
    %v2085 = vmul.f32 1.0, %v2084
    %v2086 = vrcp.pop %v1950
    %v2087 = vmul.f32 %v1950, %v2086
    %v2088 = vsub.f32 1.0, %v2087
    %v2089 = vmul.f32 %v2086, %v2088
    %v2090 = vadd.f32 %v2086, %v2089
    %vm2091 = vweird.f32 %v1950
    %vm2092 = vweird.f32 %v2086
    %vm2093 = vmor %vm2091, %vm2092
    %v2094 = vsel %vm2093, %v2086, %v2090
    %v2095 = vand.u32 2147483647, %v1950
    %vm2096 = vcmp.eq.f32.partialorder %v2095, 8.507059e+37
    %v2097 = vand.u32 %v1950, 2147483648
    %v2098 = vor.u32 1.1754944e-38, %v2097
    %v2099 = vsel %vm2096, %v2098, %v2094
    %v2100 = vmul.f32 1.0, %v2099
    %v2101 = vrcp.pop %v1951
    %v2102 = vmul.f32 %v1951, %v2101
    %v2103 = vsub.f32 1.0, %v2102
    %v2104 = vmul.f32 %v2101, %v2103
    %v2105 = vadd.f32 %v2101, %v2104
    %vm2106 = vweird.f32 %v1951
    %vm2107 = vweird.f32 %v2101
    %vm2108 = vmor %vm2106, %vm2107
    %v2109 = vsel %vm2108, %v2101, %v2105
    %v2110 = vand.u32 2147483647, %v1951
    %vm2111 = vcmp.eq.f32.partialorder %v2110, 8.507059e+37
    %v2112 = vand.u32 %v1951, 2147483648
    %v2113 = vor.u32 1.1754944e-38, %v2112
    %v2114 = vsel %vm2111, %v2113, %v2109
    %v2115 = vmul.f32 1.0, %v2114
    %v2116 = vrcp.pop %v1952
    %v2117 = vmul.f32 %v1952, %v2116
    %v2118 = vsub.f32 1.0, %v2117
    %v2119 = vmul.f32 %v2116, %v2118
    %v2120 = vadd.f32 %v2116, %v2119
    %vm2121 = vweird.f32 %v1952
    %vm2122 = vweird.f32 %v2116
    %vm2123 = vmor %vm2121, %vm2122
    %v2124 = vsel %vm2123, %v2116, %v2120
    %v2125 = vand.u32 2147483647, %v1952
    %vm2126 = vcmp.eq.f32.partialorder %v2125, 8.507059e+37
    %v2127 = vand.u32 %v1952, 2147483648
    %v2128 = vor.u32 1.1754944e-38, %v2127
    %v2129 = vsel %vm2126, %v2128, %v2124
    %v2130 = vmul.f32 1.0, %v2129
    %v2131 = vrcp.pop %v1953
    %v2132 = vmul.f32 %v1953, %v2131
    %v2133 = vsub.f32 1.0, %v2132
    %v2134 = vmul.f32 %v2131, %v2133
    %v2135 = vadd.f32 %v2131, %v2134
    %vm2136 = vweird.f32 %v1953
    %vm2137 = vweird.f32 %v2131
    %vm2138 = vmor %vm2136, %vm2137
    %v2139 = vsel %vm2138, %v2131, %v2135
    %v2140 = vand.u32 2147483647, %v1953
    %vm2141 = vcmp.eq.f32.partialorder %v2140, 8.507059e+37
    %v2142 = vand.u32 %v1953, 2147483648
    %v2143 = vor.u32 1.1754944e-38, %v2142
    %v2144 = vsel %vm2141, %v2143, %v2139
    %v2145 = vmul.f32 1.0, %v2144
    %v2146 = vrcp.pop %v1954
    %v2147 = vmul.f32 %v1954, %v2146
    %v2148 = vsub.f32 1.0, %v2147
    %v2149 = vmul.f32 %v2146, %v2148
    %v2150 = vadd.f32 %v2146, %v2149
    %vm2151 = vweird.f32 %v1954
    %vm2152 = vweird.f32 %v2146
    %vm2153 = vmor %vm2151, %vm2152
    %v2154 = vsel %vm2153, %v2146, %v2150
    %v2155 = vand.u32 2147483647, %v1954
    %vm2156 = vcmp.eq.f32.partialorder %v2155, 8.507059e+37
    %v2157 = vand.u32 %v1954, 2147483648
    %v2158 = vor.u32 1.1754944e-38, %v2157
    %v2159 = vsel %vm2156, %v2158, %v2154
    %v2160 = vmul.f32 1.0, %v2159
    %v2161 = vrcp.pop %v1955
    %v2162 = vmul.f32 %v1955, %v2161
    %v2163 = vsub.f32 1.0, %v2162
    %v2164 = vmul.f32 %v2161, %v2163
    %v2165 = vadd.f32 %v2161, %v2164
    %vm2166 = vweird.f32 %v1955
    %vm2167 = vweird.f32 %v2161
    %vm2168 = vmor %vm2166, %vm2167
    %v2169 = vsel %vm2168, %v2161, %v2165
    %v2170 = vand.u32 2147483647, %v1955
    %vm2171 = vcmp.eq.f32.partialorder %v2170, 8.507059e+37
    %v2172 = vand.u32 %v1955, 2147483648
    %v2173 = vor.u32 1.1754944e-38, %v2172
    %v2174 = vsel %vm2171, %v2173, %v2169
    %v2175 = vmul.f32 1.0, %v2174
    %v2176 = vrcp.pop %v1956
    %v2177 = vmul.f32 %v1956, %v2176
    %v2178 = vsub.f32 1.0, %v2177
    %v2179 = vmul.f32 %v2176, %v2178
    %v2180 = vadd.f32 %v2176, %v2179
    %vm2181 = vweird.f32 %v1956
    %vm2182 = vweird.f32 %v2176
    %vm2183 = vmor %vm2181, %vm2182
    %v2184 = vsel %vm2183, %v2176, %v2180
    %v2185 = vand.u32 2147483647, %v1956
    %vm2186 = vcmp.eq.f32.partialorder %v2185, 8.507059e+37
    %v2187 = vand.u32 %v1956, 2147483648
    %v2188 = vor.u32 1.1754944e-38, %v2187
    %v2189 = vsel %vm2186, %v2188, %v2184
    %v2190 = vmul.f32 1.0, %v2189
    %v2191 = vrcp.pop %v1957
    %v2192 = vmul.f32 %v1957, %v2191
    %v2193 = vsub.f32 1.0, %v2192
    %v2194 = vmul.f32 %v2191, %v2193
    %v2195 = vadd.f32 %v2191, %v2194
    %vm2196 = vweird.f32 %v1957
    %vm2197 = vweird.f32 %v2191
    %vm2198 = vmor %vm2196, %vm2197
    %v2199 = vsel %vm2198, %v2191, %v2195
    %v2200 = vand.u32 2147483647, %v1957
    %vm2201 = vcmp.eq.f32.partialorder %v2200, 8.507059e+37
    %v2202 = vand.u32 %v1957, 2147483648
    %v2203 = vor.u32 1.1754944e-38, %v2202
    %v2204 = vsel %vm2201, %v2203, %v2199
    %v2205 = vmul.f32 1.0, %v2204
    %v2206 = vrcp.pop %v1958
    %v2207 = vmul.f32 %v1958, %v2206
    %v2208 = vsub.f32 1.0, %v2207
    %v2209 = vmul.f32 %v2206, %v2208
    %v2210 = vadd.f32 %v2206, %v2209
    %vm2211 = vweird.f32 %v1958
    %vm2212 = vweird.f32 %v2206
    %vm2213 = vmor %vm2211, %vm2212
    %v2214 = vsel %vm2213, %v2206, %v2210
    %v2215 = vand.u32 2147483647, %v1958
    %vm2216 = vcmp.eq.f32.partialorder %v2215, 8.507059e+37
    %v2217 = vand.u32 %v1958, 2147483648
    %v2218 = vor.u32 1.1754944e-38, %v2217
    %v2219 = vsel %vm2216, %v2218, %v2214
    %v2220 = vmul.f32 1.0, %v2219
    %v2221 = vrcp.pop %v1959
    %v2222 = vmul.f32 %v1959, %v2221
    %v2223 = vsub.f32 1.0, %v2222
    %v2224 = vmul.f32 %v2221, %v2223
    %v2225 = vadd.f32 %v2221, %v2224
    %vm2226 = vweird.f32 %v1959
    %vm2227 = vweird.f32 %v2221
    %vm2228 = vmor %vm2226, %vm2227
    %v2229 = vsel %vm2228, %v2221, %v2225
    %v2230 = vand.u32 2147483647, %v1959
    %vm2231 = vcmp.eq.f32.partialorder %v2230, 8.507059e+37
    %v2232 = vand.u32 %v1959, 2147483648
    %v2233 = vor.u32 1.1754944e-38, %v2232
    %v2234 = vsel %vm2231, %v2233, %v2229
    %v2235 = vmul.f32 1.0, %v2234
    %v2236 = vrcp.pop %v1960
    %v2237 = vmul.f32 %v1960, %v2236
    %v2238 = vsub.f32 1.0, %v2237
    %v2239 = vmul.f32 %v2236, %v2238
    %v2240 = vadd.f32 %v2236, %v2239
    %vm2241 = vweird.f32 %v1960
    %vm2242 = vweird.f32 %v2236
    %vm2243 = vmor %vm2241, %vm2242
    %v2244 = vsel %vm2243, %v2236, %v2240
    %v2245 = vand.u32 2147483647, %v1960
    %vm2246 = vcmp.eq.f32.partialorder %v2245, 8.507059e+37
    %v2247 = vand.u32 %v1960, 2147483648
    %v2248 = vor.u32 1.1754944e-38, %v2247
    %v2249 = vsel %vm2246, %v2248, %v2244
    %v2250 = vmul.f32 1.0, %v2249
    %v2251 = vrcp.pop %v1961
    %v2252 = vmul.f32 %v1961, %v2251
    %v2253 = vsub.f32 1.0, %v2252
    %v2254 = vmul.f32 %v2251, %v2253
    %v2255 = vadd.f32 %v2251, %v2254
    %vm2256 = vweird.f32 %v1961
    %vm2257 = vweird.f32 %v2251
    %vm2258 = vmor %vm2256, %vm2257
    %v2259 = vsel %vm2258, %v2251, %v2255
    %v2260 = vand.u32 2147483647, %v1961
    %vm2261 = vcmp.eq.f32.partialorder %v2260, 8.507059e+37
    %v2262 = vand.u32 %v1961, 2147483648
    %v2263 = vor.u32 1.1754944e-38, %v2262
    %v2264 = vsel %vm2261, %v2263, %v2259
    %v2265 = vmul.f32 1.0, %v2264
    %v2266 = vrcp.pop %v1962
    %v2267 = vmul.f32 %v1962, %v2266
    %v2268 = vsub.f32 1.0, %v2267
    %v2269 = vmul.f32 %v2266, %v2268
    %v2270 = vadd.f32 %v2266, %v2269
    %vm2271 = vweird.f32 %v1962
    %vm2272 = vweird.f32 %v2266
    %vm2273 = vmor %vm2271, %vm2272
    %v2274 = vsel %vm2273, %v2266, %v2270
    %v2275 = vand.u32 2147483647, %v1962
    %vm2276 = vcmp.eq.f32.partialorder %v2275, 8.507059e+37
    %v2277 = vand.u32 %v1962, 2147483648
    %v2278 = vor.u32 1.1754944e-38, %v2277
    %v2279 = vsel %vm2276, %v2278, %v2274
    %v2280 = vmul.f32 1.0, %v2279
    %v2281 = vrcp.pop %v1963
    %v2282 = vmul.f32 %v1963, %v2281
    %v2283 = vsub.f32 1.0, %v2282
    %v2284 = vmul.f32 %v2281, %v2283
    %v2285 = vadd.f32 %v2281, %v2284
    %vm2286 = vweird.f32 %v1963
    %vm2287 = vweird.f32 %v2281
    %vm2288 = vmor %vm2286, %vm2287
    %v2289 = vsel %vm2288, %v2281, %v2285
    %v2290 = vand.u32 2147483647, %v1963
    %vm2291 = vcmp.eq.f32.partialorder %v2290, 8.507059e+37
    %v2292 = vand.u32 %v1963, 2147483648
    %v2293 = vor.u32 1.1754944e-38, %v2292
    %v2294 = vsel %vm2291, %v2293, %v2289
    %v2295 = vmul.f32 1.0, %v2294
    %v2296 = vrcp.pop %v1964
    %v2297 = vmul.f32 %v1964, %v2296
    %v2298 = vsub.f32 1.0, %v2297
    %v2299 = vmul.f32 %v2296, %v2298
    %v2300 = vadd.f32 %v2296, %v2299
    %vm2301 = vweird.f32 %v1964
    %vm2302 = vweird.f32 %v2296
    %vm2303 = vmor %vm2301, %vm2302
    %v2304 = vsel %vm2303, %v2296, %v2300
    %v2305 = vand.u32 2147483647, %v1964
    %vm2306 = vcmp.eq.f32.partialorder %v2305, 8.507059e+37
    %v2307 = vand.u32 %v1964, 2147483648
    %v2308 = vor.u32 1.1754944e-38, %v2307
    %v2309 = vsel %vm2306, %v2308, %v2304
    %v2310 = vmul.f32 1.0, %v2309
    %v2311 = vrcp.pop %v1965
    %v2312 = vmul.f32 %v1965, %v2311
    %v2313 = vsub.f32 1.0, %v2312
    %v2314 = vmul.f32 %v2311, %v2313
    %v2315 = vadd.f32 %v2311, %v2314
    %vm2316 = vweird.f32 %v1965
    %vm2317 = vweird.f32 %v2311
    %vm2318 = vmor %vm2316, %vm2317
    %v2319 = vsel %vm2318, %v2311, %v2315
    %v2320 = vand.u32 2147483647, %v1965
    %vm2321 = vcmp.eq.f32.partialorder %v2320, 8.507059e+37
    %v2322 = vand.u32 %v1965, 2147483648
    %v2323 = vor.u32 1.1754944e-38, %v2322
    %v2324 = vsel %vm2321, %v2323, %v2319
    %v2325 = vmul.f32 1.0, %v2324
    %v2326 = vmul.f32 %v1980, 1.0614054
    %v2327 = vmul.f32 %v1995, 1.0614054
    %v2328 = vmul.f32 %v2010, 1.0614054
    %v2329 = vmul.f32 %v2025, 1.0614054
    %v2330 = vmul.f32 %v2040, 1.0614054
    %v2331 = vmul.f32 %v2055, 1.0614054
    %v2332 = vmul.f32 %v2070, 1.0614054
    %v2333 = vmul.f32 %v2085, 1.0614054
    %v2334 = vmul.f32 %v2100, 1.0614054
    %v2335 = vmul.f32 %v2115, 1.0614054
    %v2336 = vmul.f32 %v2130, 1.0614054
    %v2337 = vmul.f32 %v2145, 1.0614054
    %v2338 = vmul.f32 %v2160, 1.0614054
    %v2339 = vmul.f32 %v2175, 1.0614054
    %v2340 = vmul.f32 %v2190, 1.0614054
    %v2341 = vmul.f32 %v2205, 1.0614054
    %v2342 = vmul.f32 %v2220, 1.0614054
    %v2343 = vmul.f32 %v2235, 1.0614054
    %v2344 = vmul.f32 %v2250, 1.0614054
    %v2345 = vmul.f32 %v2265, 1.0614054
    %v2346 = vmul.f32 %v2280, 1.0614054
    %v2347 = vmul.f32 %v2295, 1.0614054
    %v2348 = vmul.f32 %v2310, 1.0614054
    %v2349 = vmul.f32 %v2325, 1.0614054
    %v2350 = vadd.f32 %v2326, -1.4531521
    %v2351 = vadd.f32 %v2327, -1.4531521
    %v2352 = vadd.f32 %v2328, -1.4531521
    %v2353 = vadd.f32 %v2329, -1.4531521
    %v2354 = vadd.f32 %v2330, -1.4531521
    %v2355 = vadd.f32 %v2331, -1.4531521
    %v2356 = vadd.f32 %v2332, -1.4531521
    %v2357 = vadd.f32 %v2333, -1.4531521
    %v2358 = vadd.f32 %v2334, -1.4531521
    %v2359 = vadd.f32 %v2335, -1.4531521
    %v2360 = vadd.f32 %v2336, -1.4531521
    %v2361 = vadd.f32 %v2337, -1.4531521
    %v2362 = vadd.f32 %v2338, -1.4531521
    %v2363 = vadd.f32 %v2339, -1.4531521
    %v2364 = vadd.f32 %v2340, -1.4531521
    %v2365 = vadd.f32 %v2341, -1.4531521
    %v2366 = vadd.f32 %v2342, -1.4531521
    %v2367 = vadd.f32 %v2343, -1.4531521
    %v2368 = vadd.f32 %v2344, -1.4531521
    %v2369 = vadd.f32 %v2345, -1.4531521
    %v2370 = vadd.f32 %v2346, -1.4531521
    %v2371 = vadd.f32 %v2347, -1.4531521
    %v2372 = vadd.f32 %v2348, -1.4531521
    %v2373 = vadd.f32 %v2349, -1.4531521
    %v2374 = vmul.f32 %v2350, %v1980
    %v2375 = vmul.f32 %v2351, %v1995
    %v2376 = vmul.f32 %v2352, %v2010
    %v2377 = vmul.f32 %v2353, %v2025
    %v2378 = vmul.f32 %v2354, %v2040
    %v2379 = vmul.f32 %v2355, %v2055
    %v2380 = vmul.f32 %v2356, %v2070
    %v2381 = vmul.f32 %v2357, %v2085
    %v2382 = vmul.f32 %v2358, %v2100
    %v2383 = vmul.f32 %v2359, %v2115
    %v2384 = vmul.f32 %v2360, %v2130
    %v2385 = vmul.f32 %v2361, %v2145
    %v2386 = vmul.f32 %v2362, %v2160
    %v2387 = vmul.f32 %v2363, %v2175
    %v2388 = vmul.f32 %v2364, %v2190
    %v2389 = vmul.f32 %v2365, %v2205
    %v2390 = vmul.f32 %v2366, %v2220
    %v2391 = vmul.f32 %v2367, %v2235
    %v2392 = vmul.f32 %v2368, %v2250
    %v2393 = vmul.f32 %v2369, %v2265
    %v2394 = vmul.f32 %v2370, %v2280
    %v2395 = vmul.f32 %v2371, %v2295
    %v2396 = vmul.f32 %v2372, %v2310
    %v2397 = vmul.f32 %v2373, %v2325
    %v2398 = vadd.f32 %v2374, 1.4214138
    %v2399 = vadd.f32 %v2375, 1.4214138
    %v2400 = vadd.f32 %v2376, 1.4214138
    %v2401 = vadd.f32 %v2377, 1.4214138
    %v2402 = vadd.f32 %v2378, 1.4214138
    %v2403 = vadd.f32 %v2379, 1.4214138
    %v2404 = vadd.f32 %v2380, 1.4214138
    %v2405 = vadd.f32 %v2381, 1.4214138
    %v2406 = vadd.f32 %v2382, 1.4214138
    %v2407 = vadd.f32 %v2383, 1.4214138
    %v2408 = vadd.f32 %v2384, 1.4214138
    %v2409 = vadd.f32 %v2385, 1.4214138
    %v2410 = vadd.f32 %v2386, 1.4214138
    %v2411 = vadd.f32 %v2387, 1.4214138
    %v2412 = vadd.f32 %v2388, 1.4214138
    %v2413 = vadd.f32 %v2389, 1.4214138
    %v2414 = vadd.f32 %v2390, 1.4214138
    %v2415 = vadd.f32 %v2391, 1.4214138
    %v2416 = vadd.f32 %v2392, 1.4214138
    %v2417 = vadd.f32 %v2393, 1.4214138
    %v2418 = vadd.f32 %v2394, 1.4214138
    %v2419 = vadd.f32 %v2395, 1.4214138
    %v2420 = vadd.f32 %v2396, 1.4214138
    %v2421 = vadd.f32 %v2397, 1.4214138
    %v2422 = vmul.f32 %v2398, %v1980
    %v2423 = vmul.f32 %v2399, %v1995
    %v2424 = vmul.f32 %v2400, %v2010
    %v2425 = vmul.f32 %v2401, %v2025
    %v2426 = vmul.f32 %v2402, %v2040
    %v2427 = vmul.f32 %v2403, %v2055
    %v2428 = vmul.f32 %v2404, %v2070
    %v2429 = vmul.f32 %v2405, %v2085
    %v2430 = vmul.f32 %v2406, %v2100
    %v2431 = vmul.f32 %v2407, %v2115
    %v2432 = vmul.f32 %v2408, %v2130
    %v2433 = vmul.f32 %v2409, %v2145
    %v2434 = vmul.f32 %v2410, %v2160
    %v2435 = vmul.f32 %v2411, %v2175
    %v2436 = vmul.f32 %v2412, %v2190
    %v2437 = vmul.f32 %v2413, %v2205
    %v2438 = vmul.f32 %v2414, %v2220
    %v2439 = vmul.f32 %v2415, %v2235
    %v2440 = vmul.f32 %v2416, %v2250
    %v2441 = vmul.f32 %v2417, %v2265
    %v2442 = vmul.f32 %v2418, %v2280
    %v2443 = vmul.f32 %v2419, %v2295
    %v2444 = vmul.f32 %v2420, %v2310
    %v2445 = vmul.f32 %v2421, %v2325
    %v2446 = vadd.f32 %v2422, -0.28449672
    %v2447 = vadd.f32 %v2423, -0.28449672
    %v2448 = vadd.f32 %v2424, -0.28449672
    %v2449 = vadd.f32 %v2425, -0.28449672
    %v2450 = vadd.f32 %v2426, -0.28449672
    %v2451 = vadd.f32 %v2427, -0.28449672
    %v2452 = vadd.f32 %v2428, -0.28449672
    %v2453 = vadd.f32 %v2429, -0.28449672
    %v2454 = vadd.f32 %v2430, -0.28449672
    %v2455 = vadd.f32 %v2431, -0.28449672
    %v2456 = vadd.f32 %v2432, -0.28449672
    %v2457 = vadd.f32 %v2433, -0.28449672
    %v2458 = vadd.f32 %v2434, -0.28449672
    %v2459 = vadd.f32 %v2435, -0.28449672
    %v2460 = vadd.f32 %v2436, -0.28449672
    %v2461 = vadd.f32 %v2437, -0.28449672
    %v2462 = vadd.f32 %v2438, -0.28449672
    %v2463 = vadd.f32 %v2439, -0.28449672
    %v2464 = vadd.f32 %v2440, -0.28449672
    %v2465 = vadd.f32 %v2441, -0.28449672
    %v2466 = vadd.f32 %v2442, -0.28449672
    %v2467 = vadd.f32 %v2443, -0.28449672
    %v2468 = vadd.f32 %v2444, -0.28449672
    %v2469 = vadd.f32 %v2445, -0.28449672
    %v2470 = vmul.f32 %v2446, %v1980
    %v2471 = vmul.f32 %v2447, %v1995
    %v2472 = vmul.f32 %v2448, %v2010
    %v2473 = vmul.f32 %v2449, %v2025
    %v2474 = vmul.f32 %v2450, %v2040
    %v2475 = vmul.f32 %v2451, %v2055
    %v2476 = vmul.f32 %v2452, %v2070
    %v2477 = vmul.f32 %v2453, %v2085
    %v2478 = vmul.f32 %v2454, %v2100
    %v2479 = vmul.f32 %v2455, %v2115
    %v2480 = vmul.f32 %v2456, %v2130
    %v2481 = vmul.f32 %v2457, %v2145
    %v2482 = vmul.f32 %v2458, %v2160
    %v2483 = vmul.f32 %v2459, %v2175
    %v2484 = vmul.f32 %v2460, %v2190
    %v2485 = vmul.f32 %v2461, %v2205
    %v2486 = vmul.f32 %v2462, %v2220
    %v2487 = vmul.f32 %v2463, %v2235
    %v2488 = vmul.f32 %v2464, %v2250
    %v2489 = vmul.f32 %v2465, %v2265
    %v2490 = vmul.f32 %v2466, %v2280
    %v2491 = vmul.f32 %v2467, %v2295
    %v2492 = vmul.f32 %v2468, %v2310
    %v2493 = vmul.f32 %v2469, %v2325
    %v2494 = vadd.f32 %v2470, 0.2548296
    %v2495 = vadd.f32 %v2471, 0.2548296
    %v2496 = vadd.f32 %v2472, 0.2548296
    %v2497 = vadd.f32 %v2473, 0.2548296
    %v2498 = vadd.f32 %v2474, 0.2548296
    %v2499 = vadd.f32 %v2475, 0.2548296
    %v2500 = vadd.f32 %v2476, 0.2548296
    %v2501 = vadd.f32 %v2477, 0.2548296
    %v2502 = vadd.f32 %v2478, 0.2548296
    %v2503 = vadd.f32 %v2479, 0.2548296
    %v2504 = vadd.f32 %v2480, 0.2548296
    %v2505 = vadd.f32 %v2481, 0.2548296
    %v2506 = vadd.f32 %v2482, 0.2548296
    %v2507 = vadd.f32 %v2483, 0.2548296
    %v2508 = vadd.f32 %v2484, 0.2548296
    %v2509 = vadd.f32 %v2485, 0.2548296
    %v2510 = vadd.f32 %v2486, 0.2548296
    %v2511 = vadd.f32 %v2487, 0.2548296
    %v2512 = vadd.f32 %v2488, 0.2548296
    %v2513 = vadd.f32 %v2489, 0.2548296
    %v2514 = vadd.f32 %v2490, 0.2548296
    %v2515 = vadd.f32 %v2491, 0.2548296
    %v2516 = vadd.f32 %v2492, 0.2548296
    %v2517 = vadd.f32 %v2493, 0.2548296
    %v2518 = vmul.f32 %v2494, %v1980
    %v2519 = vmul.f32 %v2495, %v1995
    %v2520 = vmul.f32 %v2496, %v2010
    %v2521 = vmul.f32 %v2497, %v2025
    %v2522 = vmul.f32 %v2498, %v2040
    %v2523 = vmul.f32 %v2499, %v2055
    %v2524 = vmul.f32 %v2500, %v2070
    %v2525 = vmul.f32 %v2501, %v2085
    %v2526 = vmul.f32 %v2502, %v2100
    %v2527 = vmul.f32 %v2503, %v2115
    %v2528 = vmul.f32 %v2504, %v2130
    %v2529 = vmul.f32 %v2505, %v2145
    %v2530 = vmul.f32 %v2506, %v2160
    %v2531 = vmul.f32 %v2507, %v2175
    %v2532 = vmul.f32 %v2508, %v2190
    %v2533 = vmul.f32 %v2509, %v2205
    %v2534 = vmul.f32 %v2510, %v2220
    %v2535 = vmul.f32 %v2511, %v2235
    %v2536 = vmul.f32 %v2512, %v2250
    %v2537 = vmul.f32 %v2513, %v2265
    %v2538 = vmul.f32 %v2514, %v2280
    %v2539 = vmul.f32 %v2515, %v2295
    %v2540 = vmul.f32 %v2516, %v2310
    %v2541 = vmul.f32 %v2517, %v2325
    %v2542 = vsub.f32 0.0, %v1894
    %v2543 = vsub.f32 0.0, %v1895
    %v2544 = vsub.f32 0.0, %v1896
    %v2545 = vsub.f32 0.0, %v1897
    %v2546 = vsub.f32 0.0, %v1898
    %v2547 = vsub.f32 0.0, %v1899
    %v2548 = vsub.f32 0.0, %v1900
    %v2549 = vsub.f32 0.0, %v1901
    %v2550 = vsub.f32 0.0, %v1902
    %v2551 = vsub.f32 0.0, %v1903
    %v2552 = vsub.f32 0.0, %v1904
    %v2553 = vsub.f32 0.0, %v1905
    %v2554 = vsub.f32 0.0, %v1906
    %v2555 = vsub.f32 0.0, %v1907
    %v2556 = vsub.f32 0.0, %v1908
    %v2557 = vsub.f32 0.0, %v1909
    %v2558 = vsub.f32 0.0, %v1910
    %v2559 = vsub.f32 0.0, %v1911
    %v2560 = vsub.f32 0.0, %v1912
    %v2561 = vsub.f32 0.0, %v1913
    %v2562 = vsub.f32 0.0, %v1914
    %v2563 = vsub.f32 0.0, %v1915
    %v2564 = vsub.f32 0.0, %v1916
    %v2565 = vsub.f32 0.0, %v1917
    %v2566 = vmul.f32 %v2542, %v1894
    %v2567 = vmul.f32 %v2543, %v1895
    %v2568 = vmul.f32 %v2544, %v1896
    %v2569 = vmul.f32 %v2545, %v1897
    %v2570 = vmul.f32 %v2546, %v1898
    %v2571 = vmul.f32 %v2547, %v1899
    %v2572 = vmul.f32 %v2548, %v1900
    %v2573 = vmul.f32 %v2549, %v1901
    %v2574 = vmul.f32 %v2550, %v1902
    %v2575 = vmul.f32 %v2551, %v1903
    %v2576 = vmul.f32 %v2552, %v1904
    %v2577 = vmul.f32 %v2553, %v1905
    %v2578 = vmul.f32 %v2554, %v1906
    %v2579 = vmul.f32 %v2555, %v1907
    %v2580 = vmul.f32 %v2556, %v1908
    %v2581 = vmul.f32 %v2557, %v1909
    %v2582 = vmul.f32 %v2558, %v1910
    %v2583 = vmul.f32 %v2559, %v1911
    %v2584 = vmul.f32 %v2560, %v1912
    %v2585 = vmul.f32 %v2561, %v1913
    %v2586 = vmul.f32 %v2562, %v1914
    %v2587 = vmul.f32 %v2563, %v1915
    %v2588 = vmul.f32 %v2564, %v1916
    %v2589 = vmul.f32 %v2565, %v1917
    %v2590 = vmul.f32 %v2566, 1.442695
    %v2591 = vpow.pop %v2590
    %v2592 = vmul.f32 %v2567, 1.442695
    %v2593 = vpow.pop %v2592
    %v2594 = vmul.f32 %v2568, 1.442695
    %v2595 = vpow.pop %v2594
    %v2596 = vmul.f32 %v2569, 1.442695
    %v2597 = vpow.pop %v2596
    %v2598 = vmul.f32 %v2570, 1.442695
    %v2599 = vpow.pop %v2598
    %v2600 = vmul.f32 %v2571, 1.442695
    %v2601 = vpow.pop %v2600
    %v2602 = vmul.f32 %v2572, 1.442695
    %v2603 = vpow.pop %v2602
    %v2604 = vmul.f32 %v2573, 1.442695
    %v2605 = vpow.pop %v2604
    %v2606 = vmul.f32 %v2574, 1.442695
    %v2607 = vpow.pop %v2606
    %v2608 = vmul.f32 %v2575, 1.442695
    %v2609 = vpow.pop %v2608
    %v2610 = vmul.f32 %v2576, 1.442695
    %v2611 = vpow.pop %v2610
    %v2612 = vmul.f32 %v2577, 1.442695
    %v2613 = vpow.pop %v2612
    %v2614 = vmul.f32 %v2578, 1.442695
    %v2615 = vpow.pop %v2614
    %v2616 = vmul.f32 %v2579, 1.442695
    %v2617 = vpow.pop %v2616
    %v2618 = vmul.f32 %v2580, 1.442695
    %v2619 = vpow.pop %v2618
    %v2620 = vmul.f32 %v2581, 1.442695
    %v2621 = vpow.pop %v2620
    %v2622 = vmul.f32 %v2582, 1.442695
    %v2623 = vpow.pop %v2622
    %v2624 = vmul.f32 %v2583, 1.442695
    %v2625 = vpow.pop %v2624
    %v2626 = vmul.f32 %v2584, 1.442695
    %v2627 = vpow.pop %v2626
    %v2628 = vmul.f32 %v2585, 1.442695
    %v2629 = vpow.pop %v2628
    %v2630 = vmul.f32 %v2586, 1.442695
    %v2631 = vpow.pop %v2630
    %v2632 = vmul.f32 %v2587, 1.442695
    %v2633 = vpow.pop %v2632
    %v2634 = vmul.f32 %v2588, 1.442695
    %v2635 = vpow.pop %v2634
    %v2636 = vmul.f32 %v2589, 1.442695
    %v2637 = vpow.pop %v2636
    %v2638 = vmul.f32 %v2518, %v2591
    %v2639 = vmul.f32 %v2519, %v2593
    %v2640 = vmul.f32 %v2520, %v2595
    %v2641 = vmul.f32 %v2521, %v2597
    %v2642 = vmul.f32 %v2522, %v2599
    %v2643 = vmul.f32 %v2523, %v2601
    %v2644 = vmul.f32 %v2524, %v2603
    %v2645 = vmul.f32 %v2525, %v2605
    %v2646 = vmul.f32 %v2526, %v2607
    %v2647 = vmul.f32 %v2527, %v2609
    %v2648 = vmul.f32 %v2528, %v2611
    %v2649 = vmul.f32 %v2529, %v2613
    %v2650 = vmul.f32 %v2530, %v2615
    %v2651 = vmul.f32 %v2531, %v2617
    %v2652 = vmul.f32 %v2532, %v2619
    %v2653 = vmul.f32 %v2533, %v2621
    %v2654 = vmul.f32 %v2534, %v2623
    %v2655 = vmul.f32 %v2535, %v2625
    %v2656 = vmul.f32 %v2536, %v2627
    %v2657 = vmul.f32 %v2537, %v2629
    %v2658 = vmul.f32 %v2538, %v2631
    %v2659 = vmul.f32 %v2539, %v2633
    %v2660 = vmul.f32 %v2540, %v2635
    %v2661 = vmul.f32 %v2541, %v2637
    %v2662 = vsub.f32 1.0, %v2638
    %v2663 = vsub.f32 1.0, %v2639
    %v2664 = vsub.f32 1.0, %v2640
    %v2665 = vsub.f32 1.0, %v2641
    %v2666 = vsub.f32 1.0, %v2642
    %v2667 = vsub.f32 1.0, %v2643
    %v2668 = vsub.f32 1.0, %v2644
    %v2669 = vsub.f32 1.0, %v2645
    %v2670 = vsub.f32 1.0, %v2646
    %v2671 = vsub.f32 1.0, %v2647
    %v2672 = vsub.f32 1.0, %v2648
    %v2673 = vsub.f32 1.0, %v2649
    %v2674 = vsub.f32 1.0, %v2650
    %v2675 = vsub.f32 1.0, %v2651
    %v2676 = vsub.f32 1.0, %v2652
    %v2677 = vsub.f32 1.0, %v2653
    %v2678 = vsub.f32 1.0, %v2654
    %v2679 = vsub.f32 1.0, %v2655
    %v2680 = vsub.f32 1.0, %v2656
    %v2681 = vsub.f32 1.0, %v2657
    %v2682 = vsub.f32 1.0, %v2658
    %v2683 = vsub.f32 1.0, %v2659
    %v2684 = vsub.f32 1.0, %v2660
    %v2685 = vsub.f32 1.0, %v2661
    %vm2686 = vcmp.ge.f32.partialorder %v1870, 0.0
    %vm2687 = vcmp.ge.f32.partialorder %v1871, 0.0
    %vm2688 = vcmp.ge.f32.partialorder %v1872, 0.0
    %vm2689 = vcmp.ge.f32.partialorder %v1873, 0.0
    %vm2690 = vcmp.ge.f32.partialorder %v1874, 0.0
    %vm2691 = vcmp.ge.f32.partialorder %v1875, 0.0
    %vm2692 = vcmp.ge.f32.partialorder %v1876, 0.0
    %vm2693 = vcmp.ge.f32.partialorder %v1877, 0.0
    %vm2694 = vcmp.ge.f32.partialorder %v1878, 0.0
    %vm2695 = vcmp.ge.f32.partialorder %v1879, 0.0
    %vm2696 = vcmp.ge.f32.partialorder %v1880, 0.0
    %vm2697 = vcmp.ge.f32.partialorder %v1881, 0.0
    %vm2698 = vcmp.ge.f32.partialorder %v1882, 0.0
    %vm2699 = vcmp.ge.f32.partialorder %v1883, 0.0
    %vm2700 = vcmp.ge.f32.partialorder %v1884, 0.0
    %vm2701 = vcmp.ge.f32.partialorder %v1885, 0.0
    %vm2702 = vcmp.ge.f32.partialorder %v1886, 0.0
    %vm2703 = vcmp.ge.f32.partialorder %v1887, 0.0
    %vm2704 = vcmp.ge.f32.partialorder %v1888, 0.0
    %vm2705 = vcmp.ge.f32.partialorder %v1889, 0.0
    %vm2706 = vcmp.ge.f32.partialorder %v1890, 0.0
    %vm2707 = vcmp.ge.f32.partialorder %v1891, 0.0
    %vm2708 = vcmp.ge.f32.partialorder %v1892, 0.0
    %vm2709 = vcmp.ge.f32.partialorder %v1893, 0.0
    %v2710 = vsub.f32 0.0, %v2662
    %v2711 = vsub.f32 0.0, %v2663
    %v2712 = vsub.f32 0.0, %v2664
    %v2713 = vsub.f32 0.0, %v2665
    %v2714 = vsub.f32 0.0, %v2666
    %v2715 = vsub.f32 0.0, %v2667
    %v2716 = vsub.f32 0.0, %v2668
    %v2717 = vsub.f32 0.0, %v2669
    %v2718 = vsub.f32 0.0, %v2670
    %v2719 = vsub.f32 0.0, %v2671
    %v2720 = vsub.f32 0.0, %v2672
    %v2721 = vsub.f32 0.0, %v2673
    %v2722 = vsub.f32 0.0, %v2674
    %v2723 = vsub.f32 0.0, %v2675
    %v2724 = vsub.f32 0.0, %v2676
    %v2725 = vsub.f32 0.0, %v2677
    %v2726 = vsub.f32 0.0, %v2678
    %v2727 = vsub.f32 0.0, %v2679
    %v2728 = vsub.f32 0.0, %v2680
    %v2729 = vsub.f32 0.0, %v2681
    %v2730 = vsub.f32 0.0, %v2682
    %v2731 = vsub.f32 0.0, %v2683
    %v2732 = vsub.f32 0.0, %v2684
    %v2733 = vsub.f32 0.0, %v2685
    %v2734 = vsel %vm2686, %v2662, %v2710
    %v2735 = vsel %vm2687, %v2663, %v2711
    %v2736 = vsel %vm2688, %v2664, %v2712
    %v2737 = vsel %vm2689, %v2665, %v2713
    %v2738 = vsel %vm2690, %v2666, %v2714
    %v2739 = vsel %vm2691, %v2667, %v2715
    %v2740 = vsel %vm2692, %v2668, %v2716
    %v2741 = vsel %vm2693, %v2669, %v2717
    %v2742 = vsel %vm2694, %v2670, %v2718
    %v2743 = vsel %vm2695, %v2671, %v2719
    %v2744 = vsel %vm2696, %v2672, %v2720
    %v2745 = vsel %vm2697, %v2673, %v2721
    %v2746 = vsel %vm2698, %v2674, %v2722
    %v2747 = vsel %vm2699, %v2675, %v2723
    %v2748 = vsel %vm2700, %v2676, %v2724
    %v2749 = vsel %vm2701, %v2677, %v2725
    %v2750 = vsel %vm2702, %v2678, %v2726
    %v2751 = vsel %vm2703, %v2679, %v2727
    %v2752 = vsel %vm2704, %v2680, %v2728
    %v2753 = vsel %vm2705, %v2681, %v2729
    %v2754 = vsel %vm2706, %v2682, %v2730
    %v2755 = vsel %vm2707, %v2683, %v2731
    %v2756 = vsel %vm2708, %v2684, %v2732
    %v2757 = vsel %vm2709, %v2685, %v2733
    %v2758 = vadd.f32 %v2734, 1.0
    %v2759 = vadd.f32 %v2735, 1.0
    %v2760 = vadd.f32 %v2736, 1.0
    %v2761 = vadd.f32 %v2737, 1.0
    %v2762 = vadd.f32 %v2738, 1.0
    %v2763 = vadd.f32 %v2739, 1.0
    %v2764 = vadd.f32 %v2740, 1.0
    %v2765 = vadd.f32 %v2741, 1.0
    %v2766 = vadd.f32 %v2742, 1.0
    %v2767 = vadd.f32 %v2743, 1.0
    %v2768 = vadd.f32 %v2744, 1.0
    %v2769 = vadd.f32 %v2745, 1.0
    %v2770 = vadd.f32 %v2746, 1.0
    %v2771 = vadd.f32 %v2747, 1.0
    %v2772 = vadd.f32 %v2748, 1.0
    %v2773 = vadd.f32 %v2749, 1.0
    %v2774 = vadd.f32 %v2750, 1.0
    %v2775 = vadd.f32 %v2751, 1.0
    %v2776 = vadd.f32 %v2752, 1.0
    %v2777 = vadd.f32 %v2753, 1.0
    %v2778 = vadd.f32 %v2754, 1.0
    %v2779 = vadd.f32 %v2755, 1.0
    %v2780 = vadd.f32 %v2756, 1.0
    %v2781 = vadd.f32 %v2757, 1.0
    %v2782 = vmul.f32 %v1846, %v2758
    %v2783 = vmul.f32 %v1847, %v2759
    %v2784 = vmul.f32 %v1848, %v2760
    %v2785 = vmul.f32 %v1849, %v2761
    %v2786 = vmul.f32 %v1850, %v2762
    %v2787 = vmul.f32 %v1851, %v2763
    %v2788 = vmul.f32 %v1852, %v2764
    %v2789 = vmul.f32 %v1853, %v2765
    %v2790 = vmul.f32 %v1854, %v2766
    %v2791 = vmul.f32 %v1855, %v2767
    %v2792 = vmul.f32 %v1856, %v2768
    %v2793 = vmul.f32 %v1857, %v2769
    %v2794 = vmul.f32 %v1858, %v2770
    %v2795 = vmul.f32 %v1859, %v2771
    %v2796 = vmul.f32 %v1860, %v2772
    %v2797 = vmul.f32 %v1861, %v2773
    %v2798 = vmul.f32 %v1862, %v2774
    %v2799 = vmul.f32 %v1863, %v2775
    %v2800 = vmul.f32 %v1864, %v2776
    %v2801 = vmul.f32 %v1865, %v2777
    %v2802 = vmul.f32 %v1866, %v2778
    %v2803 = vmul.f32 %v1867, %v2779
    %v2804 = vmul.f32 %v1868, %v2780
    %v2805 = vmul.f32 %v1869, %v2781
    %v2807 = vsel %vm1459, %v1542, 0
    %v2810 = vsel %vm1459, %v1543, 0
    %2812 = vmatpush.msra.mxu0 0.0
    %2813 = vmatpush.msra.mxu0 0.0
    %2814 = vmatpush.msra.mxu0 0.0
    %2815 = vmatpush.msra.mxu0 0.0
    %2816 = vmatpush.msra.mxu0 0.0
    %2817 = vmatpush.msra.mxu0 0.0
    %2818 = vmatpush.msra.mxu0 0.0
    %2819 = vmatpush.msra.mxu0 0.0
    %2820 = vmatpush.msra.mxu0 0.0
    %2821 = vmatpush.msra.mxu0 0.0
    %2822 = vmatpush.msra.mxu0 0.0
    %2823 = vmatpush.msra.mxu0 0.0
    %2824 = vmatpush.msra.mxu0 0.0
    %2825 = vmatpush.msra.mxu0 0.0
    %2826 = vmatpush.msra.mxu0 0.0
    %2827 = vmatpush.msra.mxu0 %v297
    %2828 = vmatmul.f32.gmra.mxu0 %v2807
    %v2829 = vpop.f32.mrf.mxu0
    %v2830 = vadd.f32 0.0, %v2829
    %2831 = vmatmul.f32.gmra.mxu0 %v2810
    %v2832 = vpop.f32.mrf.mxu0
    %v2833 = vadd.f32 0.0, %v2832
    %2834 = vdwg.mxu0
    %2835 = vmatpush.msra.mxu0 0.0
    %2836 = vmatpush.msra.mxu0 0.0
    %2837 = vmatpush.msra.mxu0 0.0
    %2838 = vmatpush.msra.mxu0 0.0
    %2839 = vmatpush.msra.mxu0 0.0
    %2840 = vmatpush.msra.mxu0 0.0
    %2841 = vmatpush.msra.mxu0 0.0
    %2842 = vmatpush.msra.mxu0 0.0
    %2843 = vmatpush.msra.mxu0 0.0
    %2844 = vmatpush.msra.mxu0 0.0
    %2845 = vmatpush.msra.mxu0 0.0
    %2846 = vmatpush.msra.mxu0 0.0
    %2847 = vmatpush.msra.mxu0 0.0
    %2848 = vmatpush.msra.mxu0 0.0
    %2849 = vmatpush.msra.mxu0 0.0
    %2850 = vmatpush.msra.mxu0 %v298
    %2851 = vmatmul.f32.gmra.mxu0 %v2807
    %v2852 = vpop.f32.mrf.mxu0
    %v2853 = vadd.f32 0.0, %v2852
    %2854 = vmatmul.f32.gmra.mxu0 %v2810
    %v2855 = vpop.f32.mrf.mxu0
    %v2856 = vadd.f32 0.0, %v2855
    %2857 = vdwg.mxu0
    %2858 = vmatpush.msra.mxu0 0.0
    %2859 = vmatpush.msra.mxu0 0.0
    %2860 = vmatpush.msra.mxu0 0.0
    %2861 = vmatpush.msra.mxu0 0.0
    %2862 = vmatpush.msra.mxu0 0.0
    %2863 = vmatpush.msra.mxu0 0.0
    %2864 = vmatpush.msra.mxu0 0.0
    %2865 = vmatpush.msra.mxu0 0.0
    %2866 = vmatpush.msra.mxu0 0.0
    %2867 = vmatpush.msra.mxu0 0.0
    %2868 = vmatpush.msra.mxu0 0.0
    %2869 = vmatpush.msra.mxu0 0.0
    %2870 = vmatpush.msra.mxu0 0.0
    %2871 = vmatpush.msra.mxu0 0.0
    %2872 = vmatpush.msra.mxu0 0.0
    %2873 = vmatpush.msra.mxu0 %v299
    %2874 = vmatmul.f32.gmra.mxu0 %v2807
    %v2875 = vpop.f32.mrf.mxu0
    %v2876 = vadd.f32 0.0, %v2875
    %2877 = vmatmul.f32.gmra.mxu0 %v2810
    %v2878 = vpop.f32.mrf.mxu0
    %v2879 = vadd.f32 0.0, %v2878
    %2880 = vdwg.mxu0
    %2881 = vmatpush.msra.mxu0 0.0
    %2882 = vmatpush.msra.mxu0 0.0
    %2883 = vmatpush.msra.mxu0 0.0
    %2884 = vmatpush.msra.mxu0 0.0
    %2885 = vmatpush.msra.mxu0 0.0
    %2886 = vmatpush.msra.mxu0 0.0
    %2887 = vmatpush.msra.mxu0 0.0
    %2888 = vmatpush.msra.mxu0 0.0
    %2889 = vmatpush.msra.mxu0 0.0
    %2890 = vmatpush.msra.mxu0 0.0
    %2891 = vmatpush.msra.mxu0 0.0
    %2892 = vmatpush.msra.mxu0 0.0
    %2893 = vmatpush.msra.mxu0 0.0
    %2894 = vmatpush.msra.mxu0 0.0
    %2895 = vmatpush.msra.mxu0 0.0
    %2896 = vmatpush.msra.mxu0 %v300
    %2897 = vmatmul.f32.gmra.mxu0 %v2807
    %v2898 = vpop.f32.mrf.mxu0
    %v2899 = vadd.f32 0.0, %v2898
    %2900 = vmatmul.f32.gmra.mxu0 %v2810
    %v2901 = vpop.f32.mrf.mxu0
    %v2902 = vadd.f32 0.0, %v2901
    %2903 = vdwg.mxu0
    %2904 = vmatpush.msra.mxu0 0.0
    %2905 = vmatpush.msra.mxu0 0.0
    %2906 = vmatpush.msra.mxu0 0.0
    %2907 = vmatpush.msra.mxu0 0.0
    %2908 = vmatpush.msra.mxu0 0.0
    %2909 = vmatpush.msra.mxu0 0.0
    %2910 = vmatpush.msra.mxu0 0.0
    %2911 = vmatpush.msra.mxu0 0.0
    %2912 = vmatpush.msra.mxu0 0.0
    %2913 = vmatpush.msra.mxu0 0.0
    %2914 = vmatpush.msra.mxu0 0.0
    %2915 = vmatpush.msra.mxu0 0.0
    %2916 = vmatpush.msra.mxu0 0.0
    %2917 = vmatpush.msra.mxu0 0.0
    %2918 = vmatpush.msra.mxu0 0.0
    %2919 = vmatpush.msra.mxu0 %v301
    %2920 = vmatmul.f32.gmra.mxu0 %v2807
    %v2921 = vpop.f32.mrf.mxu0
    %v2922 = vadd.f32 0.0, %v2921
    %2923 = vmatmul.f32.gmra.mxu0 %v2810
    %v2924 = vpop.f32.mrf.mxu0
    %v2925 = vadd.f32 0.0, %v2924
    %2926 = vdwg.mxu0
    %2927 = vmatpush.msra.mxu0 0.0
    %2928 = vmatpush.msra.mxu0 0.0
    %2929 = vmatpush.msra.mxu0 0.0
    %2930 = vmatpush.msra.mxu0 0.0
    %2931 = vmatpush.msra.mxu0 0.0
    %2932 = vmatpush.msra.mxu0 0.0
    %2933 = vmatpush.msra.mxu0 0.0
    %2934 = vmatpush.msra.mxu0 0.0
    %2935 = vmatpush.msra.mxu0 0.0
    %2936 = vmatpush.msra.mxu0 0.0
    %2937 = vmatpush.msra.mxu0 0.0
    %2938 = vmatpush.msra.mxu0 0.0
    %2939 = vmatpush.msra.mxu0 0.0
    %2940 = vmatpush.msra.mxu0 0.0
    %2941 = vmatpush.msra.mxu0 0.0
    %2942 = vmatpush.msra.mxu0 %v302
    %2943 = vmatmul.f32.gmra.mxu0 %v2807
    %v2944 = vpop.f32.mrf.mxu0
    %v2945 = vadd.f32 0.0, %v2944
    %2946 = vmatmul.f32.gmra.mxu0 %v2810
    %v2947 = vpop.f32.mrf.mxu0
    %v2948 = vadd.f32 0.0, %v2947
    %2949 = vdwg.mxu0
    %2950 = vmatpush.msra.mxu0 0.0
    %2951 = vmatpush.msra.mxu0 0.0
    %2952 = vmatpush.msra.mxu0 0.0
    %2953 = vmatpush.msra.mxu0 0.0
    %2954 = vmatpush.msra.mxu0 0.0
    %2955 = vmatpush.msra.mxu0 0.0
    %2956 = vmatpush.msra.mxu0 0.0
    %2957 = vmatpush.msra.mxu0 0.0
    %2958 = vmatpush.msra.mxu0 0.0
    %2959 = vmatpush.msra.mxu0 0.0
    %2960 = vmatpush.msra.mxu0 0.0
    %2961 = vmatpush.msra.mxu0 0.0
    %2962 = vmatpush.msra.mxu0 0.0
    %2963 = vmatpush.msra.mxu0 0.0
    %2964 = vmatpush.msra.mxu0 0.0
    %2965 = vmatpush.msra.mxu0 %v303
    %2966 = vmatmul.f32.gmra.mxu0 %v2807
    %v2967 = vpop.f32.mrf.mxu0
    %v2968 = vadd.f32 0.0, %v2967
    %2969 = vmatmul.f32.gmra.mxu0 %v2810
    %v2970 = vpop.f32.mrf.mxu0
    %v2971 = vadd.f32 0.0, %v2970
    %2972 = vdwg.mxu0
    %2973 = vmatpush.msra.mxu0 0.0
    %2974 = vmatpush.msra.mxu0 0.0
    %2975 = vmatpush.msra.mxu0 0.0
    %2976 = vmatpush.msra.mxu0 0.0
    %2977 = vmatpush.msra.mxu0 0.0
    %2978 = vmatpush.msra.mxu0 0.0
    %2979 = vmatpush.msra.mxu0 0.0
    %2980 = vmatpush.msra.mxu0 0.0
    %2981 = vmatpush.msra.mxu0 0.0
    %2982 = vmatpush.msra.mxu0 0.0
    %2983 = vmatpush.msra.mxu0 0.0
    %2984 = vmatpush.msra.mxu0 0.0
    %2985 = vmatpush.msra.mxu0 0.0
    %2986 = vmatpush.msra.mxu0 0.0
    %2987 = vmatpush.msra.mxu0 0.0
    %2988 = vmatpush.msra.mxu0 %v304
    %2989 = vmatmul.f32.gmra.mxu0 %v2807
    %v2990 = vpop.f32.mrf.mxu0
    %v2991 = vadd.f32 0.0, %v2990
    %2992 = vmatmul.f32.gmra.mxu0 %v2810
    %v2993 = vpop.f32.mrf.mxu0
    %v2994 = vadd.f32 0.0, %v2993
    %2995 = vdwg.mxu0
    %2996 = vmatpush.msra.mxu0 0.0
    %2997 = vmatpush.msra.mxu0 0.0
    %2998 = vmatpush.msra.mxu0 0.0
    %2999 = vmatpush.msra.mxu0 0.0
    %3000 = vmatpush.msra.mxu0 0.0
    %3001 = vmatpush.msra.mxu0 0.0
    %3002 = vmatpush.msra.mxu0 0.0
    %3003 = vmatpush.msra.mxu0 0.0
    %3004 = vmatpush.msra.mxu0 0.0
    %3005 = vmatpush.msra.mxu0 0.0
    %3006 = vmatpush.msra.mxu0 0.0
    %3007 = vmatpush.msra.mxu0 0.0
    %3008 = vmatpush.msra.mxu0 0.0
    %3009 = vmatpush.msra.mxu0 0.0
    %3010 = vmatpush.msra.mxu0 0.0
    %3011 = vmatpush.msra.mxu0 %v305
    %3012 = vmatmul.f32.gmra.mxu0 %v2807
    %v3013 = vpop.f32.mrf.mxu0
    %v3014 = vadd.f32 0.0, %v3013
    %3015 = vmatmul.f32.gmra.mxu0 %v2810
    %v3016 = vpop.f32.mrf.mxu0
    %v3017 = vadd.f32 0.0, %v3016
    %3018 = vdwg.mxu0
    %3019 = vmatpush.msra.mxu0 0.0
    %3020 = vmatpush.msra.mxu0 0.0
    %3021 = vmatpush.msra.mxu0 0.0
    %3022 = vmatpush.msra.mxu0 0.0
    %3023 = vmatpush.msra.mxu0 0.0
    %3024 = vmatpush.msra.mxu0 0.0
    %3025 = vmatpush.msra.mxu0 0.0
    %3026 = vmatpush.msra.mxu0 0.0
    %3027 = vmatpush.msra.mxu0 0.0
    %3028 = vmatpush.msra.mxu0 0.0
    %3029 = vmatpush.msra.mxu0 0.0
    %3030 = vmatpush.msra.mxu0 0.0
    %3031 = vmatpush.msra.mxu0 0.0
    %3032 = vmatpush.msra.mxu0 0.0
    %3033 = vmatpush.msra.mxu0 0.0
    %3034 = vmatpush.msra.mxu0 %v306
    %3035 = vmatmul.f32.gmra.mxu0 %v2807
    %v3036 = vpop.f32.mrf.mxu0
    %v3037 = vadd.f32 0.0, %v3036
    %3038 = vmatmul.f32.gmra.mxu0 %v2810
    %v3039 = vpop.f32.mrf.mxu0
    %v3040 = vadd.f32 0.0, %v3039
    %3041 = vdwg.mxu0
    %3042 = vmatpush.msra.mxu0 0.0
    %3043 = vmatpush.msra.mxu0 0.0
    %3044 = vmatpush.msra.mxu0 0.0
    %3045 = vmatpush.msra.mxu0 0.0
    %3046 = vmatpush.msra.mxu0 0.0
    %3047 = vmatpush.msra.mxu0 0.0
    %3048 = vmatpush.msra.mxu0 0.0
    %3049 = vmatpush.msra.mxu0 0.0
    %3050 = vmatpush.msra.mxu0 0.0
    %3051 = vmatpush.msra.mxu0 0.0
    %3052 = vmatpush.msra.mxu0 0.0
    %3053 = vmatpush.msra.mxu0 0.0
    %3054 = vmatpush.msra.mxu0 0.0
    %3055 = vmatpush.msra.mxu0 0.0
    %3056 = vmatpush.msra.mxu0 0.0
    %3057 = vmatpush.msra.mxu0 %v307
    %3058 = vmatmul.f32.gmra.mxu0 %v2807
    %v3059 = vpop.f32.mrf.mxu0
    %v3060 = vadd.f32 0.0, %v3059
    %3061 = vmatmul.f32.gmra.mxu0 %v2810
    %v3062 = vpop.f32.mrf.mxu0
    %v3063 = vadd.f32 0.0, %v3062
    %3064 = vdwg.mxu0
    %3065 = vmatpush.msra.mxu0 0.0
    %3066 = vmatpush.msra.mxu0 0.0
    %3067 = vmatpush.msra.mxu0 0.0
    %3068 = vmatpush.msra.mxu0 0.0
    %3069 = vmatpush.msra.mxu0 0.0
    %3070 = vmatpush.msra.mxu0 0.0
    %3071 = vmatpush.msra.mxu0 0.0
    %3072 = vmatpush.msra.mxu0 0.0
    %3073 = vmatpush.msra.mxu0 0.0
    %3074 = vmatpush.msra.mxu0 0.0
    %3075 = vmatpush.msra.mxu0 0.0
    %3076 = vmatpush.msra.mxu0 0.0
    %3077 = vmatpush.msra.mxu0 0.0
    %3078 = vmatpush.msra.mxu0 0.0
    %3079 = vmatpush.msra.mxu0 0.0
    %3080 = vmatpush.msra.mxu0 %v308
    %3081 = vmatmul.f32.gmra.mxu0 %v2807
    %v3082 = vpop.f32.mrf.mxu0
    %v3083 = vadd.f32 0.0, %v3082
    %3084 = vmatmul.f32.gmra.mxu0 %v2810
    %v3085 = vpop.f32.mrf.mxu0
    %v3086 = vadd.f32 0.0, %v3085
    %3087 = vdwg.mxu0
    %v3088 = vmul.f32 %v2782, %v2830
    %v3089 = vmul.f32 %v2783, %v2853
    %v3090 = vmul.f32 %v2784, %v2876
    %v3091 = vmul.f32 %v2785, %v2899
    %v3092 = vmul.f32 %v2786, %v2922
    %v3093 = vmul.f32 %v2787, %v2945
    %v3094 = vmul.f32 %v2788, %v2968
    %v3095 = vmul.f32 %v2789, %v2991
    %v3096 = vmul.f32 %v2790, %v3014
    %v3097 = vmul.f32 %v2791, %v3037
    %v3098 = vmul.f32 %v2792, %v3060
    %v3099 = vmul.f32 %v2793, %v3083
    %v3100 = vmul.f32 %v2794, %v2833
    %v3101 = vmul.f32 %v2795, %v2856
    %v3102 = vmul.f32 %v2796, %v2879
    %v3103 = vmul.f32 %v2797, %v2902
    %v3104 = vmul.f32 %v2798, %v2925
    %v3105 = vmul.f32 %v2799, %v2948
    %v3106 = vmul.f32 %v2800, %v2971
    %v3107 = vmul.f32 %v2801, %v2994
    %v3108 = vmul.f32 %v2802, %v3017
    %v3109 = vmul.f32 %v2803, %v3040
    %v3110 = vmul.f32 %v2804, %v3063
    %v3111 = vmul.f32 %v2805, %v3086
    %3112 = vmatpush.msra.mxu0 0.0
    %3113 = vmatpush.msra.mxu0 0.0
    %3114 = vmatpush.msra.mxu0 0.0
    %3115 = vmatpush.msra.mxu0 0.0
    %3116 = vmatpush.msra.mxu0 0.0
    %3117 = vmatpush.msra.mxu0 0.0
    %3118 = vmatpush.msra.mxu0 0.0
    %3119 = vmatpush.msra.mxu0 0.0
    %3120 = vmatpush.msra.mxu0 0.0
    %3121 = vmatpush.msra.mxu0 0.0
    %3122 = vmatpush.msra.mxu0 0.0
    %3123 = vmatpush.msra.mxu0 0.0
    %3124 = vmatpush.msra.mxu0 0.0
    %3125 = vmatpush.msra.mxu0 0.0
    %3126 = vmatpush.msra.mxu0 0.0
    %3127 = vmatpush.msra.mxu0 %v273
    %3128 = vmatmul.f32.gmra.mxu0 %v2807
    %v3129 = vpop.f32.mrf.mxu0
    %v3130 = vadd.f32 0.0, %v3129
    %3131 = vmatmul.f32.gmra.mxu0 %v2810
    %v3132 = vpop.f32.mrf.mxu0
    %v3133 = vadd.f32 0.0, %v3132
    %3134 = vdwg.mxu0
    %3135 = vmatpush.msra.mxu0 %v96
    %3136 = vmatpush.msra.mxu0 %v95
    %3137 = vmatpush.msra.mxu0 %v94
    %3138 = vmatpush.msra.mxu0 %v93
    %3139 = vmatpush.msra.mxu0 %v92
    %3140 = vmatpush.msra.mxu0 %v91
    %3141 = vmatpush.msra.mxu0 %v90
    %3142 = vmatpush.msra.mxu0 %v89
    %3143 = vmatpush.msra.mxu0 %v88
    %3144 = vmatpush.msra.mxu0 %v87
    %3145 = vmatpush.msra.mxu0 %v86
    %3146 = vmatpush.msra.mxu0 %v85
    %3147 = vmatpush.msra.mxu0 %v84
    %3148 = vmatpush.msra.mxu0 %v83
    %3149 = vmatpush.msra.mxu0 %v82
    %3150 = vmatpush.msra.mxu0 %v81
    %3151 = vmatmul.f32.gmra.mxu0 %v3088
    %v3152 = vpop.f32.mrf.mxu0
    %v3153 = vadd.f32 %v3130, %v3152
    %3154 = vmatmul.f32.gmra.mxu0 %v3100
    %v3155 = vpop.f32.mrf.mxu0
    %v3156 = vadd.f32 %v3133, %v3155
    %3157 = vdwg.mxu0
    %3158 = vmatpush.msra.mxu0 %v112
    %3159 = vmatpush.msra.mxu0 %v111
    %3160 = vmatpush.msra.mxu0 %v110
    %3161 = vmatpush.msra.mxu0 %v109
    %3162 = vmatpush.msra.mxu0 %v108
    %3163 = vmatpush.msra.mxu0 %v107
    %3164 = vmatpush.msra.mxu0 %v106
    %3165 = vmatpush.msra.mxu0 %v105
    %3166 = vmatpush.msra.mxu0 %v104
    %3167 = vmatpush.msra.mxu0 %v103
    %3168 = vmatpush.msra.mxu0 %v102
    %3169 = vmatpush.msra.mxu0 %v101
    %3170 = vmatpush.msra.mxu0 %v100
    %3171 = vmatpush.msra.mxu0 %v99
    %3172 = vmatpush.msra.mxu0 %v98
    %3173 = vmatpush.msra.mxu0 %v97
    %3174 = vmatmul.f32.gmra.mxu0 %v3089
    %v3175 = vpop.f32.mrf.mxu0
    %v3176 = vadd.f32 %v3153, %v3175
    %3177 = vmatmul.f32.gmra.mxu0 %v3101
    %v3178 = vpop.f32.mrf.mxu0
    %v3179 = vadd.f32 %v3156, %v3178
    %3180 = vdwg.mxu0
    %3181 = vmatpush.msra.mxu0 %v128
    %3182 = vmatpush.msra.mxu0 %v127
    %3183 = vmatpush.msra.mxu0 %v126
    %3184 = vmatpush.msra.mxu0 %v125
    %3185 = vmatpush.msra.mxu0 %v124
    %3186 = vmatpush.msra.mxu0 %v123
    %3187 = vmatpush.msra.mxu0 %v122
    %3188 = vmatpush.msra.mxu0 %v121
    %3189 = vmatpush.msra.mxu0 %v120
    %3190 = vmatpush.msra.mxu0 %v119
    %3191 = vmatpush.msra.mxu0 %v118
    %3192 = vmatpush.msra.mxu0 %v117
    %3193 = vmatpush.msra.mxu0 %v116
    %3194 = vmatpush.msra.mxu0 %v115
    %3195 = vmatpush.msra.mxu0 %v114
    %3196 = vmatpush.msra.mxu0 %v113
    %3197 = vmatmul.f32.gmra.mxu0 %v3090
    %v3198 = vpop.f32.mrf.mxu0
    %v3199 = vadd.f32 %v3176, %v3198
    %3200 = vmatmul.f32.gmra.mxu0 %v3102
    %v3201 = vpop.f32.mrf.mxu0
    %v3202 = vadd.f32 %v3179, %v3201
    %3203 = vdwg.mxu0
    %3204 = vmatpush.msra.mxu0 %v144
    %3205 = vmatpush.msra.mxu0 %v143
    %3206 = vmatpush.msra.mxu0 %v142
    %3207 = vmatpush.msra.mxu0 %v141
    %3208 = vmatpush.msra.mxu0 %v140
    %3209 = vmatpush.msra.mxu0 %v139
    %3210 = vmatpush.msra.mxu0 %v138
    %3211 = vmatpush.msra.mxu0 %v137
    %3212 = vmatpush.msra.mxu0 %v136
    %3213 = vmatpush.msra.mxu0 %v135
    %3214 = vmatpush.msra.mxu0 %v134
    %3215 = vmatpush.msra.mxu0 %v133
    %3216 = vmatpush.msra.mxu0 %v132
    %3217 = vmatpush.msra.mxu0 %v131
    %3218 = vmatpush.msra.mxu0 %v130
    %3219 = vmatpush.msra.mxu0 %v129
    %3220 = vmatmul.f32.gmra.mxu0 %v3091
    %v3221 = vpop.f32.mrf.mxu0
    %v3222 = vadd.f32 %v3199, %v3221
    %3223 = vmatmul.f32.gmra.mxu0 %v3103
    %v3224 = vpop.f32.mrf.mxu0
    %v3225 = vadd.f32 %v3202, %v3224
    %3226 = vdwg.mxu0
    %3227 = vmatpush.msra.mxu0 %v160
    %3228 = vmatpush.msra.mxu0 %v159
    %3229 = vmatpush.msra.mxu0 %v158
    %3230 = vmatpush.msra.mxu0 %v157
    %3231 = vmatpush.msra.mxu0 %v156
    %3232 = vmatpush.msra.mxu0 %v155
    %3233 = vmatpush.msra.mxu0 %v154
    %3234 = vmatpush.msra.mxu0 %v153
    %3235 = vmatpush.msra.mxu0 %v152
    %3236 = vmatpush.msra.mxu0 %v151
    %3237 = vmatpush.msra.mxu0 %v150
    %3238 = vmatpush.msra.mxu0 %v149
    %3239 = vmatpush.msra.mxu0 %v148
    %3240 = vmatpush.msra.mxu0 %v147
    %3241 = vmatpush.msra.mxu0 %v146
    %3242 = vmatpush.msra.mxu0 %v145
    %3243 = vmatmul.f32.gmra.mxu0 %v3092
    %v3244 = vpop.f32.mrf.mxu0
    %v3245 = vadd.f32 %v3222, %v3244
    %3246 = vmatmul.f32.gmra.mxu0 %v3104
    %v3247 = vpop.f32.mrf.mxu0
    %v3248 = vadd.f32 %v3225, %v3247
    %3249 = vdwg.mxu0
    %3250 = vmatpush.msra.mxu0 %v176
    %3251 = vmatpush.msra.mxu0 %v175
    %3252 = vmatpush.msra.mxu0 %v174
    %3253 = vmatpush.msra.mxu0 %v173
    %3254 = vmatpush.msra.mxu0 %v172
    %3255 = vmatpush.msra.mxu0 %v171
    %3256 = vmatpush.msra.mxu0 %v170
    %3257 = vmatpush.msra.mxu0 %v169
    %3258 = vmatpush.msra.mxu0 %v168
    %3259 = vmatpush.msra.mxu0 %v167
    %3260 = vmatpush.msra.mxu0 %v166
    %3261 = vmatpush.msra.mxu0 %v165
    %3262 = vmatpush.msra.mxu0 %v164
    %3263 = vmatpush.msra.mxu0 %v163
    %3264 = vmatpush.msra.mxu0 %v162
    %3265 = vmatpush.msra.mxu0 %v161
    %3266 = vmatmul.f32.gmra.mxu0 %v3093
    %v3267 = vpop.f32.mrf.mxu0
    %v3268 = vadd.f32 %v3245, %v3267
    %3269 = vmatmul.f32.gmra.mxu0 %v3105
    %v3270 = vpop.f32.mrf.mxu0
    %v3271 = vadd.f32 %v3248, %v3270
    %3272 = vdwg.mxu0
    %3273 = vmatpush.msra.mxu0 %v192
    %3274 = vmatpush.msra.mxu0 %v191
    %3275 = vmatpush.msra.mxu0 %v190
    %3276 = vmatpush.msra.mxu0 %v189
    %3277 = vmatpush.msra.mxu0 %v188
    %3278 = vmatpush.msra.mxu0 %v187
    %3279 = vmatpush.msra.mxu0 %v186
    %3280 = vmatpush.msra.mxu0 %v185
    %3281 = vmatpush.msra.mxu0 %v184
    %3282 = vmatpush.msra.mxu0 %v183
    %3283 = vmatpush.msra.mxu0 %v182
    %3284 = vmatpush.msra.mxu0 %v181
    %3285 = vmatpush.msra.mxu0 %v180
    %3286 = vmatpush.msra.mxu0 %v179
    %3287 = vmatpush.msra.mxu0 %v178
    %3288 = vmatpush.msra.mxu0 %v177
    %3289 = vmatmul.f32.gmra.mxu0 %v3094
    %v3290 = vpop.f32.mrf.mxu0
    %v3291 = vadd.f32 %v3268, %v3290
    %3292 = vmatmul.f32.gmra.mxu0 %v3106
    %v3293 = vpop.f32.mrf.mxu0
    %v3294 = vadd.f32 %v3271, %v3293
    %3295 = vdwg.mxu0
    %3296 = vmatpush.msra.mxu0 %v208
    %3297 = vmatpush.msra.mxu0 %v207
    %3298 = vmatpush.msra.mxu0 %v206
    %3299 = vmatpush.msra.mxu0 %v205
    %3300 = vmatpush.msra.mxu0 %v204
    %3301 = vmatpush.msra.mxu0 %v203
    %3302 = vmatpush.msra.mxu0 %v202
    %3303 = vmatpush.msra.mxu0 %v201
    %3304 = vmatpush.msra.mxu0 %v200
    %3305 = vmatpush.msra.mxu0 %v199
    %3306 = vmatpush.msra.mxu0 %v198
    %3307 = vmatpush.msra.mxu0 %v197
    %3308 = vmatpush.msra.mxu0 %v196
    %3309 = vmatpush.msra.mxu0 %v195
    %3310 = vmatpush.msra.mxu0 %v194
    %3311 = vmatpush.msra.mxu0 %v193
    %3312 = vmatmul.f32.gmra.mxu0 %v3095
    %v3313 = vpop.f32.mrf.mxu0
    %v3314 = vadd.f32 %v3291, %v3313
    %3315 = vmatmul.f32.gmra.mxu0 %v3107
    %v3316 = vpop.f32.mrf.mxu0
    %v3317 = vadd.f32 %v3294, %v3316
    %3318 = vdwg.mxu0
    %3319 = vmatpush.msra.mxu0 %v224
    %3320 = vmatpush.msra.mxu0 %v223
    %3321 = vmatpush.msra.mxu0 %v222
    %3322 = vmatpush.msra.mxu0 %v221
    %3323 = vmatpush.msra.mxu0 %v220
    %3324 = vmatpush.msra.mxu0 %v219
    %3325 = vmatpush.msra.mxu0 %v218
    %3326 = vmatpush.msra.mxu0 %v217
    %3327 = vmatpush.msra.mxu0 %v216
    %3328 = vmatpush.msra.mxu0 %v215
    %3329 = vmatpush.msra.mxu0 %v214
    %3330 = vmatpush.msra.mxu0 %v213
    %3331 = vmatpush.msra.mxu0 %v212
    %3332 = vmatpush.msra.mxu0 %v211
    %3333 = vmatpush.msra.mxu0 %v210
    %3334 = vmatpush.msra.mxu0 %v209
    %3335 = vmatmul.f32.gmra.mxu0 %v3096
    %v3336 = vpop.f32.mrf.mxu0
    %v3337 = vadd.f32 %v3314, %v3336
    %3338 = vmatmul.f32.gmra.mxu0 %v3108
    %v3339 = vpop.f32.mrf.mxu0
    %v3340 = vadd.f32 %v3317, %v3339
    %3341 = vdwg.mxu0
    %3342 = vmatpush.msra.mxu0 %v240
    %3343 = vmatpush.msra.mxu0 %v239
    %3344 = vmatpush.msra.mxu0 %v238
    %3345 = vmatpush.msra.mxu0 %v237
    %3346 = vmatpush.msra.mxu0 %v236
    %3347 = vmatpush.msra.mxu0 %v235
    %3348 = vmatpush.msra.mxu0 %v234
    %3349 = vmatpush.msra.mxu0 %v233
    %3350 = vmatpush.msra.mxu0 %v232
    %3351 = vmatpush.msra.mxu0 %v231
    %3352 = vmatpush.msra.mxu0 %v230
    %3353 = vmatpush.msra.mxu0 %v229
    %3354 = vmatpush.msra.mxu0 %v228
    %3355 = vmatpush.msra.mxu0 %v227
    %3356 = vmatpush.msra.mxu0 %v226
    %3357 = vmatpush.msra.mxu0 %v225
    %3358 = vmatmul.f32.gmra.mxu0 %v3097
    %v3359 = vpop.f32.mrf.mxu0
    %v3360 = vadd.f32 %v3337, %v3359
    %3361 = vmatmul.f32.gmra.mxu0 %v3109
    %v3362 = vpop.f32.mrf.mxu0
    %v3363 = vadd.f32 %v3340, %v3362
    %3364 = vdwg.mxu0
    %3365 = vmatpush.msra.mxu0 %v256
    %3366 = vmatpush.msra.mxu0 %v255
    %3367 = vmatpush.msra.mxu0 %v254
    %3368 = vmatpush.msra.mxu0 %v253
    %3369 = vmatpush.msra.mxu0 %v252
    %3370 = vmatpush.msra.mxu0 %v251
    %3371 = vmatpush.msra.mxu0 %v250
    %3372 = vmatpush.msra.mxu0 %v249
    %3373 = vmatpush.msra.mxu0 %v248
    %3374 = vmatpush.msra.mxu0 %v247
    %3375 = vmatpush.msra.mxu0 %v246
    %3376 = vmatpush.msra.mxu0 %v245
    %3377 = vmatpush.msra.mxu0 %v244
    %3378 = vmatpush.msra.mxu0 %v243
    %3379 = vmatpush.msra.mxu0 %v242
    %3380 = vmatpush.msra.mxu0 %v241
    %3381 = vmatmul.f32.gmra.mxu0 %v3098
    %v3382 = vpop.f32.mrf.mxu0
    %v3383 = vadd.f32 %v3360, %v3382
    %3384 = vmatmul.f32.gmra.mxu0 %v3110
    %v3385 = vpop.f32.mrf.mxu0
    %v3386 = vadd.f32 %v3363, %v3385
    %3387 = vdwg.mxu0
    %3388 = vmatpush.msra.mxu0 %v272
    %3389 = vmatpush.msra.mxu0 %v271
    %3390 = vmatpush.msra.mxu0 %v270
    %3391 = vmatpush.msra.mxu0 %v269
    %3392 = vmatpush.msra.mxu0 %v268
    %3393 = vmatpush.msra.mxu0 %v267
    %3394 = vmatpush.msra.mxu0 %v266
    %3395 = vmatpush.msra.mxu0 %v265
    %3396 = vmatpush.msra.mxu0 %v264
    %3397 = vmatpush.msra.mxu0 %v263
    %3398 = vmatpush.msra.mxu0 %v262
    %3399 = vmatpush.msra.mxu0 %v261
    %3400 = vmatpush.msra.mxu0 %v260
    %3401 = vmatpush.msra.mxu0 %v259
    %3402 = vmatpush.msra.mxu0 %v258
    %3403 = vmatpush.msra.mxu0 %v257
    %3404 = vmatmul.f32.gmra.mxu0 %v3099
    %v3405 = vpop.f32.mrf.mxu0
    %v3406 = vadd.f32 %v3383, %v3405
    %3407 = vmatmul.f32.gmra.mxu0 %v3111
    %v3408 = vpop.f32.mrf.mxu0
    %v3409 = vadd.f32 %v3386, %v3408
    %3410 = vdwg.mxu0
    %v3411 = vadd.f32 %v1370, %v3406
    %v3412 = vadd.f32 %v1371, %v3409
    %v3413 = vld [vmem:[%s1 + $0x920] sm:$0xff]
    %v3414 = vld [vmem:[%s1 + $0x928] sm:$0xff]
    %v3415 = vld [vmem:[%s1 + $0x930] sm:$0xff]
    %v3416 = vld [vmem:[%s1 + $0x938] sm:$0xff]
    %v3417 = vld [vmem:[%s1 + $0x940] sm:$0xff]
    %v3418 = vld [vmem:[%s1 + $0x948] sm:$0xff]
    %v3419 = vld [vmem:[%s1 + $0x950] sm:$0xff]
    %v3420 = vld [vmem:[%s1 + $0x958] sm:$0xff]
    %v3421 = vld [vmem:[%s1 + $0x960] sm:$0xff]
    %v3422 = vld [vmem:[%s1 + $0x968] sm:$0xff]
    %v3423 = vld [vmem:[%s1 + $0x970] sm:$0xff]
    %v3424 = vld [vmem:[%s1 + $0x978] sm:$0xff]
    %v3425 = vld [vmem:[%s1 + $0x980] sm:$0xff]
    %v3426 = vld [vmem:[%s1 + $0x988] sm:$0xff]
    %v3427 = vld [vmem:[%s1 + $0x990] sm:$0xff]
    %v3428 = vld [vmem:[%s1 + $0x998] sm:$0xff]
    %v3429 = vld [vmem:[%s1 + $0x9a0] sm:$0xff]
    %v3430 = vld [vmem:[%s1 + $0x9a8] sm:$0xff]
    %v3431 = vld [vmem:[%s1 + $0x760] sm:$0xff]
    %v3432 = vld [vmem:[%s1 + $0x768] sm:$0xff]
    %v3433 = vld [vmem:[%s1 + $0x770] sm:$0xff]
    %v3434 = vld [vmem:[%s1 + $0x778] sm:$0xff]
    %v3435 = vld [vmem:[%s1 + $0x780] sm:$0xff]
    %v3436 = vld [vmem:[%s1 + $0x788] sm:$0xff]
    %v3437 = vld [vmem:[%s1 + $0x790] sm:$0xff]
    %v3438 = vld [vmem:[%s1 + $0x798] sm:$0xff]
    %v3439 = vperm.slane %v274, 0
    %v3441 = vsel %vm446, %v3411, 0
    %v3444 = vsel %vm446, %v3412, 0
    %3446 = vmatpush.msra.mxu0 0.0
    %3447 = vmatpush.msra.mxu0 0.0
    %3448 = vmatpush.msra.mxu0 0.0
    %3449 = vmatpush.msra.mxu0 0.0
    %3450 = vmatpush.msra.mxu0 0.0
    %3451 = vmatpush.msra.mxu0 0.0
    %3452 = vmatpush.msra.mxu0 0.0
    %3453 = vmatpush.msra.mxu0 0.0
    %3454 = vmatpush.msra.mxu0 0.0
    %3455 = vmatpush.msra.mxu0 0.0
    %3456 = vmatpush.msra.mxu0 %v3418
    %3457 = vmatpush.msra.mxu0 %v3417
    %3458 = vmatpush.msra.mxu0 %v3416
    %3459 = vmatpush.msra.mxu0 %v3415
    %3460 = vmatpush.msra.mxu0 %v3414
    %3461 = vmatpush.msra.mxu0 %v3413
    %3462 = vmatmul.f32.gmra.mxu0 %v3441
    %v3463 = vpop.f32.mrf.mxu0
    %v3464 = vadd.f32 %v3439, %v3463
    %3465 = vmatmul.f32.gmra.mxu0 %v3444
    %v3466 = vpop.f32.mrf.mxu0
    %v3467 = vadd.f32 %v3439, %v3466
    %3468 = vdwg.mxu0
    %3469 = vmatpush.msra.mxu0 0.0
    %3470 = vmatpush.msra.mxu0 0.0
    %3471 = vmatpush.msra.mxu0 0.0
    %3472 = vmatpush.msra.mxu0 0.0
    %3473 = vmatpush.msra.mxu0 0.0
    %3474 = vmatpush.msra.mxu0 0.0
    %3475 = vmatpush.msra.mxu0 0.0
    %3476 = vmatpush.msra.mxu0 0.0
    %3477 = vmatpush.msra.mxu0 0.0
    %3478 = vmatpush.msra.mxu0 0.0
    %3479 = vmatpush.msra.mxu0 0.0
    %3480 = vmatpush.msra.mxu0 0.0
    %3481 = vmatpush.msra.mxu0 0.0
    %3482 = vmatpush.msra.mxu0 0.0
    %3483 = vmatpush.msra.mxu0 %v3467
    %3484 = vmatpush.msra.mxu0 %v3464
    %3485 = vmatmul.f32.gmra.mxu0 %v592
    %v3486 = vpop.f32.mrf.mxu0
    %v3487 = vadd.f32 0.0, %v3486
    %3488 = vmatmul.f32.gmra.mxu0 %v595
    %v3489 = vpop.f32.mrf.mxu0
    %v3490 = vadd.f32 0.0, %v3489
    %3491 = vmatmul.f32.gmra.mxu0 %v598
    %v3492 = vpop.f32.mrf.mxu0
    %v3493 = vadd.f32 0.0, %v3492
    %3494 = vmatmul.f32.gmra.mxu0 %v601
    %v3495 = vpop.f32.mrf.mxu0
    %v3496 = vadd.f32 0.0, %v3495
    %3497 = vmatmul.f32.gmra.mxu0 %v604
    %v3498 = vpop.f32.mrf.mxu0
    %v3499 = vadd.f32 0.0, %v3498
    %3500 = vmatmul.f32.gmra.mxu0 %v607
    %v3501 = vpop.f32.mrf.mxu0
    %v3502 = vadd.f32 0.0, %v3501
    %3503 = vmatmul.f32.gmra.mxu0 %v610
    %v3504 = vpop.f32.mrf.mxu0
    %v3505 = vadd.f32 0.0, %v3504
    %3506 = vmatmul.f32.gmra.mxu0 %v613
    %v3507 = vpop.f32.mrf.mxu0
    %v3508 = vadd.f32 0.0, %v3507
    %3509 = vmatmul.f32.gmra.mxu0 %v616
    %v3510 = vpop.f32.mrf.mxu0
    %v3511 = vadd.f32 0.0, %v3510
    %3512 = vmatmul.f32.gmra.mxu0 %v619
    %v3513 = vpop.f32.mrf.mxu0
    %v3514 = vadd.f32 0.0, %v3513
    %3515 = vmatmul.f32.gmra.mxu0 %v622
    %v3516 = vpop.f32.mrf.mxu0
    %v3517 = vadd.f32 0.0, %v3516
    %3518 = vmatmul.f32.gmra.mxu0 %v625
    %v3519 = vpop.f32.mrf.mxu0
    %v3520 = vadd.f32 0.0, %v3519
    %3521 = vmatmul.f32.gmra.mxu0 %v628
    %v3522 = vpop.f32.mrf.mxu0
    %v3523 = vadd.f32 0.0, %v3522
    %3524 = vmatmul.f32.gmra.mxu0 %v631
    %v3525 = vpop.f32.mrf.mxu0
    %v3526 = vadd.f32 0.0, %v3525
    %3527 = vmatmul.f32.gmra.mxu0 %v634
    %v3528 = vpop.f32.mrf.mxu0
    %v3529 = vadd.f32 0.0, %v3528
    %3530 = vmatmul.f32.gmra.mxu0 %v637
    %v3531 = vpop.f32.mrf.mxu0
    %v3532 = vadd.f32 0.0, %v3531
    %3533 = vdwg.mxu0
    %v3534 = vmul.f32 %v3487, %v40
    %v3535 = vmul.f32 %v3490, %v41
    %v3536 = vmul.f32 %v3493, %v42
    %v3537 = vmul.f32 %v3496, %v43
    %v3538 = vmul.f32 %v3499, %v44
    %v3539 = vmul.f32 %v3502, %v45
    %v3540 = vmul.f32 %v3505, %v46
    %v3541 = vmul.f32 %v3508, %v47
    %v3542 = vmul.f32 %v3511, %v48
    %v3543 = vmul.f32 %v3514, %v49
    %v3544 = vmul.f32 %v3517, %v50
    %v3545 = vmul.f32 %v3520, %v51
    %v3546 = vmul.f32 %v3523, %v52
    %v3547 = vmul.f32 %v3526, %v53
    %v3548 = vmul.f32 %v3529, %v54
    %v3549 = vmul.f32 %v3532, %v55
    %v3550 = vld [vmem:[%s7] sm:$0xff]
    %v3551 = vld [vmem:[%s7 + $0x8] sm:$0xff]
    %v3552 = vld [vmem:[%s7 + $0x10] sm:$0xff]
    %v3553 = vld [vmem:[%s7 + $0x18] sm:$0xff]
    %v3554 = vld [vmem:[%s7 + $0x20] sm:$0xff]
    %v3555 = vld [vmem:[%s7 + $0x28] sm:$0xff]
    %v3557 = vsel %vm446, %v3534, 0
    %v3560 = vsel %vm446, %v3535, 0
    %v3563 = vsel %vm446, %v3536, 0
    %v3566 = vsel %vm446, %v3537, 0
    %v3569 = vsel %vm446, %v3538, 0
    %v3572 = vsel %vm446, %v3539, 0
    %v3575 = vsel %vm446, %v3540, 0
    %v3578 = vsel %vm446, %v3541, 0
    %v3581 = vsel %vm446, %v3542, 0
    %v3584 = vsel %vm446, %v3543, 0
    %v3587 = vsel %vm446, %v3544, 0
    %v3590 = vsel %vm446, %v3545, 0
    %v3593 = vsel %vm446, %v3546, 0
    %v3596 = vsel %vm446, %v3547, 0
    %v3599 = vsel %vm446, %v3548, 0
    %v3602 = vsel %vm446, %v3549, 0
    %3604 = vmatpush.msra.mxu0 0.0
    %3605 = vmatpush.msra.mxu0 0.0
    %3606 = vmatpush.msra.mxu0 0.0
    %3607 = vmatpush.msra.mxu0 0.0
    %3608 = vmatpush.msra.mxu0 0.0
    %3609 = vmatpush.msra.mxu0 0.0
    %3610 = vmatpush.msra.mxu0 0.0
    %3611 = vmatpush.msra.mxu0 0.0
    %3612 = vmatpush.msra.mxu0 0.0
    %3613 = vmatpush.msra.mxu0 0.0
    %3614 = vmatpush.msra.mxu0 %v3555
    %3615 = vmatpush.msra.mxu0 %v3554
    %3616 = vmatpush.msra.mxu0 %v3553
    %3617 = vmatpush.msra.mxu0 %v3552
    %3618 = vmatpush.msra.mxu0 %v3551
    %3619 = vmatpush.msra.mxu0 %v3550
    %3620 = vmatmul.f32.gmra.mxu0 %v3557
    %v3621 = vpop.f32.mrf.mxu0
    %v3622 = vadd.f32 0.0, %v3621
    %3623 = vmatmul.f32.gmra.mxu0 %v3560
    %v3624 = vpop.f32.mrf.mxu0
    %v3625 = vadd.f32 0.0, %v3624
    %3626 = vmatmul.f32.gmra.mxu0 %v3563
    %v3627 = vpop.f32.mrf.mxu0
    %v3628 = vadd.f32 0.0, %v3627
    %3629 = vmatmul.f32.gmra.mxu0 %v3566
    %v3630 = vpop.f32.mrf.mxu0
    %v3631 = vadd.f32 0.0, %v3630
    %3632 = vmatmul.f32.gmra.mxu0 %v3569
    %v3633 = vpop.f32.mrf.mxu0
    %v3634 = vadd.f32 0.0, %v3633
    %3635 = vmatmul.f32.gmra.mxu0 %v3572
    %v3636 = vpop.f32.mrf.mxu0
    %v3637 = vadd.f32 0.0, %v3636
    %3638 = vmatmul.f32.gmra.mxu0 %v3575
    %v3639 = vpop.f32.mrf.mxu0
    %v3640 = vadd.f32 0.0, %v3639
    %3641 = vmatmul.f32.gmra.mxu0 %v3578
    %v3642 = vpop.f32.mrf.mxu0
    %v3643 = vadd.f32 0.0, %v3642
    %3644 = vmatmul.f32.gmra.mxu0 %v3581
    %v3645 = vpop.f32.mrf.mxu0
    %v3646 = vadd.f32 0.0, %v3645
    %3647 = vmatmul.f32.gmra.mxu0 %v3584
    %v3648 = vpop.f32.mrf.mxu0
    %v3649 = vadd.f32 0.0, %v3648
    %3650 = vmatmul.f32.gmra.mxu0 %v3587
    %v3651 = vpop.f32.mrf.mxu0
    %v3652 = vadd.f32 0.0, %v3651
    %3653 = vmatmul.f32.gmra.mxu0 %v3590
    %v3654 = vpop.f32.mrf.mxu0
    %v3655 = vadd.f32 0.0, %v3654
    %3656 = vmatmul.f32.gmra.mxu0 %v3593
    %v3657 = vpop.f32.mrf.mxu0
    %v3658 = vadd.f32 0.0, %v3657
    %3659 = vmatmul.f32.gmra.mxu0 %v3596
    %v3660 = vpop.f32.mrf.mxu0
    %v3661 = vadd.f32 0.0, %v3660
    %3662 = vmatmul.f32.gmra.mxu0 %v3599
    %v3663 = vpop.f32.mrf.mxu0
    %v3664 = vadd.f32 0.0, %v3663
    %3665 = vmatmul.f32.gmra.mxu0 %v3602
    %v3666 = vpop.f32.mrf.mxu0
    %v3667 = vadd.f32 0.0, %v3666
    %3668 = vdwg.mxu0
    %v3669 = vmul.f32 %v3622, 0.4082483
    %v3670 = vmul.f32 %v3625, 0.4082483
    %v3671 = vmul.f32 %v3628, 0.4082483
    %v3672 = vmul.f32 %v3631, 0.4082483
    %v3673 = vmul.f32 %v3634, 0.4082483
    %v3674 = vmul.f32 %v3637, 0.4082483
    %v3675 = vmul.f32 %v3640, 0.4082483
    %v3676 = vmul.f32 %v3643, 0.4082483
    %v3677 = vmul.f32 %v3646, 0.4082483
    %v3678 = vmul.f32 %v3649, 0.4082483
    %v3679 = vmul.f32 %v3652, 0.4082483
    %v3680 = vmul.f32 %v3655, 0.4082483
    %v3681 = vmul.f32 %v3658, 0.4082483
    %v3682 = vmul.f32 %v3661, 0.4082483
    %v3683 = vmul.f32 %v3664, 0.4082483
    %v3684 = vmul.f32 %v3667, 0.4082483
    %vm3685 = vcmask 523264
    %v3686 = vsel %vm3685, %v3669, -inf
    %3687 = vmax.xlane.f32.xlu0 %v3686
    %v3688 = vpop.xlane.xlu0 %3687
    %v3689 = vsel %vm3685, %v3670, -inf
    %3690 = vmax.xlane.f32.xlu0 %v3689
    %v3691 = vpop.xlane.xlu0 %3690
    %v3692 = vsel %vm3685, %v3671, -inf
    %3693 = vmax.xlane.f32.xlu0 %v3692
    %v3694 = vpop.xlane.xlu0 %3693
    %v3695 = vsel %vm3685, %v3672, -inf
    %3696 = vmax.xlane.f32.xlu0 %v3695
    %v3697 = vpop.xlane.xlu0 %3696
    %v3698 = vsel %vm3685, %v3673, -inf
    %3699 = vmax.xlane.f32.xlu0 %v3698
    %v3700 = vpop.xlane.xlu0 %3699
    %v3701 = vsel %vm3685, %v3674, -inf
    %3702 = vmax.xlane.f32.xlu0 %v3701
    %v3703 = vpop.xlane.xlu0 %3702
    %v3704 = vsel %vm3685, %v3675, -inf
    %3705 = vmax.xlane.f32.xlu0 %v3704
    %v3706 = vpop.xlane.xlu0 %3705
    %v3707 = vsel %vm3685, %v3676, -inf
    %3708 = vmax.xlane.f32.xlu0 %v3707
    %v3709 = vpop.xlane.xlu0 %3708
    %v3710 = vsel %vm3685, %v3677, -inf
    %3711 = vmax.xlane.f32.xlu0 %v3710
    %v3712 = vpop.xlane.xlu0 %3711
    %v3713 = vsel %vm3685, %v3678, -inf
    %3714 = vmax.xlane.f32.xlu0 %v3713
    %v3715 = vpop.xlane.xlu0 %3714
    %v3716 = vsel %vm3685, %v3679, -inf
    %3717 = vmax.xlane.f32.xlu0 %v3716
    %v3718 = vpop.xlane.xlu0 %3717
    %v3719 = vsel %vm3685, %v3680, -inf
    %3720 = vmax.xlane.f32.xlu0 %v3719
    %v3721 = vpop.xlane.xlu0 %3720
    %v3722 = vsel %vm3685, %v3681, -inf
    %3723 = vmax.xlane.f32.xlu0 %v3722
    %v3724 = vpop.xlane.xlu0 %3723
    %v3725 = vsel %vm3685, %v3682, -inf
    %3726 = vmax.xlane.f32.xlu0 %v3725
    %v3727 = vpop.xlane.xlu0 %3726
    %v3728 = vsel %vm3685, %v3683, -inf
    %3729 = vmax.xlane.f32.xlu0 %v3728
    %v3730 = vpop.xlane.xlu0 %3729
    %v3731 = vsel %vm3685, %v3684, -inf
    %3732 = vmax.xlane.f32.xlu0 %v3731
    %v3733 = vpop.xlane.xlu0 %3732
    %v3734 = vsub.f32 %v3669, %v3688
    %v3735 = vsub.f32 %v3670, %v3691
    %v3736 = vsub.f32 %v3671, %v3694
    %v3737 = vsub.f32 %v3672, %v3697
    %v3738 = vsub.f32 %v3673, %v3700
    %v3739 = vsub.f32 %v3674, %v3703
    %v3740 = vsub.f32 %v3675, %v3706
    %v3741 = vsub.f32 %v3676, %v3709
    %v3742 = vsub.f32 %v3677, %v3712
    %v3743 = vsub.f32 %v3678, %v3715
    %v3744 = vsub.f32 %v3679, %v3718
    %v3745 = vsub.f32 %v3680, %v3721
    %v3746 = vsub.f32 %v3681, %v3724
    %v3747 = vsub.f32 %v3682, %v3727
    %v3748 = vsub.f32 %v3683, %v3730
    %v3749 = vsub.f32 %v3684, %v3733
    %v3750 = vmul.f32 %v3734, 1.442695
    %v3751 = vpow.pop %v3750
    %v3752 = vmul.f32 %v3735, 1.442695
    %v3753 = vpow.pop %v3752
    %v3754 = vmul.f32 %v3736, 1.442695
    %v3755 = vpow.pop %v3754
    %v3756 = vmul.f32 %v3737, 1.442695
    %v3757 = vpow.pop %v3756
    %v3758 = vmul.f32 %v3738, 1.442695
    %v3759 = vpow.pop %v3758
    %v3760 = vmul.f32 %v3739, 1.442695
    %v3761 = vpow.pop %v3760
    %v3762 = vmul.f32 %v3740, 1.442695
    %v3763 = vpow.pop %v3762
    %v3764 = vmul.f32 %v3741, 1.442695
    %v3765 = vpow.pop %v3764
    %v3766 = vmul.f32 %v3742, 1.442695
    %v3767 = vpow.pop %v3766
    %v3768 = vmul.f32 %v3743, 1.442695
    %v3769 = vpow.pop %v3768
    %v3770 = vmul.f32 %v3744, 1.442695
    %v3771 = vpow.pop %v3770
    %v3772 = vmul.f32 %v3745, 1.442695
    %v3773 = vpow.pop %v3772
    %v3774 = vmul.f32 %v3746, 1.442695
    %v3775 = vpow.pop %v3774
    %v3776 = vmul.f32 %v3747, 1.442695
    %v3777 = vpow.pop %v3776
    %v3778 = vmul.f32 %v3748, 1.442695
    %v3779 = vpow.pop %v3778
    %v3780 = vmul.f32 %v3749, 1.442695
    %v3781 = vpow.pop %v3780
    %v3782 = vsel %vm3685, %v3751, 0.0
    %3783 = vadd.xlane.f32.xlu0 %v3782
    %v3784 = vpop.xlane.xlu0 %3783
    %v3785 = vsel %vm3685, %v3753, 0.0
    %3786 = vadd.xlane.f32.xlu0 %v3785
    %v3787 = vpop.xlane.xlu0 %3786
    %v3788 = vsel %vm3685, %v3755, 0.0
    %3789 = vadd.xlane.f32.xlu0 %v3788
    %v3790 = vpop.xlane.xlu0 %3789
    %v3791 = vsel %vm3685, %v3757, 0.0
    %3792 = vadd.xlane.f32.xlu0 %v3791
    %v3793 = vpop.xlane.xlu0 %3792
    %v3794 = vsel %vm3685, %v3759, 0.0
    %3795 = vadd.xlane.f32.xlu0 %v3794
    %v3796 = vpop.xlane.xlu0 %3795
    %v3797 = vsel %vm3685, %v3761, 0.0
    %3798 = vadd.xlane.f32.xlu0 %v3797
    %v3799 = vpop.xlane.xlu0 %3798
    %v3800 = vsel %vm3685, %v3763, 0.0
    %3801 = vadd.xlane.f32.xlu0 %v3800
    %v3802 = vpop.xlane.xlu0 %3801
    %v3803 = vsel %vm3685, %v3765, 0.0
    %3804 = vadd.xlane.f32.xlu0 %v3803
    %v3805 = vpop.xlane.xlu0 %3804
    %v3806 = vsel %vm3685, %v3767, 0.0
    %3807 = vadd.xlane.f32.xlu0 %v3806
    %v3808 = vpop.xlane.xlu0 %3807
    %v3809 = vsel %vm3685, %v3769, 0.0
    %3810 = vadd.xlane.f32.xlu0 %v3809
    %v3811 = vpop.xlane.xlu0 %3810
    %v3812 = vsel %vm3685, %v3771, 0.0
    %3813 = vadd.xlane.f32.xlu0 %v3812
    %v3814 = vpop.xlane.xlu0 %3813
    %v3815 = vsel %vm3685, %v3773, 0.0
    %3816 = vadd.xlane.f32.xlu0 %v3815
    %v3817 = vpop.xlane.xlu0 %3816
    %v3818 = vsel %vm3685, %v3775, 0.0
    %3819 = vadd.xlane.f32.xlu0 %v3818
    %v3820 = vpop.xlane.xlu0 %3819
    %v3821 = vsel %vm3685, %v3777, 0.0
    %3822 = vadd.xlane.f32.xlu0 %v3821
    %v3823 = vpop.xlane.xlu0 %3822
    %v3824 = vsel %vm3685, %v3779, 0.0
    %3825 = vadd.xlane.f32.xlu0 %v3824
    %v3826 = vpop.xlane.xlu0 %3825
    %v3827 = vsel %vm3685, %v3781, 0.0
    %3828 = vadd.xlane.f32.xlu0 %v3827
    %v3829 = vpop.xlane.xlu0 %3828
    %v3830 = vrcp.pop %v3784
    %v3831 = vrcp.pop %v3787
    %v3832 = vrcp.pop %v3790
    %v3833 = vrcp.pop %v3793
    %v3834 = vrcp.pop %v3796
    %v3835 = vrcp.pop %v3799
    %v3836 = vrcp.pop %v3802
    %v3837 = vrcp.pop %v3805
    %v3838 = vrcp.pop %v3808
    %v3839 = vrcp.pop %v3811
    %v3840 = vrcp.pop %v3814
    %v3841 = vrcp.pop %v3817
    %v3842 = vrcp.pop %v3820
    %v3843 = vrcp.pop %v3823
    %v3844 = vrcp.pop %v3826
    %v3845 = vrcp.pop %v3829
    %v3846 = vmul.f32 %v3751, %v3830
    %v3847 = vmul.f32 %v3753, %v3831
    %v3848 = vmul.f32 %v3755, %v3832
    %v3849 = vmul.f32 %v3757, %v3833
    %v3850 = vmul.f32 %v3759, %v3834
    %v3851 = vmul.f32 %v3761, %v3835
    %v3852 = vmul.f32 %v3763, %v3836
    %v3853 = vmul.f32 %v3765, %v3837
    %v3854 = vmul.f32 %v3767, %v3838
    %v3855 = vmul.f32 %v3769, %v3839
    %v3856 = vmul.f32 %v3771, %v3840
    %v3857 = vmul.f32 %v3773, %v3841
    %v3858 = vmul.f32 %v3775, %v3842
    %v3859 = vmul.f32 %v3777, %v3843
    %v3860 = vmul.f32 %v3779, %v3844
    %v3861 = vmul.f32 %v3781, %v3845
    %v3863 = vsel %vm3685, %v3846, 0
    %v3866 = vsel %vm3685, %v3847, 0
    %v3869 = vsel %vm3685, %v3848, 0
    %v3872 = vsel %vm3685, %v3849, 0
    %v3875 = vsel %vm3685, %v3850, 0
    %v3878 = vsel %vm3685, %v3851, 0
    %v3881 = vsel %vm3685, %v3852, 0
    %v3884 = vsel %vm3685, %v3853, 0
    %v3887 = vsel %vm3685, %v3854, 0
    %v3890 = vsel %vm3685, %v3855, 0
    %v3893 = vsel %vm3685, %v3856, 0
    %v3896 = vsel %vm3685, %v3857, 0
    %v3899 = vsel %vm3685, %v3858, 0
    %v3902 = vsel %vm3685, %v3859, 0
    %v3905 = vsel %vm3685, %v3860, 0
    %v3908 = vsel %vm3685, %v3861, 0
    %3910 = vmatpush.msra.mxu0 0.0
    %3911 = vmatpush.msra.mxu0 0.0
    %3912 = vmatpush.msra.mxu0 0.0
    %3913 = vmatpush.msra.mxu0 0.0
    %3914 = vmatpush.msra.mxu0 0.0
    %3915 = vmatpush.msra.mxu0 0.0
    %3916 = vmatpush.msra.mxu0 0.0
    %3917 = vmatpush.msra.mxu0 0.0
    %3918 = vmatpush.msra.mxu0 %v3438
    %3919 = vmatpush.msra.mxu0 %v3437
    %3920 = vmatpush.msra.mxu0 %v3436
    %3921 = vmatpush.msra.mxu0 %v3435
    %3922 = vmatpush.msra.mxu0 %v3434
    %3923 = vmatpush.msra.mxu0 %v3433
    %3924 = vmatpush.msra.mxu0 %v3432
    %3925 = vmatpush.msra.mxu0 %v3431
    %3926 = vmatmul.f32.gmra.mxu0 %v3863
    %v3927 = vpop.f32.mrf.mxu0
    %v3928 = vadd.f32 0.0, %v3927
    %3929 = vmatmul.f32.gmra.mxu0 %v3866
    %v3930 = vpop.f32.mrf.mxu0
    %v3931 = vadd.f32 0.0, %v3930
    %3932 = vmatmul.f32.gmra.mxu0 %v3869
    %v3933 = vpop.f32.mrf.mxu0
    %v3934 = vadd.f32 0.0, %v3933
    %3935 = vmatmul.f32.gmra.mxu0 %v3872
    %v3936 = vpop.f32.mrf.mxu0
    %v3937 = vadd.f32 0.0, %v3936
    %3938 = vmatmul.f32.gmra.mxu0 %v3875
    %v3939 = vpop.f32.mrf.mxu0
    %v3940 = vadd.f32 0.0, %v3939
    %3941 = vmatmul.f32.gmra.mxu0 %v3878
    %v3942 = vpop.f32.mrf.mxu0
    %v3943 = vadd.f32 0.0, %v3942
    %3944 = vmatmul.f32.gmra.mxu0 %v3881
    %v3945 = vpop.f32.mrf.mxu0
    %v3946 = vadd.f32 0.0, %v3945
    %3947 = vmatmul.f32.gmra.mxu0 %v3884
    %v3948 = vpop.f32.mrf.mxu0
    %v3949 = vadd.f32 0.0, %v3948
    %3950 = vmatmul.f32.gmra.mxu0 %v3887
    %v3951 = vpop.f32.mrf.mxu0
    %v3952 = vadd.f32 0.0, %v3951
    %3953 = vmatmul.f32.gmra.mxu0 %v3890
    %v3954 = vpop.f32.mrf.mxu0
    %v3955 = vadd.f32 0.0, %v3954
    %3956 = vmatmul.f32.gmra.mxu0 %v3893
    %v3957 = vpop.f32.mrf.mxu0
    %v3958 = vadd.f32 0.0, %v3957
    %3959 = vmatmul.f32.gmra.mxu0 %v3896
    %v3960 = vpop.f32.mrf.mxu0
    %v3961 = vadd.f32 0.0, %v3960
    %3962 = vmatmul.f32.gmra.mxu0 %v3899
    %v3963 = vpop.f32.mrf.mxu0
    %v3964 = vadd.f32 0.0, %v3963
    %3965 = vmatmul.f32.gmra.mxu0 %v3902
    %v3966 = vpop.f32.mrf.mxu0
    %v3967 = vadd.f32 0.0, %v3966
    %3968 = vmatmul.f32.gmra.mxu0 %v3905
    %v3969 = vpop.f32.mrf.mxu0
    %v3970 = vadd.f32 0.0, %v3969
    %3971 = vmatmul.f32.gmra.mxu0 %v3908
    %v3972 = vpop.f32.mrf.mxu0
    %v3973 = vadd.f32 0.0, %v3972
    %3974 = vdwg.mxu0
    %v3975 = vmul.f32 %v3928, %v40
    %v3976 = vmul.f32 %v3931, %v41
    %v3977 = vmul.f32 %v3934, %v42
    %v3978 = vmul.f32 %v3937, %v43
    %v3979 = vmul.f32 %v3940, %v44
    %v3980 = vmul.f32 %v3943, %v45
    %v3981 = vmul.f32 %v3946, %v46
    %v3982 = vmul.f32 %v3949, %v47
    %v3983 = vmul.f32 %v3952, %v48
    %v3984 = vmul.f32 %v3955, %v49
    %v3985 = vmul.f32 %v3958, %v50
    %v3986 = vmul.f32 %v3961, %v51
    %v3987 = vmul.f32 %v3964, %v52
    %v3988 = vmul.f32 %v3967, %v53
    %v3989 = vmul.f32 %v3970, %v54
    %v3990 = vmul.f32 %v3973, %v55
    %3991 = vmatpush.msra.mxu0 %v3990
    %3992 = vmatpush.msra.mxu0 %v3989
    %3993 = vmatpush.msra.mxu0 %v3988
    %3994 = vmatpush.msra.mxu0 %v3987
    %3995 = vmatpush.msra.mxu0 %v3986
    %3996 = vmatpush.msra.mxu0 %v3985
    %3997 = vmatpush.msra.mxu0 %v3984
    %3998 = vmatpush.msra.mxu0 %v3983
    %3999 = vmatpush.msra.mxu0 %v3982
    %4000 = vmatpush.msra.mxu0 %v3981
    %4001 = vmatpush.msra.mxu0 %v3980
    %4002 = vmatpush.msra.mxu0 %v3979
    %4003 = vmatpush.msra.mxu0 %v3978
    %4004 = vmatpush.msra.mxu0 %v3977
    %4005 = vmatpush.msra.mxu0 %v3976
    %4006 = vmatpush.msra.mxu0 %v3975
    %4007 = vmatmul.f32.gmra.mxu0 %v437
    %v4008 = vpop.f32.mrf.mxu0
    %v4009 = vadd.f32 0.0, %v4008
    %4010 = vmatmul.f32.gmra.mxu0 %v438
    %v4011 = vpop.f32.mrf.mxu0
    %v4012 = vadd.f32 0.0, %v4011
    %4013 = vdwg.mxu0
    %v4014 = vperm.slane %v275, 0
    %v4016 = vsel %vm446, %v4009, 0
    %v4019 = vsel %vm446, %v4012, 0
    %4021 = vmatpush.msra.mxu0 0.0
    %4022 = vmatpush.msra.mxu0 0.0
    %4023 = vmatpush.msra.mxu0 0.0
    %4024 = vmatpush.msra.mxu0 0.0
    %4025 = vmatpush.msra.mxu0 0.0
    %4026 = vmatpush.msra.mxu0 0.0
    %4027 = vmatpush.msra.mxu0 0.0
    %4028 = vmatpush.msra.mxu0 0.0
    %4029 = vmatpush.msra.mxu0 0.0
    %4030 = vmatpush.msra.mxu0 0.0
    %4031 = vmatpush.msra.mxu0 %v3424
    %4032 = vmatpush.msra.mxu0 %v3423
    %4033 = vmatpush.msra.mxu0 %v3422
    %4034 = vmatpush.msra.mxu0 %v3421
    %4035 = vmatpush.msra.mxu0 %v3420
    %4036 = vmatpush.msra.mxu0 %v3419
    %4037 = vmatmul.f32.gmra.mxu0 %v4016
    %v4038 = vpop.f32.mrf.mxu0
    %v4039 = vadd.f32 %v4014, %v4038
    %4040 = vmatmul.f32.gmra.mxu0 %v4019
    %v4041 = vpop.f32.mrf.mxu0
    %v4042 = vadd.f32 %v4014, %v4041
    %4043 = vdwg.mxu0
    %v4044 = vperm.slane %v276, 0
    %v4046 = vsel %vm446, %v4039, 0
    %v4049 = vsel %vm446, %v4042, 0
    %4051 = vmatpush.msra.mxu0 0.0
    %4052 = vmatpush.msra.mxu0 0.0
    %4053 = vmatpush.msra.mxu0 0.0
    %4054 = vmatpush.msra.mxu0 0.0
    %4055 = vmatpush.msra.mxu0 0.0
    %4056 = vmatpush.msra.mxu0 0.0
    %4057 = vmatpush.msra.mxu0 0.0
    %4058 = vmatpush.msra.mxu0 0.0
    %4059 = vmatpush.msra.mxu0 0.0
    %4060 = vmatpush.msra.mxu0 0.0
    %4061 = vmatpush.msra.mxu0 %v3430
    %4062 = vmatpush.msra.mxu0 %v3429
    %4063 = vmatpush.msra.mxu0 %v3428
    %4064 = vmatpush.msra.mxu0 %v3427
    %4065 = vmatpush.msra.mxu0 %v3426
    %4066 = vmatpush.msra.mxu0 %v3425
    %4067 = vmatmul.f32.gmra.mxu0 %v4046
    %v4068 = vpop.f32.mrf.mxu0
    %v4069 = vadd.f32 %v4044, %v4068
    %4070 = vmatmul.f32.gmra.mxu0 %v4049
    %v4071 = vpop.f32.mrf.mxu0
    %v4072 = vadd.f32 %v4044, %v4071
    %4073 = vdwg.mxu0
    %v4074 = vld [vmem:[%s1 + $0x9b0] sm:$0xff]
    %v4075 = vld [vmem:[%s1 + $0x9b8] sm:$0xff]
    %v4076 = vld [vmem:[%s1 + $0x9c0] sm:$0xff]
    %v4077 = vld [vmem:[%s1 + $0x9c8] sm:$0xff]
    %v4078 = vld [vmem:[%s1 + $0x9d0] sm:$0xff]
    %v4079 = vld [vmem:[%s1 + $0x9d8] sm:$0xff]
    %v4080 = vld [vmem:[%s1 + $0x9e0] sm:$0xff]
    %v4081 = vld [vmem:[%s1 + $0x9e8] sm:$0xff]
    %v4082 = vld [vmem:[%s1 + $0x9f0] sm:$0xff]
    %v4083 = vld [vmem:[%s1 + $0x9f8] sm:$0xff]
    %v4084 = vld [vmem:[%s1 + $0xa00] sm:$0xff]
    %v4085 = vld [vmem:[%s1 + $0xa08] sm:$0xff]
    %v4086 = vld [vmem:[%s1 + $0xa10] sm:$0xff]
    %v4087 = vld [vmem:[%s1 + $0xa18] sm:$0xff]
    %v4088 = vld [vmem:[%s1 + $0xa20] sm:$0xff]
    %v4089 = vld [vmem:[%s1 + $0xa28] sm:$0xff]
    %v4090 = vld [vmem:[%s1 + $0xa30] sm:$0xff]
    %v4091 = vld [vmem:[%s1 + $0xa38] sm:$0xff]
    %v4092 = vld [vmem:[%s1 + $0x7a0] sm:$0xff]
    %v4093 = vld [vmem:[%s1 + $0x7a8] sm:$0xff]
    %v4094 = vld [vmem:[%s1 + $0x7b0] sm:$0xff]
    %v4095 = vld [vmem:[%s1 + $0x7b8] sm:$0xff]
    %v4096 = vld [vmem:[%s1 + $0x7c0] sm:$0xff]
    %v4097 = vld [vmem:[%s1 + $0x7c8] sm:$0xff]
    %v4098 = vld [vmem:[%s1 + $0x7d0] sm:$0xff]
    %v4099 = vld [vmem:[%s1 + $0x7d8] sm:$0xff]
    %v4100 = vld [vmem:[%s1 + $0x7e0] sm:$0xff]
    %v4101 = vld [vmem:[%s1 + $0x7e8] sm:$0xff]
    %v4102 = vld [vmem:[%s1 + $0x7f0] sm:$0xff]
    %v4103 = vld [vmem:[%s1 + $0x7f8] sm:$0xff]
    %v4104 = vld [vmem:[%s1 + $0x800] sm:$0xff]
    %v4105 = vld [vmem:[%s1 + $0x808] sm:$0xff]
    %v4106 = vld [vmem:[%s1 + $0x810] sm:$0xff]
    %v4107 = vld [vmem:[%s1 + $0x818] sm:$0xff]
    %v4108 = vperm.slane %v274, 1
    %v4110 = vsel %vm446, %v4069, 0
    %v4113 = vsel %vm446, %v4072, 0
    %4115 = vmatpush.msra.mxu0 0.0
    %4116 = vmatpush.msra.mxu0 0.0
    %4117 = vmatpush.msra.mxu0 0.0
    %4118 = vmatpush.msra.mxu0 0.0
    %4119 = vmatpush.msra.mxu0 0.0
    %4120 = vmatpush.msra.mxu0 0.0
    %4121 = vmatpush.msra.mxu0 0.0
    %4122 = vmatpush.msra.mxu0 0.0
    %4123 = vmatpush.msra.mxu0 0.0
    %4124 = vmatpush.msra.mxu0 0.0
    %4125 = vmatpush.msra.mxu0 %v4079
    %4126 = vmatpush.msra.mxu0 %v4078
    %4127 = vmatpush.msra.mxu0 %v4077
    %4128 = vmatpush.msra.mxu0 %v4076
    %4129 = vmatpush.msra.mxu0 %v4075
    %4130 = vmatpush.msra.mxu0 %v4074
    %4131 = vmatmul.f32.gmra.mxu0 %v4110
    %v4132 = vpop.f32.mrf.mxu0
    %v4133 = vadd.f32 %v4108, %v4132
    %4134 = vmatmul.f32.gmra.mxu0 %v4113
    %v4135 = vpop.f32.mrf.mxu0
    %v4136 = vadd.f32 %v4108, %v4135
    %4137 = vdwg.mxu0
    %4138 = vmatpush.msra.mxu0 0.0
    %4139 = vmatpush.msra.mxu0 0.0
    %4140 = vmatpush.msra.mxu0 0.0
    %4141 = vmatpush.msra.mxu0 0.0
    %4142 = vmatpush.msra.mxu0 0.0
    %4143 = vmatpush.msra.mxu0 0.0
    %4144 = vmatpush.msra.mxu0 0.0
    %4145 = vmatpush.msra.mxu0 0.0
    %4146 = vmatpush.msra.mxu0 0.0
    %4147 = vmatpush.msra.mxu0 0.0
    %4148 = vmatpush.msra.mxu0 0.0
    %4149 = vmatpush.msra.mxu0 0.0
    %4150 = vmatpush.msra.mxu0 0.0
    %4151 = vmatpush.msra.mxu0 0.0
    %4152 = vmatpush.msra.mxu0 %v4136
    %4153 = vmatpush.msra.mxu0 %v4133
    %4154 = vmatmul.f32.gmra.mxu0 %v592
    %v4155 = vpop.f32.mrf.mxu0
    %v4156 = vadd.f32 0.0, %v4155
    %4157 = vmatmul.f32.gmra.mxu0 %v595
    %v4158 = vpop.f32.mrf.mxu0
    %v4159 = vadd.f32 0.0, %v4158
    %4160 = vmatmul.f32.gmra.mxu0 %v598
    %v4161 = vpop.f32.mrf.mxu0
    %v4162 = vadd.f32 0.0, %v4161
    %4163 = vmatmul.f32.gmra.mxu0 %v601
    %v4164 = vpop.f32.mrf.mxu0
    %v4165 = vadd.f32 0.0, %v4164
    %4166 = vmatmul.f32.gmra.mxu0 %v604
    %v4167 = vpop.f32.mrf.mxu0
    %v4168 = vadd.f32 0.0, %v4167
    %4169 = vmatmul.f32.gmra.mxu0 %v607
    %v4170 = vpop.f32.mrf.mxu0
    %v4171 = vadd.f32 0.0, %v4170
    %4172 = vmatmul.f32.gmra.mxu0 %v610
    %v4173 = vpop.f32.mrf.mxu0
    %v4174 = vadd.f32 0.0, %v4173
    %4175 = vmatmul.f32.gmra.mxu0 %v613
    %v4176 = vpop.f32.mrf.mxu0
    %v4177 = vadd.f32 0.0, %v4176
    %4178 = vmatmul.f32.gmra.mxu0 %v616
    %v4179 = vpop.f32.mrf.mxu0
    %v4180 = vadd.f32 0.0, %v4179
    %4181 = vmatmul.f32.gmra.mxu0 %v619
    %v4182 = vpop.f32.mrf.mxu0
    %v4183 = vadd.f32 0.0, %v4182
    %4184 = vmatmul.f32.gmra.mxu0 %v622
    %v4185 = vpop.f32.mrf.mxu0
    %v4186 = vadd.f32 0.0, %v4185
    %4187 = vmatmul.f32.gmra.mxu0 %v625
    %v4188 = vpop.f32.mrf.mxu0
    %v4189 = vadd.f32 0.0, %v4188
    %4190 = vmatmul.f32.gmra.mxu0 %v628
    %v4191 = vpop.f32.mrf.mxu0
    %v4192 = vadd.f32 0.0, %v4191
    %4193 = vmatmul.f32.gmra.mxu0 %v631
    %v4194 = vpop.f32.mrf.mxu0
    %v4195 = vadd.f32 0.0, %v4194
    %4196 = vmatmul.f32.gmra.mxu0 %v634
    %v4197 = vpop.f32.mrf.mxu0
    %v4198 = vadd.f32 0.0, %v4197
    %4199 = vmatmul.f32.gmra.mxu0 %v637
    %v4200 = vpop.f32.mrf.mxu0
    %v4201 = vadd.f32 0.0, %v4200
    %4202 = vdwg.mxu0
    %v4203 = vmul.f32 %v4156, %v40
    %v4204 = vmul.f32 %v4159, %v41
    %v4205 = vmul.f32 %v4162, %v42
    %v4206 = vmul.f32 %v4165, %v43
    %v4207 = vmul.f32 %v4168, %v44
    %v4208 = vmul.f32 %v4171, %v45
    %v4209 = vmul.f32 %v4174, %v46
    %v4210 = vmul.f32 %v4177, %v47
    %v4211 = vmul.f32 %v4180, %v48
    %v4212 = vmul.f32 %v4183, %v49
    %v4213 = vmul.f32 %v4186, %v50
    %v4214 = vmul.f32 %v4189, %v51
    %v4215 = vmul.f32 %v4192, %v52
    %v4216 = vmul.f32 %v4195, %v53
    %v4217 = vmul.f32 %v4198, %v54
    %v4218 = vmul.f32 %v4201, %v55
    %v4219 = vld [vmem:[%s8] sm:$0xff]
    %v4220 = vld [vmem:[%s8 + $0x8] sm:$0xff]
    %v4221 = vld [vmem:[%s8 + $0x10] sm:$0xff]
    %v4222 = vld [vmem:[%s8 + $0x18] sm:$0xff]
    %v4223 = vld [vmem:[%s8 + $0x20] sm:$0xff]
    %v4224 = vld [vmem:[%s8 + $0x28] sm:$0xff]
    %v4226 = vsel %vm446, %v4203, 0
    %v4229 = vsel %vm446, %v4204, 0
    %v4232 = vsel %vm446, %v4205, 0
    %v4235 = vsel %vm446, %v4206, 0
    %v4238 = vsel %vm446, %v4207, 0
    %v4241 = vsel %vm446, %v4208, 0
    %v4244 = vsel %vm446, %v4209, 0
    %v4247 = vsel %vm446, %v4210, 0
    %v4250 = vsel %vm446, %v4211, 0
    %v4253 = vsel %vm446, %v4212, 0
    %v4256 = vsel %vm446, %v4213, 0
    %v4259 = vsel %vm446, %v4214, 0
    %v4262 = vsel %vm446, %v4215, 0
    %v4265 = vsel %vm446, %v4216, 0
    %v4268 = vsel %vm446, %v4217, 0
    %v4271 = vsel %vm446, %v4218, 0
    %4273 = vmatpush.msra.mxu0 0.0
    %4274 = vmatpush.msra.mxu0 0.0
    %4275 = vmatpush.msra.mxu0 0.0
    %4276 = vmatpush.msra.mxu0 0.0
    %4277 = vmatpush.msra.mxu0 0.0
    %4278 = vmatpush.msra.mxu0 0.0
    %4279 = vmatpush.msra.mxu0 0.0
    %4280 = vmatpush.msra.mxu0 0.0
    %4281 = vmatpush.msra.mxu0 0.0
    %4282 = vmatpush.msra.mxu0 0.0
    %4283 = vmatpush.msra.mxu0 %v4224
    %4284 = vmatpush.msra.mxu0 %v4223
    %4285 = vmatpush.msra.mxu0 %v4222
    %4286 = vmatpush.msra.mxu0 %v4221
    %4287 = vmatpush.msra.mxu0 %v4220
    %4288 = vmatpush.msra.mxu0 %v4219
    %4289 = vmatmul.f32.gmra.mxu0 %v4226
    %v4290 = vpop.f32.mrf.mxu0
    %v4291 = vadd.f32 0.0, %v4290
    %4292 = vmatmul.f32.gmra.mxu0 %v4229
    %v4293 = vpop.f32.mrf.mxu0
    %v4294 = vadd.f32 0.0, %v4293
    %4295 = vmatmul.f32.gmra.mxu0 %v4232
    %v4296 = vpop.f32.mrf.mxu0
    %v4297 = vadd.f32 0.0, %v4296
    %4298 = vmatmul.f32.gmra.mxu0 %v4235
    %v4299 = vpop.f32.mrf.mxu0
    %v4300 = vadd.f32 0.0, %v4299
    %4301 = vmatmul.f32.gmra.mxu0 %v4238
    %v4302 = vpop.f32.mrf.mxu0
    %v4303 = vadd.f32 0.0, %v4302
    %4304 = vmatmul.f32.gmra.mxu0 %v4241
    %v4305 = vpop.f32.mrf.mxu0
    %v4306 = vadd.f32 0.0, %v4305
    %4307 = vmatmul.f32.gmra.mxu0 %v4244
    %v4308 = vpop.f32.mrf.mxu0
    %v4309 = vadd.f32 0.0, %v4308
    %4310 = vmatmul.f32.gmra.mxu0 %v4247
    %v4311 = vpop.f32.mrf.mxu0
    %v4312 = vadd.f32 0.0, %v4311
    %4313 = vmatmul.f32.gmra.mxu0 %v4250
    %v4314 = vpop.f32.mrf.mxu0
    %v4315 = vadd.f32 0.0, %v4314
    %4316 = vmatmul.f32.gmra.mxu0 %v4253
    %v4317 = vpop.f32.mrf.mxu0
    %v4318 = vadd.f32 0.0, %v4317
    %4319 = vmatmul.f32.gmra.mxu0 %v4256
    %v4320 = vpop.f32.mrf.mxu0
    %v4321 = vadd.f32 0.0, %v4320
    %4322 = vmatmul.f32.gmra.mxu0 %v4259
    %v4323 = vpop.f32.mrf.mxu0
    %v4324 = vadd.f32 0.0, %v4323
    %4325 = vmatmul.f32.gmra.mxu0 %v4262
    %v4326 = vpop.f32.mrf.mxu0
    %v4327 = vadd.f32 0.0, %v4326
    %4328 = vmatmul.f32.gmra.mxu0 %v4265
    %v4329 = vpop.f32.mrf.mxu0
    %v4330 = vadd.f32 0.0, %v4329
    %4331 = vmatmul.f32.gmra.mxu0 %v4268
    %v4332 = vpop.f32.mrf.mxu0
    %v4333 = vadd.f32 0.0, %v4332
    %4334 = vmatmul.f32.gmra.mxu0 %v4271
    %v4335 = vpop.f32.mrf.mxu0
    %v4336 = vadd.f32 0.0, %v4335
    %4337 = vdwg.mxu0
    %v4338 = vmul.f32 %v4291, 0.4082483
    %v4339 = vmul.f32 %v4294, 0.4082483
    %v4340 = vmul.f32 %v4297, 0.4082483
    %v4341 = vmul.f32 %v4300, 0.4082483
    %v4342 = vmul.f32 %v4303, 0.4082483
    %v4343 = vmul.f32 %v4306, 0.4082483
    %v4344 = vmul.f32 %v4309, 0.4082483
    %v4345 = vmul.f32 %v4312, 0.4082483
    %v4346 = vmul.f32 %v4315, 0.4082483
    %v4347 = vmul.f32 %v4318, 0.4082483
    %v4348 = vmul.f32 %v4321, 0.4082483
    %v4349 = vmul.f32 %v4324, 0.4082483
    %v4350 = vmul.f32 %v4327, 0.4082483
    %v4351 = vmul.f32 %v4330, 0.4082483
    %v4352 = vmul.f32 %v4333, 0.4082483
    %v4353 = vmul.f32 %v4336, 0.4082483
    %4354 = vmax.xlane.f32.xlu0 %v4338
    %v4355 = vpop.xlane.xlu0 %4354
    %4356 = vmax.xlane.f32.xlu0 %v4339
    %v4357 = vpop.xlane.xlu0 %4356
    %4358 = vmax.xlane.f32.xlu0 %v4340
    %v4359 = vpop.xlane.xlu0 %4358
    %4360 = vmax.xlane.f32.xlu0 %v4341
    %v4361 = vpop.xlane.xlu0 %4360
    %4362 = vmax.xlane.f32.xlu0 %v4342
    %v4363 = vpop.xlane.xlu0 %4362
    %4364 = vmax.xlane.f32.xlu0 %v4343
    %v4365 = vpop.xlane.xlu0 %4364
    %4366 = vmax.xlane.f32.xlu0 %v4344
    %v4367 = vpop.xlane.xlu0 %4366
    %4368 = vmax.xlane.f32.xlu0 %v4345
    %v4369 = vpop.xlane.xlu0 %4368
    %4370 = vmax.xlane.f32.xlu0 %v4346
    %v4371 = vpop.xlane.xlu0 %4370
    %4372 = vmax.xlane.f32.xlu0 %v4347
    %v4373 = vpop.xlane.xlu0 %4372
    %4374 = vmax.xlane.f32.xlu0 %v4348
    %v4375 = vpop.xlane.xlu0 %4374
    %4376 = vmax.xlane.f32.xlu0 %v4349
    %v4377 = vpop.xlane.xlu0 %4376
    %4378 = vmax.xlane.f32.xlu0 %v4350
    %v4379 = vpop.xlane.xlu0 %4378
    %4380 = vmax.xlane.f32.xlu0 %v4351
    %v4381 = vpop.xlane.xlu0 %4380
    %4382 = vmax.xlane.f32.xlu0 %v4352
    %v4383 = vpop.xlane.xlu0 %4382
    %4384 = vmax.xlane.f32.xlu0 %v4353
    %v4385 = vpop.xlane.xlu0 %4384
    %v4386 = vsub.f32 %v4338, %v4355
    %v4387 = vsub.f32 %v4339, %v4357
    %v4388 = vsub.f32 %v4340, %v4359
    %v4389 = vsub.f32 %v4341, %v4361
    %v4390 = vsub.f32 %v4342, %v4363
    %v4391 = vsub.f32 %v4343, %v4365
    %v4392 = vsub.f32 %v4344, %v4367
    %v4393 = vsub.f32 %v4345, %v4369
    %v4394 = vsub.f32 %v4346, %v4371
    %v4395 = vsub.f32 %v4347, %v4373
    %v4396 = vsub.f32 %v4348, %v4375
    %v4397 = vsub.f32 %v4349, %v4377
    %v4398 = vsub.f32 %v4350, %v4379
    %v4399 = vsub.f32 %v4351, %v4381
    %v4400 = vsub.f32 %v4352, %v4383
    %v4401 = vsub.f32 %v4353, %v4385
    %v4402 = vmul.f32 %v4386, 1.442695
    %v4403 = vpow.pop %v4402
    %v4404 = vmul.f32 %v4387, 1.442695
    %v4405 = vpow.pop %v4404
    %v4406 = vmul.f32 %v4388, 1.442695
    %v4407 = vpow.pop %v4406
    %v4408 = vmul.f32 %v4389, 1.442695
    %v4409 = vpow.pop %v4408
    %v4410 = vmul.f32 %v4390, 1.442695
    %v4411 = vpow.pop %v4410
    %v4412 = vmul.f32 %v4391, 1.442695
    %v4413 = vpow.pop %v4412
    %v4414 = vmul.f32 %v4392, 1.442695
    %v4415 = vpow.pop %v4414
    %v4416 = vmul.f32 %v4393, 1.442695
    %v4417 = vpow.pop %v4416
    %v4418 = vmul.f32 %v4394, 1.442695
    %v4419 = vpow.pop %v4418
    %v4420 = vmul.f32 %v4395, 1.442695
    %v4421 = vpow.pop %v4420
    %v4422 = vmul.f32 %v4396, 1.442695
    %v4423 = vpow.pop %v4422
    %v4424 = vmul.f32 %v4397, 1.442695
    %v4425 = vpow.pop %v4424
    %v4426 = vmul.f32 %v4398, 1.442695
    %v4427 = vpow.pop %v4426
    %v4428 = vmul.f32 %v4399, 1.442695
    %v4429 = vpow.pop %v4428
    %v4430 = vmul.f32 %v4400, 1.442695
    %v4431 = vpow.pop %v4430
    %v4432 = vmul.f32 %v4401, 1.442695
    %v4433 = vpow.pop %v4432
    %4434 = vadd.xlane.f32.xlu0 %v4403
    %v4435 = vpop.xlane.xlu0 %4434
    %4436 = vadd.xlane.f32.xlu0 %v4405
    %v4437 = vpop.xlane.xlu0 %4436
    %4438 = vadd.xlane.f32.xlu0 %v4407
    %v4439 = vpop.xlane.xlu0 %4438
    %4440 = vadd.xlane.f32.xlu0 %v4409
    %v4441 = vpop.xlane.xlu0 %4440
    %4442 = vadd.xlane.f32.xlu0 %v4411
    %v4443 = vpop.xlane.xlu0 %4442
    %4444 = vadd.xlane.f32.xlu0 %v4413
    %v4445 = vpop.xlane.xlu0 %4444
    %4446 = vadd.xlane.f32.xlu0 %v4415
    %v4447 = vpop.xlane.xlu0 %4446
    %4448 = vadd.xlane.f32.xlu0 %v4417
    %v4449 = vpop.xlane.xlu0 %4448
    %4450 = vadd.xlane.f32.xlu0 %v4419
    %v4451 = vpop.xlane.xlu0 %4450
    %4452 = vadd.xlane.f32.xlu0 %v4421
    %v4453 = vpop.xlane.xlu0 %4452
    %4454 = vadd.xlane.f32.xlu0 %v4423
    %v4455 = vpop.xlane.xlu0 %4454
    %4456 = vadd.xlane.f32.xlu0 %v4425
    %v4457 = vpop.xlane.xlu0 %4456
    %4458 = vadd.xlane.f32.xlu0 %v4427
    %v4459 = vpop.xlane.xlu0 %4458
    %4460 = vadd.xlane.f32.xlu0 %v4429
    %v4461 = vpop.xlane.xlu0 %4460
    %4462 = vadd.xlane.f32.xlu0 %v4431
    %v4463 = vpop.xlane.xlu0 %4462
    %4464 = vadd.xlane.f32.xlu0 %v4433
    %v4465 = vpop.xlane.xlu0 %4464
    %v4466 = vrcp.pop %v4435
    %v4467 = vrcp.pop %v4437
    %v4468 = vrcp.pop %v4439
    %v4469 = vrcp.pop %v4441
    %v4470 = vrcp.pop %v4443
    %v4471 = vrcp.pop %v4445
    %v4472 = vrcp.pop %v4447
    %v4473 = vrcp.pop %v4449
    %v4474 = vrcp.pop %v4451
    %v4475 = vrcp.pop %v4453
    %v4476 = vrcp.pop %v4455
    %v4477 = vrcp.pop %v4457
    %v4478 = vrcp.pop %v4459
    %v4479 = vrcp.pop %v4461
    %v4480 = vrcp.pop %v4463
    %v4481 = vrcp.pop %v4465
    %v4482 = vmul.f32 %v4403, %v4466
    %v4483 = vmul.f32 %v4405, %v4467
    %v4484 = vmul.f32 %v4407, %v4468
    %v4485 = vmul.f32 %v4409, %v4469
    %v4486 = vmul.f32 %v4411, %v4470
    %v4487 = vmul.f32 %v4413, %v4471
    %v4488 = vmul.f32 %v4415, %v4472
    %v4489 = vmul.f32 %v4417, %v4473
    %v4490 = vmul.f32 %v4419, %v4474
    %v4491 = vmul.f32 %v4421, %v4475
    %v4492 = vmul.f32 %v4423, %v4476
    %v4493 = vmul.f32 %v4425, %v4477
    %v4494 = vmul.f32 %v4427, %v4478
    %v4495 = vmul.f32 %v4429, %v4479
    %v4496 = vmul.f32 %v4431, %v4480
    %v4497 = vmul.f32 %v4433, %v4481
    %4498 = vmatpush.msra.mxu0 %v4107
    %4499 = vmatpush.msra.mxu0 %v4106
    %4500 = vmatpush.msra.mxu0 %v4105
    %4501 = vmatpush.msra.mxu0 %v4104
    %4502 = vmatpush.msra.mxu0 %v4103
    %4503 = vmatpush.msra.mxu0 %v4102
    %4504 = vmatpush.msra.mxu0 %v4101
    %4505 = vmatpush.msra.mxu0 %v4100
    %4506 = vmatpush.msra.mxu0 %v4099
    %4507 = vmatpush.msra.mxu0 %v4098
    %4508 = vmatpush.msra.mxu0 %v4097
    %4509 = vmatpush.msra.mxu0 %v4096
    %4510 = vmatpush.msra.mxu0 %v4095
    %4511 = vmatpush.msra.mxu0 %v4094
    %4512 = vmatpush.msra.mxu0 %v4093
    %4513 = vmatpush.msra.mxu0 %v4092
    %4514 = vmatmul.f32.gmra.mxu0 %v4482
    %v4515 = vpop.f32.mrf.mxu0
    %v4516 = vadd.f32 0.0, %v4515
    %4517 = vmatmul.f32.gmra.mxu0 %v4483
    %v4518 = vpop.f32.mrf.mxu0
    %v4519 = vadd.f32 0.0, %v4518
    %4520 = vmatmul.f32.gmra.mxu0 %v4484
    %v4521 = vpop.f32.mrf.mxu0
    %v4522 = vadd.f32 0.0, %v4521
    %4523 = vmatmul.f32.gmra.mxu0 %v4485
    %v4524 = vpop.f32.mrf.mxu0
    %v4525 = vadd.f32 0.0, %v4524
    %4526 = vmatmul.f32.gmra.mxu0 %v4486
    %v4527 = vpop.f32.mrf.mxu0
    %v4528 = vadd.f32 0.0, %v4527
    %4529 = vmatmul.f32.gmra.mxu0 %v4487
    %v4530 = vpop.f32.mrf.mxu0
    %v4531 = vadd.f32 0.0, %v4530
    %4532 = vmatmul.f32.gmra.mxu0 %v4488
    %v4533 = vpop.f32.mrf.mxu0
    %v4534 = vadd.f32 0.0, %v4533
    %4535 = vmatmul.f32.gmra.mxu0 %v4489
    %v4536 = vpop.f32.mrf.mxu0
    %v4537 = vadd.f32 0.0, %v4536
    %4538 = vmatmul.f32.gmra.mxu0 %v4490
    %v4539 = vpop.f32.mrf.mxu0
    %v4540 = vadd.f32 0.0, %v4539
    %4541 = vmatmul.f32.gmra.mxu0 %v4491
    %v4542 = vpop.f32.mrf.mxu0
    %v4543 = vadd.f32 0.0, %v4542
    %4544 = vmatmul.f32.gmra.mxu0 %v4492
    %v4545 = vpop.f32.mrf.mxu0
    %v4546 = vadd.f32 0.0, %v4545
    %4547 = vmatmul.f32.gmra.mxu0 %v4493
    %v4548 = vpop.f32.mrf.mxu0
    %v4549 = vadd.f32 0.0, %v4548
    %4550 = vmatmul.f32.gmra.mxu0 %v4494
    %v4551 = vpop.f32.mrf.mxu0
    %v4552 = vadd.f32 0.0, %v4551
    %4553 = vmatmul.f32.gmra.mxu0 %v4495
    %v4554 = vpop.f32.mrf.mxu0
    %v4555 = vadd.f32 0.0, %v4554
    %4556 = vmatmul.f32.gmra.mxu0 %v4496
    %v4557 = vpop.f32.mrf.mxu0
    %v4558 = vadd.f32 0.0, %v4557
    %4559 = vmatmul.f32.gmra.mxu0 %v4497
    %v4560 = vpop.f32.mrf.mxu0
    %v4561 = vadd.f32 0.0, %v4560
    %4562 = vdwg.mxu0
    %v4563 = vmul.f32 %v4516, %v40
    %v4564 = vmul.f32 %v4519, %v41
    %v4565 = vmul.f32 %v4522, %v42
    %v4566 = vmul.f32 %v4525, %v43
    %v4567 = vmul.f32 %v4528, %v44
    %v4568 = vmul.f32 %v4531, %v45
    %v4569 = vmul.f32 %v4534, %v46
    %v4570 = vmul.f32 %v4537, %v47
    %v4571 = vmul.f32 %v4540, %v48
    %v4572 = vmul.f32 %v4543, %v49
    %v4573 = vmul.f32 %v4546, %v50
    %v4574 = vmul.f32 %v4549, %v51
    %v4575 = vmul.f32 %v4552, %v52
    %v4576 = vmul.f32 %v4555, %v53
    %v4577 = vmul.f32 %v4558, %v54
    %v4578 = vmul.f32 %v4561, %v55
    %4579 = vmatpush.msra.mxu0 %v4578
    %4580 = vmatpush.msra.mxu0 %v4577
    %4581 = vmatpush.msra.mxu0 %v4576
    %4582 = vmatpush.msra.mxu0 %v4575
    %4583 = vmatpush.msra.mxu0 %v4574
    %4584 = vmatpush.msra.mxu0 %v4573
    %4585 = vmatpush.msra.mxu0 %v4572
    %4586 = vmatpush.msra.mxu0 %v4571
    %4587 = vmatpush.msra.mxu0 %v4570
    %4588 = vmatpush.msra.mxu0 %v4569
    %4589 = vmatpush.msra.mxu0 %v4568
    %4590 = vmatpush.msra.mxu0 %v4567
    %4591 = vmatpush.msra.mxu0 %v4566
    %4592 = vmatpush.msra.mxu0 %v4565
    %4593 = vmatpush.msra.mxu0 %v4564
    %4594 = vmatpush.msra.mxu0 %v4563
    %4595 = vmatmul.f32.gmra.mxu0 %v437
    %v4596 = vpop.f32.mrf.mxu0
    %v4597 = vadd.f32 0.0, %v4596
    %4598 = vmatmul.f32.gmra.mxu0 %v438
    %v4599 = vpop.f32.mrf.mxu0
    %v4600 = vadd.f32 0.0, %v4599
    %4601 = vdwg.mxu0
    %v4602 = vperm.slane %v275, 1
    %v4604 = vsel %vm446, %v4597, 0
    %v4607 = vsel %vm446, %v4600, 0
    %4609 = vmatpush.msra.mxu0 0.0
    %4610 = vmatpush.msra.mxu0 0.0
    %4611 = vmatpush.msra.mxu0 0.0
    %4612 = vmatpush.msra.mxu0 0.0
    %4613 = vmatpush.msra.mxu0 0.0
    %4614 = vmatpush.msra.mxu0 0.0
    %4615 = vmatpush.msra.mxu0 0.0
    %4616 = vmatpush.msra.mxu0 0.0
    %4617 = vmatpush.msra.mxu0 0.0
    %4618 = vmatpush.msra.mxu0 0.0
    %4619 = vmatpush.msra.mxu0 %v4085
    %4620 = vmatpush.msra.mxu0 %v4084
    %4621 = vmatpush.msra.mxu0 %v4083
    %4622 = vmatpush.msra.mxu0 %v4082
    %4623 = vmatpush.msra.mxu0 %v4081
    %4624 = vmatpush.msra.mxu0 %v4080
    %4625 = vmatmul.f32.gmra.mxu0 %v4604
    %v4626 = vpop.f32.mrf.mxu0
    %v4627 = vadd.f32 %v4602, %v4626
    %4628 = vmatmul.f32.gmra.mxu0 %v4607
    %v4629 = vpop.f32.mrf.mxu0
    %v4630 = vadd.f32 %v4602, %v4629
    %4631 = vdwg.mxu0
    %v4632 = vperm.slane %v276, 1
    %v4634 = vsel %vm446, %v4627, 0
    %v4637 = vsel %vm446, %v4630, 0
    %4639 = vmatpush.msra.mxu0 0.0
    %4640 = vmatpush.msra.mxu0 0.0
    %4641 = vmatpush.msra.mxu0 0.0
    %4642 = vmatpush.msra.mxu0 0.0
    %4643 = vmatpush.msra.mxu0 0.0
    %4644 = vmatpush.msra.mxu0 0.0
    %4645 = vmatpush.msra.mxu0 0.0
    %4646 = vmatpush.msra.mxu0 0.0
    %4647 = vmatpush.msra.mxu0 0.0
    %4648 = vmatpush.msra.mxu0 0.0
    %4649 = vmatpush.msra.mxu0 %v4091
    %4650 = vmatpush.msra.mxu0 %v4090
    %4651 = vmatpush.msra.mxu0 %v4089
    %4652 = vmatpush.msra.mxu0 %v4088
    %4653 = vmatpush.msra.mxu0 %v4087
    %4654 = vmatpush.msra.mxu0 %v4086
    %4655 = vmatmul.f32.gmra.mxu0 %v4634
    %v4656 = vpop.f32.mrf.mxu0
    %v4657 = vadd.f32 %v4632, %v4656
    %4658 = vmatmul.f32.gmra.mxu0 %v4637
    %v4659 = vpop.f32.mrf.mxu0
    %v4660 = vadd.f32 %v4632, %v4659
    %4661 = vdwg.mxu0
    %v4662 = vld [vmem:[%s1 + $0xa40] sm:$0xff]
    %v4663 = vld [vmem:[%s1 + $0xa48] sm:$0xff]
    %v4664 = vld [vmem:[%s1 + $0xa50] sm:$0xff]
    %v4665 = vld [vmem:[%s1 + $0xa58] sm:$0xff]
    %v4666 = vld [vmem:[%s1 + $0xa60] sm:$0xff]
    %v4667 = vld [vmem:[%s1 + $0xa68] sm:$0xff]
    %v4668 = vld [vmem:[%s1 + $0xa70] sm:$0xff]
    %v4669 = vld [vmem:[%s1 + $0xa78] sm:$0xff]
    %v4670 = vld [vmem:[%s1 + $0xa80] sm:$0xff]
    %v4671 = vld [vmem:[%s1 + $0xa88] sm:$0xff]
    %v4672 = vld [vmem:[%s1 + $0xa90] sm:$0xff]
    %v4673 = vld [vmem:[%s1 + $0xa98] sm:$0xff]
    %v4674 = vld [vmem:[%s1 + $0xaa0] sm:$0xff]
    %v4675 = vld [vmem:[%s1 + $0xaa8] sm:$0xff]
    %v4676 = vld [vmem:[%s1 + $0xab0] sm:$0xff]
    %v4677 = vld [vmem:[%s1 + $0xab8] sm:$0xff]
    %v4678 = vld [vmem:[%s1 + $0xac0] sm:$0xff]
    %v4679 = vld [vmem:[%s1 + $0xac8] sm:$0xff]
    %v4680 = vld [vmem:[%s1 + $0x820] sm:$0xff]
    %v4681 = vld [vmem:[%s1 + $0x828] sm:$0xff]
    %v4682 = vld [vmem:[%s1 + $0x830] sm:$0xff]
    %v4683 = vld [vmem:[%s1 + $0x838] sm:$0xff]
    %v4684 = vld [vmem:[%s1 + $0x840] sm:$0xff]
    %v4685 = vld [vmem:[%s1 + $0x848] sm:$0xff]
    %v4686 = vld [vmem:[%s1 + $0x850] sm:$0xff]
    %v4687 = vld [vmem:[%s1 + $0x858] sm:$0xff]
    %v4688 = vld [vmem:[%s1 + $0x860] sm:$0xff]
    %v4689 = vld [vmem:[%s1 + $0x868] sm:$0xff]
    %v4690 = vld [vmem:[%s1 + $0x870] sm:$0xff]
    %v4691 = vld [vmem:[%s1 + $0x878] sm:$0xff]
    %v4692 = vld [vmem:[%s1 + $0x880] sm:$0xff]
    %v4693 = vld [vmem:[%s1 + $0x888] sm:$0xff]
    %v4694 = vld [vmem:[%s1 + $0x890] sm:$0xff]
    %v4695 = vld [vmem:[%s1 + $0x898] sm:$0xff]
    %v4696 = vld [vmem:[%s1 + $0x8a0] sm:$0xff]
    %v4697 = vld [vmem:[%s1 + $0x8a8] sm:$0xff]
    %v4698 = vld [vmem:[%s1 + $0x8b0] sm:$0xff]
    %v4699 = vld [vmem:[%s1 + $0x8b8] sm:$0xff]
    %v4700 = vld [vmem:[%s1 + $0x8c0] sm:$0xff]
    %v4701 = vld [vmem:[%s1 + $0x8c8] sm:$0xff]
    %v4702 = vld [vmem:[%s1 + $0x8d0] sm:$0xff]
    %v4703 = vld [vmem:[%s1 + $0x8d8] sm:$0xff]
    %v4704 = vld [vmem:[%s1 + $0x8e0] sm:$0xff]
    %v4705 = vld [vmem:[%s1 + $0x8e8] sm:$0xff]
    %v4706 = vld [vmem:[%s1 + $0x8f0] sm:$0xff]
    %v4707 = vld [vmem:[%s1 + $0x8f8] sm:$0xff]
    %v4708 = vld [vmem:[%s1 + $0x900] sm:$0xff]
    %v4709 = vld [vmem:[%s1 + $0x908] sm:$0xff]
    %v4710 = vld [vmem:[%s1 + $0x910] sm:$0xff]
    %v4711 = vld [vmem:[%s1 + $0x918] sm:$0xff]
    %v4712 = vperm.slane %v274, 2
    %v4714 = vsel %vm446, %v4657, 0
    %v4717 = vsel %vm446, %v4660, 0
    %4719 = vmatpush.msra.mxu0 0.0
    %4720 = vmatpush.msra.mxu0 0.0
    %4721 = vmatpush.msra.mxu0 0.0
    %4722 = vmatpush.msra.mxu0 0.0
    %4723 = vmatpush.msra.mxu0 0.0
    %4724 = vmatpush.msra.mxu0 0.0
    %4725 = vmatpush.msra.mxu0 0.0
    %4726 = vmatpush.msra.mxu0 0.0
    %4727 = vmatpush.msra.mxu0 0.0
    %4728 = vmatpush.msra.mxu0 0.0
    %4729 = vmatpush.msra.mxu0 %v4667
    %4730 = vmatpush.msra.mxu0 %v4666
    %4731 = vmatpush.msra.mxu0 %v4665
    %4732 = vmatpush.msra.mxu0 %v4664
    %4733 = vmatpush.msra.mxu0 %v4663
    %4734 = vmatpush.msra.mxu0 %v4662
    %4735 = vmatmul.f32.gmra.mxu0 %v4714
    %v4736 = vpop.f32.mrf.mxu0
    %v4737 = vadd.f32 %v4712, %v4736
    %4738 = vmatmul.f32.gmra.mxu0 %v4717
    %v4739 = vpop.f32.mrf.mxu0
    %v4740 = vadd.f32 %v4712, %v4739
    %4741 = vdwg.mxu0
    %4742 = vmatpush.msra.mxu0 0.0
    %4743 = vmatpush.msra.mxu0 0.0
    %4744 = vmatpush.msra.mxu0 0.0
    %4745 = vmatpush.msra.mxu0 0.0
    %4746 = vmatpush.msra.mxu0 0.0
    %4747 = vmatpush.msra.mxu0 0.0
    %4748 = vmatpush.msra.mxu0 0.0
    %4749 = vmatpush.msra.mxu0 0.0
    %4750 = vmatpush.msra.mxu0 0.0
    %4751 = vmatpush.msra.mxu0 0.0
    %4752 = vmatpush.msra.mxu0 0.0
    %4753 = vmatpush.msra.mxu0 0.0
    %4754 = vmatpush.msra.mxu0 0.0
    %4755 = vmatpush.msra.mxu0 0.0
    %4756 = vmatpush.msra.mxu0 %v4740
    %4757 = vmatpush.msra.mxu0 %v4737
    %4758 = vmatmul.f32.gmra.mxu0 %v592
    %v4759 = vpop.f32.mrf.mxu0
    %v4760 = vadd.f32 0.0, %v4759
    %4761 = vmatmul.f32.gmra.mxu0 %v595
    %v4762 = vpop.f32.mrf.mxu0
    %v4763 = vadd.f32 0.0, %v4762
    %4764 = vmatmul.f32.gmra.mxu0 %v598
    %v4765 = vpop.f32.mrf.mxu0
    %v4766 = vadd.f32 0.0, %v4765
    %4767 = vmatmul.f32.gmra.mxu0 %v601
    %v4768 = vpop.f32.mrf.mxu0
    %v4769 = vadd.f32 0.0, %v4768
    %4770 = vmatmul.f32.gmra.mxu0 %v604
    %v4771 = vpop.f32.mrf.mxu0
    %v4772 = vadd.f32 0.0, %v4771
    %4773 = vmatmul.f32.gmra.mxu0 %v607
    %v4774 = vpop.f32.mrf.mxu0
    %v4775 = vadd.f32 0.0, %v4774
    %4776 = vmatmul.f32.gmra.mxu0 %v610
    %v4777 = vpop.f32.mrf.mxu0
    %v4778 = vadd.f32 0.0, %v4777
    %4779 = vmatmul.f32.gmra.mxu0 %v613
    %v4780 = vpop.f32.mrf.mxu0
    %v4781 = vadd.f32 0.0, %v4780
    %4782 = vmatmul.f32.gmra.mxu0 %v616
    %v4783 = vpop.f32.mrf.mxu0
    %v4784 = vadd.f32 0.0, %v4783
    %4785 = vmatmul.f32.gmra.mxu0 %v619
    %v4786 = vpop.f32.mrf.mxu0
    %v4787 = vadd.f32 0.0, %v4786
    %4788 = vmatmul.f32.gmra.mxu0 %v622
    %v4789 = vpop.f32.mrf.mxu0
    %v4790 = vadd.f32 0.0, %v4789
    %4791 = vmatmul.f32.gmra.mxu0 %v625
    %v4792 = vpop.f32.mrf.mxu0
    %v4793 = vadd.f32 0.0, %v4792
    %4794 = vmatmul.f32.gmra.mxu0 %v628
    %v4795 = vpop.f32.mrf.mxu0
    %v4796 = vadd.f32 0.0, %v4795
    %4797 = vmatmul.f32.gmra.mxu0 %v631
    %v4798 = vpop.f32.mrf.mxu0
    %v4799 = vadd.f32 0.0, %v4798
    %4800 = vmatmul.f32.gmra.mxu0 %v634
    %v4801 = vpop.f32.mrf.mxu0
    %v4802 = vadd.f32 0.0, %v4801
    %4803 = vmatmul.f32.gmra.mxu0 %v637
    %v4804 = vpop.f32.mrf.mxu0
    %v4805 = vadd.f32 0.0, %v4804
    %4806 = vdwg.mxu0
    %v4807 = vmul.f32 %v4760, %v40
    %v4808 = vmul.f32 %v4763, %v41
    %v4809 = vmul.f32 %v4766, %v42
    %v4810 = vmul.f32 %v4769, %v43
    %v4811 = vmul.f32 %v4772, %v44
    %v4812 = vmul.f32 %v4775, %v45
    %v4813 = vmul.f32 %v4778, %v46
    %v4814 = vmul.f32 %v4781, %v47
    %v4815 = vmul.f32 %v4784, %v48
    %v4816 = vmul.f32 %v4787, %v49
    %v4817 = vmul.f32 %v4790, %v50
    %v4818 = vmul.f32 %v4793, %v51
    %v4819 = vmul.f32 %v4796, %v52
    %v4820 = vmul.f32 %v4799, %v53
    %v4821 = vmul.f32 %v4802, %v54
    %v4822 = vmul.f32 %v4805, %v55
    %v4823 = vld [vmem:[%s9] sm:$0xff]
    %v4824 = vld [vmem:[%s9 + $0x8] sm:$0xff]
    %v4825 = vld [vmem:[%s9 + $0x10] sm:$0xff]
    %v4826 = vld [vmem:[%s9 + $0x18] sm:$0xff]
    %v4827 = vld [vmem:[%s9 + $0x20] sm:$0xff]
    %v4828 = vld [vmem:[%s9 + $0x28] sm:$0xff]
    %v4829 = vld [vmem:[%s9 + $0x30] sm:$0xff]
    %v4830 = vld [vmem:[%s9 + $0x38] sm:$0xff]
    %v4831 = vld [vmem:[%s9 + $0x40] sm:$0xff]
    %v4832 = vld [vmem:[%s9 + $0x48] sm:$0xff]
    %v4833 = vld [vmem:[%s9 + $0x50] sm:$0xff]
    %v4834 = vld [vmem:[%s9 + $0x58] sm:$0xff]
    %v4836 = vsel %vm446, %v4807, 0
    %v4839 = vsel %vm446, %v4808, 0
    %v4842 = vsel %vm446, %v4809, 0
    %v4845 = vsel %vm446, %v4810, 0
    %v4848 = vsel %vm446, %v4811, 0
    %v4851 = vsel %vm446, %v4812, 0
    %v4854 = vsel %vm446, %v4813, 0
    %v4857 = vsel %vm446, %v4814, 0
    %v4860 = vsel %vm446, %v4815, 0
    %v4863 = vsel %vm446, %v4816, 0
    %v4866 = vsel %vm446, %v4817, 0
    %v4869 = vsel %vm446, %v4818, 0
    %v4872 = vsel %vm446, %v4819, 0
    %v4875 = vsel %vm446, %v4820, 0
    %v4878 = vsel %vm446, %v4821, 0
    %v4881 = vsel %vm446, %v4822, 0
    %4883 = vmatpush.msra.mxu0 0.0
    %4884 = vmatpush.msra.mxu0 0.0
    %4885 = vmatpush.msra.mxu0 0.0
    %4886 = vmatpush.msra.mxu0 0.0
    %4887 = vmatpush.msra.mxu0 0.0
    %4888 = vmatpush.msra.mxu0 0.0
    %4889 = vmatpush.msra.mxu0 0.0
    %4890 = vmatpush.msra.mxu0 0.0
    %4891 = vmatpush.msra.mxu0 0.0
    %4892 = vmatpush.msra.mxu0 0.0
    %4893 = vmatpush.msra.mxu0 %v4833
    %4894 = vmatpush.msra.mxu0 %v4831
    %4895 = vmatpush.msra.mxu0 %v4829
    %4896 = vmatpush.msra.mxu0 %v4827
    %4897 = vmatpush.msra.mxu0 %v4825
    %4898 = vmatpush.msra.mxu0 %v4823
    %4899 = vmatmul.f32.gmra.mxu0 %v4836
    %v4900 = vpop.f32.mrf.mxu0
    %v4901 = vadd.f32 0.0, %v4900
    %4902 = vmatmul.f32.gmra.mxu0 %v4839
    %v4903 = vpop.f32.mrf.mxu0
    %v4904 = vadd.f32 0.0, %v4903
    %4905 = vmatmul.f32.gmra.mxu0 %v4842
    %v4906 = vpop.f32.mrf.mxu0
    %v4907 = vadd.f32 0.0, %v4906
    %4908 = vmatmul.f32.gmra.mxu0 %v4845
    %v4909 = vpop.f32.mrf.mxu0
    %v4910 = vadd.f32 0.0, %v4909
    %4911 = vmatmul.f32.gmra.mxu0 %v4848
    %v4912 = vpop.f32.mrf.mxu0
    %v4913 = vadd.f32 0.0, %v4912
    %4914 = vmatmul.f32.gmra.mxu0 %v4851
    %v4915 = vpop.f32.mrf.mxu0
    %v4916 = vadd.f32 0.0, %v4915
    %4917 = vmatmul.f32.gmra.mxu0 %v4854
    %v4918 = vpop.f32.mrf.mxu0
    %v4919 = vadd.f32 0.0, %v4918
    %4920 = vmatmul.f32.gmra.mxu0 %v4857
    %v4921 = vpop.f32.mrf.mxu0
    %v4922 = vadd.f32 0.0, %v4921
    %4923 = vmatmul.f32.gmra.mxu0 %v4860
    %v4924 = vpop.f32.mrf.mxu0
    %v4925 = vadd.f32 0.0, %v4924
    %4926 = vmatmul.f32.gmra.mxu0 %v4863
    %v4927 = vpop.f32.mrf.mxu0
    %v4928 = vadd.f32 0.0, %v4927
    %4929 = vmatmul.f32.gmra.mxu0 %v4866
    %v4930 = vpop.f32.mrf.mxu0
    %v4931 = vadd.f32 0.0, %v4930
    %4932 = vmatmul.f32.gmra.mxu0 %v4869
    %v4933 = vpop.f32.mrf.mxu0
    %v4934 = vadd.f32 0.0, %v4933
    %4935 = vmatmul.f32.gmra.mxu0 %v4872
    %v4936 = vpop.f32.mrf.mxu0
    %v4937 = vadd.f32 0.0, %v4936
    %4938 = vmatmul.f32.gmra.mxu0 %v4875
    %v4939 = vpop.f32.mrf.mxu0
    %v4940 = vadd.f32 0.0, %v4939
    %4941 = vmatmul.f32.gmra.mxu0 %v4878
    %v4942 = vpop.f32.mrf.mxu0
    %v4943 = vadd.f32 0.0, %v4942
    %4944 = vmatmul.f32.gmra.mxu0 %v4881
    %v4945 = vpop.f32.mrf.mxu0
    %v4946 = vadd.f32 0.0, %v4945
    %4947 = vdwg.mxu0
    %4948 = vmatpush.msra.mxu0 0.0
    %4949 = vmatpush.msra.mxu0 0.0
    %4950 = vmatpush.msra.mxu0 0.0
    %4951 = vmatpush.msra.mxu0 0.0
    %4952 = vmatpush.msra.mxu0 0.0
    %4953 = vmatpush.msra.mxu0 0.0
    %4954 = vmatpush.msra.mxu0 0.0
    %4955 = vmatpush.msra.mxu0 0.0
    %4956 = vmatpush.msra.mxu0 0.0
    %4957 = vmatpush.msra.mxu0 0.0
    %4958 = vmatpush.msra.mxu0 %v4834
    %4959 = vmatpush.msra.mxu0 %v4832
    %4960 = vmatpush.msra.mxu0 %v4830
    %4961 = vmatpush.msra.mxu0 %v4828
    %4962 = vmatpush.msra.mxu0 %v4826
    %4963 = vmatpush.msra.mxu0 %v4824
    %4964 = vmatmul.f32.gmra.mxu0 %v4836
    %v4965 = vpop.f32.mrf.mxu0
    %v4966 = vadd.f32 0.0, %v4965
    %4967 = vmatmul.f32.gmra.mxu0 %v4839
    %v4968 = vpop.f32.mrf.mxu0
    %v4969 = vadd.f32 0.0, %v4968
    %4970 = vmatmul.f32.gmra.mxu0 %v4842
    %v4971 = vpop.f32.mrf.mxu0
    %v4972 = vadd.f32 0.0, %v4971
    %4973 = vmatmul.f32.gmra.mxu0 %v4845
    %v4974 = vpop.f32.mrf.mxu0
    %v4975 = vadd.f32 0.0, %v4974
    %4976 = vmatmul.f32.gmra.mxu0 %v4848
    %v4977 = vpop.f32.mrf.mxu0
    %v4978 = vadd.f32 0.0, %v4977
    %4979 = vmatmul.f32.gmra.mxu0 %v4851
    %v4980 = vpop.f32.mrf.mxu0
    %v4981 = vadd.f32 0.0, %v4980
    %4982 = vmatmul.f32.gmra.mxu0 %v4854
    %v4983 = vpop.f32.mrf.mxu0
    %v4984 = vadd.f32 0.0, %v4983
    %4985 = vmatmul.f32.gmra.mxu0 %v4857
    %v4986 = vpop.f32.mrf.mxu0
    %v4987 = vadd.f32 0.0, %v4986
    %4988 = vmatmul.f32.gmra.mxu0 %v4860
    %v4989 = vpop.f32.mrf.mxu0
    %v4990 = vadd.f32 0.0, %v4989
    %4991 = vmatmul.f32.gmra.mxu0 %v4863
    %v4992 = vpop.f32.mrf.mxu0
    %v4993 = vadd.f32 0.0, %v4992
    %4994 = vmatmul.f32.gmra.mxu0 %v4866
    %v4995 = vpop.f32.mrf.mxu0
    %v4996 = vadd.f32 0.0, %v4995
    %4997 = vmatmul.f32.gmra.mxu0 %v4869
    %v4998 = vpop.f32.mrf.mxu0
    %v4999 = vadd.f32 0.0, %v4998
    %5000 = vmatmul.f32.gmra.mxu0 %v4872
    %v5001 = vpop.f32.mrf.mxu0
    %v5002 = vadd.f32 0.0, %v5001
    %5003 = vmatmul.f32.gmra.mxu0 %v4875
    %v5004 = vpop.f32.mrf.mxu0
    %v5005 = vadd.f32 0.0, %v5004
    %5006 = vmatmul.f32.gmra.mxu0 %v4878
    %v5007 = vpop.f32.mrf.mxu0
    %v5008 = vadd.f32 0.0, %v5007
    %5009 = vmatmul.f32.gmra.mxu0 %v4881
    %v5010 = vpop.f32.mrf.mxu0
    %v5011 = vadd.f32 0.0, %v5010
    %5012 = vdwg.mxu0
    %v5013 = vmul.f32 %v4901, 0.4082483
    %v5014 = vmul.f32 %v4966, 0.4082483
    %v5015 = vmul.f32 %v4904, 0.4082483
    %v5016 = vmul.f32 %v4969, 0.4082483
    %v5017 = vmul.f32 %v4907, 0.4082483
    %v5018 = vmul.f32 %v4972, 0.4082483
    %v5019 = vmul.f32 %v4910, 0.4082483
    %v5020 = vmul.f32 %v4975, 0.4082483
    %v5021 = vmul.f32 %v4913, 0.4082483
    %v5022 = vmul.f32 %v4978, 0.4082483
    %v5023 = vmul.f32 %v4916, 0.4082483
    %v5024 = vmul.f32 %v4981, 0.4082483
    %v5025 = vmul.f32 %v4919, 0.4082483
    %v5026 = vmul.f32 %v4984, 0.4082483
    %v5027 = vmul.f32 %v4922, 0.4082483
    %v5028 = vmul.f32 %v4987, 0.4082483
    %v5029 = vmul.f32 %v4925, 0.4082483
    %v5030 = vmul.f32 %v4990, 0.4082483
    %v5031 = vmul.f32 %v4928, 0.4082483
    %v5032 = vmul.f32 %v4993, 0.4082483
    %v5033 = vmul.f32 %v4931, 0.4082483
    %v5034 = vmul.f32 %v4996, 0.4082483
    %v5035 = vmul.f32 %v4934, 0.4082483
    %v5036 = vmul.f32 %v4999, 0.4082483
    %v5037 = vmul.f32 %v4937, 0.4082483
    %v5038 = vmul.f32 %v5002, 0.4082483
    %v5039 = vmul.f32 %v4940, 0.4082483
    %v5040 = vmul.f32 %v5005, 0.4082483
    %v5041 = vmul.f32 %v4943, 0.4082483
    %v5042 = vmul.f32 %v5008, 0.4082483
    %v5043 = vmul.f32 %v4946, 0.4082483
    %v5044 = vmul.f32 %v5011, 0.4082483
    %v5045 = vmax.f32 %v5013, %v5014
    %5046 = vmax.xlane.f32.xlu0 %v5045
    %v5047 = vpop.xlane.xlu0 %5046
    %v5048 = vmax.f32 %v5015, %v5016
    %5049 = vmax.xlane.f32.xlu0 %v5048
    %v5050 = vpop.xlane.xlu0 %5049
    %v5051 = vmax.f32 %v5017, %v5018
    %5052 = vmax.xlane.f32.xlu0 %v5051
    %v5053 = vpop.xlane.xlu0 %5052
    %v5054 = vmax.f32 %v5019, %v5020
    %5055 = vmax.xlane.f32.xlu0 %v5054
    %v5056 = vpop.xlane.xlu0 %5055
    %v5057 = vmax.f32 %v5021, %v5022
    %5058 = vmax.xlane.f32.xlu0 %v5057
    %v5059 = vpop.xlane.xlu0 %5058
    %v5060 = vmax.f32 %v5023, %v5024
    %5061 = vmax.xlane.f32.xlu0 %v5060
    %v5062 = vpop.xlane.xlu0 %5061
    %v5063 = vmax.f32 %v5025, %v5026
    %5064 = vmax.xlane.f32.xlu0 %v5063
    %v5065 = vpop.xlane.xlu0 %5064
    %v5066 = vmax.f32 %v5027, %v5028
    %5067 = vmax.xlane.f32.xlu0 %v5066
    %v5068 = vpop.xlane.xlu0 %5067
    %v5069 = vmax.f32 %v5029, %v5030
    %5070 = vmax.xlane.f32.xlu0 %v5069
    %v5071 = vpop.xlane.xlu0 %5070
    %v5072 = vmax.f32 %v5031, %v5032
    %5073 = vmax.xlane.f32.xlu0 %v5072
    %v5074 = vpop.xlane.xlu0 %5073
    %v5075 = vmax.f32 %v5033, %v5034
    %5076 = vmax.xlane.f32.xlu0 %v5075
    %v5077 = vpop.xlane.xlu0 %5076
    %v5078 = vmax.f32 %v5035, %v5036
    %5079 = vmax.xlane.f32.xlu0 %v5078
    %v5080 = vpop.xlane.xlu0 %5079
    %v5081 = vmax.f32 %v5037, %v5038
    %5082 = vmax.xlane.f32.xlu0 %v5081
    %v5083 = vpop.xlane.xlu0 %5082
    %v5084 = vmax.f32 %v5039, %v5040
    %5085 = vmax.xlane.f32.xlu0 %v5084
    %v5086 = vpop.xlane.xlu0 %5085
    %v5087 = vmax.f32 %v5041, %v5042
    %5088 = vmax.xlane.f32.xlu0 %v5087
    %v5089 = vpop.xlane.xlu0 %5088
    %v5090 = vmax.f32 %v5043, %v5044
    %5091 = vmax.xlane.f32.xlu0 %v5090
    %v5092 = vpop.xlane.xlu0 %5091
    %v5093 = vsub.f32 %v5013, %v5047
    %v5094 = vsub.f32 %v5014, %v5047
    %v5095 = vsub.f32 %v5015, %v5050
    %v5096 = vsub.f32 %v5016, %v5050
    %v5097 = vsub.f32 %v5017, %v5053
    %v5098 = vsub.f32 %v5018, %v5053
    %v5099 = vsub.f32 %v5019, %v5056
    %v5100 = vsub.f32 %v5020, %v5056
    %v5101 = vsub.f32 %v5021, %v5059
    %v5102 = vsub.f32 %v5022, %v5059
    %v5103 = vsub.f32 %v5023, %v5062
    %v5104 = vsub.f32 %v5024, %v5062
    %v5105 = vsub.f32 %v5025, %v5065
    %v5106 = vsub.f32 %v5026, %v5065
    %v5107 = vsub.f32 %v5027, %v5068
    %v5108 = vsub.f32 %v5028, %v5068
    %v5109 = vsub.f32 %v5029, %v5071
    %v5110 = vsub.f32 %v5030, %v5071
    %v5111 = vsub.f32 %v5031, %v5074
    %v5112 = vsub.f32 %v5032, %v5074
    %v5113 = vsub.f32 %v5033, %v5077
    %v5114 = vsub.f32 %v5034, %v5077
    %v5115 = vsub.f32 %v5035, %v5080
    %v5116 = vsub.f32 %v5036, %v5080
    %v5117 = vsub.f32 %v5037, %v5083
    %v5118 = vsub.f32 %v5038, %v5083
    %v5119 = vsub.f32 %v5039, %v5086
    %v5120 = vsub.f32 %v5040, %v5086
    %v5121 = vsub.f32 %v5041, %v5089
    %v5122 = vsub.f32 %v5042, %v5089
    %v5123 = vsub.f32 %v5043, %v5092
    %v5124 = vsub.f32 %v5044, %v5092
    %v5125 = vmul.f32 %v5093, 1.442695
    %v5126 = vpow.pop %v5125
    %v5127 = vmul.f32 %v5094, 1.442695
    %v5128 = vpow.pop %v5127
    %v5129 = vmul.f32 %v5095, 1.442695
    %v5130 = vpow.pop %v5129
    %v5131 = vmul.f32 %v5096, 1.442695
    %v5132 = vpow.pop %v5131
    %v5133 = vmul.f32 %v5097, 1.442695
    %v5134 = vpow.pop %v5133
    %v5135 = vmul.f32 %v5098, 1.442695
    %v5136 = vpow.pop %v5135
    %v5137 = vmul.f32 %v5099, 1.442695
    %v5138 = vpow.pop %v5137
    %v5139 = vmul.f32 %v5100, 1.442695
    %v5140 = vpow.pop %v5139
    %v5141 = vmul.f32 %v5101, 1.442695
    %v5142 = vpow.pop %v5141
    %v5143 = vmul.f32 %v5102, 1.442695
    %v5144 = vpow.pop %v5143
    %v5145 = vmul.f32 %v5103, 1.442695
    %v5146 = vpow.pop %v5145
    %v5147 = vmul.f32 %v5104, 1.442695
    %v5148 = vpow.pop %v5147
    %v5149 = vmul.f32 %v5105, 1.442695
    %v5150 = vpow.pop %v5149
    %v5151 = vmul.f32 %v5106, 1.442695
    %v5152 = vpow.pop %v5151
    %v5153 = vmul.f32 %v5107, 1.442695
    %v5154 = vpow.pop %v5153
    %v5155 = vmul.f32 %v5108, 1.442695
    %v5156 = vpow.pop %v5155
    %v5157 = vmul.f32 %v5109, 1.442695
    %v5158 = vpow.pop %v5157
    %v5159 = vmul.f32 %v5110, 1.442695
    %v5160 = vpow.pop %v5159
    %v5161 = vmul.f32 %v5111, 1.442695
    %v5162 = vpow.pop %v5161
    %v5163 = vmul.f32 %v5112, 1.442695
    %v5164 = vpow.pop %v5163
    %v5165 = vmul.f32 %v5113, 1.442695
    %v5166 = vpow.pop %v5165
    %v5167 = vmul.f32 %v5114, 1.442695
    %v5168 = vpow.pop %v5167
    %v5169 = vmul.f32 %v5115, 1.442695
    %v5170 = vpow.pop %v5169
    %v5171 = vmul.f32 %v5116, 1.442695
    %v5172 = vpow.pop %v5171
    %v5173 = vmul.f32 %v5117, 1.442695
    %v5174 = vpow.pop %v5173
    %v5175 = vmul.f32 %v5118, 1.442695
    %v5176 = vpow.pop %v5175
    %v5177 = vmul.f32 %v5119, 1.442695
    %v5178 = vpow.pop %v5177
    %v5179 = vmul.f32 %v5120, 1.442695
    %v5180 = vpow.pop %v5179
    %v5181 = vmul.f32 %v5121, 1.442695
    %v5182 = vpow.pop %v5181
    %v5183 = vmul.f32 %v5122, 1.442695
    %v5184 = vpow.pop %v5183
    %v5185 = vmul.f32 %v5123, 1.442695
    %v5186 = vpow.pop %v5185
    %v5187 = vmul.f32 %v5124, 1.442695
    %v5188 = vpow.pop %v5187
    %v5189 = vadd.f32 %v5126, %v5128
    %5190 = vadd.xlane.f32.xlu0 %v5189
    %v5191 = vpop.xlane.xlu0 %5190
    %v5192 = vadd.f32 %v5130, %v5132
    %5193 = vadd.xlane.f32.xlu0 %v5192
    %v5194 = vpop.xlane.xlu0 %5193
    %v5195 = vadd.f32 %v5134, %v5136
    %5196 = vadd.xlane.f32.xlu0 %v5195
    %v5197 = vpop.xlane.xlu0 %5196
    %v5198 = vadd.f32 %v5138, %v5140
    %5199 = vadd.xlane.f32.xlu0 %v5198
    %v5200 = vpop.xlane.xlu0 %5199
    %v5201 = vadd.f32 %v5142, %v5144
    %5202 = vadd.xlane.f32.xlu0 %v5201
    %v5203 = vpop.xlane.xlu0 %5202
    %v5204 = vadd.f32 %v5146, %v5148
    %5205 = vadd.xlane.f32.xlu0 %v5204
    %v5206 = vpop.xlane.xlu0 %5205
    %v5207 = vadd.f32 %v5150, %v5152
    %5208 = vadd.xlane.f32.xlu0 %v5207
    %v5209 = vpop.xlane.xlu0 %5208
    %v5210 = vadd.f32 %v5154, %v5156
    %5211 = vadd.xlane.f32.xlu0 %v5210
    %v5212 = vpop.xlane.xlu0 %5211
    %v5213 = vadd.f32 %v5158, %v5160
    %5214 = vadd.xlane.f32.xlu0 %v5213
    %v5215 = vpop.xlane.xlu0 %5214
    %v5216 = vadd.f32 %v5162, %v5164
    %5217 = vadd.xlane.f32.xlu0 %v5216
    %v5218 = vpop.xlane.xlu0 %5217
    %v5219 = vadd.f32 %v5166, %v5168
    %5220 = vadd.xlane.f32.xlu0 %v5219
    %v5221 = vpop.xlane.xlu0 %5220
    %v5222 = vadd.f32 %v5170, %v5172
    %5223 = vadd.xlane.f32.xlu0 %v5222
    %v5224 = vpop.xlane.xlu0 %5223
    %v5225 = vadd.f32 %v5174, %v5176
    %5226 = vadd.xlane.f32.xlu0 %v5225
    %v5227 = vpop.xlane.xlu0 %5226
    %v5228 = vadd.f32 %v5178, %v5180
    %5229 = vadd.xlane.f32.xlu0 %v5228
    %v5230 = vpop.xlane.xlu0 %5229
    %v5231 = vadd.f32 %v5182, %v5184
    %5232 = vadd.xlane.f32.xlu0 %v5231
    %v5233 = vpop.xlane.xlu0 %5232
    %v5234 = vadd.f32 %v5186, %v5188
    %5235 = vadd.xlane.f32.xlu0 %v5234
    %v5236 = vpop.xlane.xlu0 %5235
    %v5237 = vrcp.pop %v5191
    %v5238 = vrcp.pop %v5194
    %v5239 = vrcp.pop %v5197
    %v5240 = vrcp.pop %v5200
    %v5241 = vrcp.pop %v5203
    %v5242 = vrcp.pop %v5206
    %v5243 = vrcp.pop %v5209
    %v5244 = vrcp.pop %v5212
    %v5245 = vrcp.pop %v5215
    %v5246 = vrcp.pop %v5218
    %v5247 = vrcp.pop %v5221
    %v5248 = vrcp.pop %v5224
    %v5249 = vrcp.pop %v5227
    %v5250 = vrcp.pop %v5230
    %v5251 = vrcp.pop %v5233
    %v5252 = vrcp.pop %v5236
    %v5253 = vmul.f32 %v5126, %v5237
    %v5254 = vmul.f32 %v5128, %v5237
    %v5255 = vmul.f32 %v5130, %v5238
    %v5256 = vmul.f32 %v5132, %v5238
    %v5257 = vmul.f32 %v5134, %v5239
    %v5258 = vmul.f32 %v5136, %v5239
    %v5259 = vmul.f32 %v5138, %v5240
    %v5260 = vmul.f32 %v5140, %v5240
    %v5261 = vmul.f32 %v5142, %v5241
    %v5262 = vmul.f32 %v5144, %v5241
    %v5263 = vmul.f32 %v5146, %v5242
    %v5264 = vmul.f32 %v5148, %v5242
    %v5265 = vmul.f32 %v5150, %v5243
    %v5266 = vmul.f32 %v5152, %v5243
    %v5267 = vmul.f32 %v5154, %v5244
    %v5268 = vmul.f32 %v5156, %v5244
    %v5269 = vmul.f32 %v5158, %v5245
    %v5270 = vmul.f32 %v5160, %v5245
    %v5271 = vmul.f32 %v5162, %v5246
    %v5272 = vmul.f32 %v5164, %v5246
    %v5273 = vmul.f32 %v5166, %v5247
    %v5274 = vmul.f32 %v5168, %v5247
    %v5275 = vmul.f32 %v5170, %v5248
    %v5276 = vmul.f32 %v5172, %v5248
    %v5277 = vmul.f32 %v5174, %v5249
    %v5278 = vmul.f32 %v5176, %v5249
    %v5279 = vmul.f32 %v5178, %v5250
    %v5280 = vmul.f32 %v5180, %v5250
    %v5281 = vmul.f32 %v5182, %v5251
    %v5282 = vmul.f32 %v5184, %v5251
    %v5283 = vmul.f32 %v5186, %v5252
    %v5284 = vmul.f32 %v5188, %v5252
    %5285 = vmatpush.msra.mxu0 %v4695
    %5286 = vmatpush.msra.mxu0 %v4694
    %5287 = vmatpush.msra.mxu0 %v4693
    %5288 = vmatpush.msra.mxu0 %v4692
    %5289 = vmatpush.msra.mxu0 %v4691
    %5290 = vmatpush.msra.mxu0 %v4690
    %5291 = vmatpush.msra.mxu0 %v4689
    %5292 = vmatpush.msra.mxu0 %v4688
    %5293 = vmatpush.msra.mxu0 %v4687
    %5294 = vmatpush.msra.mxu0 %v4686
    %5295 = vmatpush.msra.mxu0 %v4685
    %5296 = vmatpush.msra.mxu0 %v4684
    %5297 = vmatpush.msra.mxu0 %v4683
    %5298 = vmatpush.msra.mxu0 %v4682
    %5299 = vmatpush.msra.mxu0 %v4681
    %5300 = vmatpush.msra.mxu0 %v4680
    %5301 = vmatmul.f32.gmra.mxu0 %v5253
    %v5302 = vpop.f32.mrf.mxu0
    %v5303 = vadd.f32 0.0, %v5302
    %5304 = vmatmul.f32.gmra.mxu0 %v5255
    %v5305 = vpop.f32.mrf.mxu0
    %v5306 = vadd.f32 0.0, %v5305
    %5307 = vmatmul.f32.gmra.mxu0 %v5257
    %v5308 = vpop.f32.mrf.mxu0
    %v5309 = vadd.f32 0.0, %v5308
    %5310 = vmatmul.f32.gmra.mxu0 %v5259
    %v5311 = vpop.f32.mrf.mxu0
    %v5312 = vadd.f32 0.0, %v5311
    %5313 = vmatmul.f32.gmra.mxu0 %v5261
    %v5314 = vpop.f32.mrf.mxu0
    %v5315 = vadd.f32 0.0, %v5314
    %5316 = vmatmul.f32.gmra.mxu0 %v5263
    %v5317 = vpop.f32.mrf.mxu0
    %v5318 = vadd.f32 0.0, %v5317
    %5319 = vmatmul.f32.gmra.mxu0 %v5265
    %v5320 = vpop.f32.mrf.mxu0
    %v5321 = vadd.f32 0.0, %v5320
    %5322 = vmatmul.f32.gmra.mxu0 %v5267
    %v5323 = vpop.f32.mrf.mxu0
    %v5324 = vadd.f32 0.0, %v5323
    %5325 = vmatmul.f32.gmra.mxu0 %v5269
    %v5326 = vpop.f32.mrf.mxu0
    %v5327 = vadd.f32 0.0, %v5326
    %5328 = vmatmul.f32.gmra.mxu0 %v5271
    %v5329 = vpop.f32.mrf.mxu0
    %v5330 = vadd.f32 0.0, %v5329
    %5331 = vmatmul.f32.gmra.mxu0 %v5273
    %v5332 = vpop.f32.mrf.mxu0
    %v5333 = vadd.f32 0.0, %v5332
    %5334 = vmatmul.f32.gmra.mxu0 %v5275
    %v5335 = vpop.f32.mrf.mxu0
    %v5336 = vadd.f32 0.0, %v5335
    %5337 = vmatmul.f32.gmra.mxu0 %v5277
    %v5338 = vpop.f32.mrf.mxu0
    %v5339 = vadd.f32 0.0, %v5338
    %5340 = vmatmul.f32.gmra.mxu0 %v5279
    %v5341 = vpop.f32.mrf.mxu0
    %v5342 = vadd.f32 0.0, %v5341
    %5343 = vmatmul.f32.gmra.mxu0 %v5281
    %v5344 = vpop.f32.mrf.mxu0
    %v5345 = vadd.f32 0.0, %v5344
    %5346 = vmatmul.f32.gmra.mxu0 %v5283
    %v5347 = vpop.f32.mrf.mxu0
    %v5348 = vadd.f32 0.0, %v5347
    %5349 = vdwg.mxu0
    %5350 = vmatpush.msra.mxu0 %v4711
    %5351 = vmatpush.msra.mxu0 %v4710
    %5352 = vmatpush.msra.mxu0 %v4709
    %5353 = vmatpush.msra.mxu0 %v4708
    %5354 = vmatpush.msra.mxu0 %v4707
    %5355 = vmatpush.msra.mxu0 %v4706
    %5356 = vmatpush.msra.mxu0 %v4705
    %5357 = vmatpush.msra.mxu0 %v4704
    %5358 = vmatpush.msra.mxu0 %v4703
    %5359 = vmatpush.msra.mxu0 %v4702
    %5360 = vmatpush.msra.mxu0 %v4701
    %5361 = vmatpush.msra.mxu0 %v4700
    %5362 = vmatpush.msra.mxu0 %v4699
    %5363 = vmatpush.msra.mxu0 %v4698
    %5364 = vmatpush.msra.mxu0 %v4697
    %5365 = vmatpush.msra.mxu0 %v4696
    %5366 = vmatmul.f32.gmra.mxu0 %v5254
    %v5367 = vpop.f32.mrf.mxu0
    %v5368 = vadd.f32 %v5303, %v5367
    %5369 = vmatmul.f32.gmra.mxu0 %v5256
    %v5370 = vpop.f32.mrf.mxu0
    %v5371 = vadd.f32 %v5306, %v5370
    %5372 = vmatmul.f32.gmra.mxu0 %v5258
    %v5373 = vpop.f32.mrf.mxu0
    %v5374 = vadd.f32 %v5309, %v5373
    %5375 = vmatmul.f32.gmra.mxu0 %v5260
    %v5376 = vpop.f32.mrf.mxu0
    %v5377 = vadd.f32 %v5312, %v5376
    %5378 = vmatmul.f32.gmra.mxu0 %v5262
    %v5379 = vpop.f32.mrf.mxu0
    %v5380 = vadd.f32 %v5315, %v5379
    %5381 = vmatmul.f32.gmra.mxu0 %v5264
    %v5382 = vpop.f32.mrf.mxu0
    %v5383 = vadd.f32 %v5318, %v5382
    %5384 = vmatmul.f32.gmra.mxu0 %v5266
    %v5385 = vpop.f32.mrf.mxu0
    %v5386 = vadd.f32 %v5321, %v5385
    %5387 = vmatmul.f32.gmra.mxu0 %v5268
    %v5388 = vpop.f32.mrf.mxu0
    %v5389 = vadd.f32 %v5324, %v5388
    %5390 = vmatmul.f32.gmra.mxu0 %v5270
    %v5391 = vpop.f32.mrf.mxu0
    %v5392 = vadd.f32 %v5327, %v5391
    %5393 = vmatmul.f32.gmra.mxu0 %v5272
    %v5394 = vpop.f32.mrf.mxu0
    %v5395 = vadd.f32 %v5330, %v5394
    %5396 = vmatmul.f32.gmra.mxu0 %v5274
    %v5397 = vpop.f32.mrf.mxu0
    %v5398 = vadd.f32 %v5333, %v5397
    %5399 = vmatmul.f32.gmra.mxu0 %v5276
    %v5400 = vpop.f32.mrf.mxu0
    %v5401 = vadd.f32 %v5336, %v5400
    %5402 = vmatmul.f32.gmra.mxu0 %v5278
    %v5403 = vpop.f32.mrf.mxu0
    %v5404 = vadd.f32 %v5339, %v5403
    %5405 = vmatmul.f32.gmra.mxu0 %v5280
    %v5406 = vpop.f32.mrf.mxu0
    %v5407 = vadd.f32 %v5342, %v5406
    %5408 = vmatmul.f32.gmra.mxu0 %v5282
    %v5409 = vpop.f32.mrf.mxu0
    %v5410 = vadd.f32 %v5345, %v5409
    %5411 = vmatmul.f32.gmra.mxu0 %v5284
    %v5412 = vpop.f32.mrf.mxu0
    %v5413 = vadd.f32 %v5348, %v5412
    %5414 = vdwg.mxu0
    %v5415 = vmul.f32 %v5368, %v40
    %v5416 = vmul.f32 %v5371, %v41
    %v5417 = vmul.f32 %v5374, %v42
    %v5418 = vmul.f32 %v5377, %v43
    %v5419 = vmul.f32 %v5380, %v44
    %v5420 = vmul.f32 %v5383, %v45
    %v5421 = vmul.f32 %v5386, %v46
    %v5422 = vmul.f32 %v5389, %v47
    %v5423 = vmul.f32 %v5392, %v48
    %v5424 = vmul.f32 %v5395, %v49
    %v5425 = vmul.f32 %v5398, %v50
    %v5426 = vmul.f32 %v5401, %v51
    %v5427 = vmul.f32 %v5404, %v52
    %v5428 = vmul.f32 %v5407, %v53
    %v5429 = vmul.f32 %v5410, %v54
    %v5430 = vmul.f32 %v5413, %v55
    %5431 = vmatpush.msra.mxu0 %v5430
    %5432 = vmatpush.msra.mxu0 %v5429
    %5433 = vmatpush.msra.mxu0 %v5428
    %5434 = vmatpush.msra.mxu0 %v5427
    %5435 = vmatpush.msra.mxu0 %v5426
    %5436 = vmatpush.msra.mxu0 %v5425
    %5437 = vmatpush.msra.mxu0 %v5424
    %5438 = vmatpush.msra.mxu0 %v5423
    %5439 = vmatpush.msra.mxu0 %v5422
    %5440 = vmatpush.msra.mxu0 %v5421
    %5441 = vmatpush.msra.mxu0 %v5420
    %5442 = vmatpush.msra.mxu0 %v5419
    %5443 = vmatpush.msra.mxu0 %v5418
    %5444 = vmatpush.msra.mxu0 %v5417
    %5445 = vmatpush.msra.mxu0 %v5416
    %5446 = vmatpush.msra.mxu0 %v5415
    %5447 = vmatmul.f32.gmra.mxu0 %v437
    %v5448 = vpop.f32.mrf.mxu0
    %v5449 = vadd.f32 0.0, %v5448
    %5450 = vmatmul.f32.gmra.mxu0 %v438
    %v5451 = vpop.f32.mrf.mxu0
    %v5452 = vadd.f32 0.0, %v5451
    %5453 = vdwg.mxu0
    %v5454 = vperm.slane %v275, 2
    %v5456 = vsel %vm446, %v5449, 0
    %v5459 = vsel %vm446, %v5452, 0
    %5461 = vmatpush.msra.mxu0 0.0
    %5462 = vmatpush.msra.mxu0 0.0
    %5463 = vmatpush.msra.mxu0 0.0
    %5464 = vmatpush.msra.mxu0 0.0
    %5465 = vmatpush.msra.mxu0 0.0
    %5466 = vmatpush.msra.mxu0 0.0
    %5467 = vmatpush.msra.mxu0 0.0
    %5468 = vmatpush.msra.mxu0 0.0
    %5469 = vmatpush.msra.mxu0 0.0
    %5470 = vmatpush.msra.mxu0 0.0
    %5471 = vmatpush.msra.mxu0 %v4673
    %5472 = vmatpush.msra.mxu0 %v4672
    %5473 = vmatpush.msra.mxu0 %v4671
    %5474 = vmatpush.msra.mxu0 %v4670
    %5475 = vmatpush.msra.mxu0 %v4669
    %5476 = vmatpush.msra.mxu0 %v4668
    %5477 = vmatmul.f32.gmra.mxu0 %v5456
    %v5478 = vpop.f32.mrf.mxu0
    %v5479 = vadd.f32 %v5454, %v5478
    %5480 = vmatmul.f32.gmra.mxu0 %v5459
    %v5481 = vpop.f32.mrf.mxu0
    %v5482 = vadd.f32 %v5454, %v5481
    %5483 = vdwg.mxu0
    %v5484 = vperm.slane %v276, 2
    %v5486 = vsel %vm446, %v5479, 0
    %v5489 = vsel %vm446, %v5482, 0
    %5491 = vmatpush.msra.mxu0 0.0
    %5492 = vmatpush.msra.mxu0 0.0
    %5493 = vmatpush.msra.mxu0 0.0
    %5494 = vmatpush.msra.mxu0 0.0
    %5495 = vmatpush.msra.mxu0 0.0
    %5496 = vmatpush.msra.mxu0 0.0
    %5497 = vmatpush.msra.mxu0 0.0
    %5498 = vmatpush.msra.mxu0 0.0
    %5499 = vmatpush.msra.mxu0 0.0
    %5500 = vmatpush.msra.mxu0 0.0
    %5501 = vmatpush.msra.mxu0 %v4679
    %5502 = vmatpush.msra.mxu0 %v4678
    %5503 = vmatpush.msra.mxu0 %v4677
    %5504 = vmatpush.msra.mxu0 %v4676
    %5505 = vmatpush.msra.mxu0 %v4675
    %5506 = vmatpush.msra.mxu0 %v4674
    %5507 = vmatmul.f32.gmra.mxu0 %v5486
    %v5508 = vpop.f32.mrf.mxu0
    %v5509 = vadd.f32 %v5484, %v5508
    %5510 = vmatmul.f32.gmra.mxu0 %v5489
    %v5511 = vpop.f32.mrf.mxu0
    %v5512 = vadd.f32 %v5484, %v5511
    %5513 = vdwg.mxu0
    %v5514 = vadd.f32 %v3411, %v4069
    %v5515 = vadd.f32 %v3412, %v4072
    %v5516 = vadd.f32 %v5514, %v4657
    %v5517 = vadd.f32 %v5515, %v4660
    %v5518 = vadd.f32 %v5516, %v5509
    %v5519 = vadd.f32 %v5517, %v5512
    %v5520 = vsel %vm446, %v5518, 0.0
    %5521 = vadd.xlane.f32.xlu0 %v5520
    %v5522 = vpop.xlane.xlu0 %5521
    %v5523 = vsel %vm446, %v5519, 0.0
    %5524 = vadd.xlane.f32.xlu0 %v5523
    %v5525 = vpop.xlane.xlu0 %5524
    %v5526 = vmul.f32 %v5522, %v459
    %v5527 = vmul.f32 %v5525, %v459
    %v5528 = vmul.f32 %v5518, %v5518
    %v5529 = vmul.f32 %v5519, %v5519
    %v5530 = vsel %vm446, %v5528, 0.0
    %5531 = vadd.xlane.f32.xlu0 %v5530
    %v5532 = vpop.xlane.xlu0 %5531
    %v5533 = vsel %vm446, %v5529, 0.0
    %5534 = vadd.xlane.f32.xlu0 %v5533
    %v5535 = vpop.xlane.xlu0 %5534
    %v5536 = vmul.f32 %v5532, %v459
    %v5537 = vmul.f32 %v5535, %v459
    %v5538 = vmul.f32 %v5526, %v5526
    %v5539 = vmul.f32 %v5527, %v5527
    %v5540 = vsub.f32 %v5536, %v5538
    %v5541 = vsub.f32 %v5537, %v5539
    %v5542 = vsub.f32 %v5518, %v5526
    %v5543 = vsub.f32 %v5519, %v5527
    %v5544 = vadd.f32 %v5540, 1e-05
    %v5545 = vadd.f32 %v5541, 1e-05
    %v5546 = vrsqrt.pop %v5544
    %v5547 = vmul.f32 %v5546, %v5544
    %v5548 = vmul.f32 %v5547, %v5546
    %v5549 = vmul.f32 0.5, %v5548
    %v5550 = vsub.f32 1.5, %v5549
    %v5551 = vmul.f32 %v5546, %v5550
    %vm5552 = vweird.f32 %v5544
    %vm5553 = vweird.f32 %v5546
    %vm5554 = vmor %vm5552, %vm5553
    %v5555 = vsel %vm5554, %v5546, %v5551
    %v5556 = vrsqrt.pop %v5545
    %v5557 = vmul.f32 %v5556, %v5545
    %v5558 = vmul.f32 %v5557, %v5556
    %v5559 = vmul.f32 0.5, %v5558
    %v5560 = vsub.f32 1.5, %v5559
    %v5561 = vmul.f32 %v5556, %v5560
    %vm5562 = vweird.f32 %v5545
    %vm5563 = vweird.f32 %v5556
    %vm5564 = vmor %vm5562, %vm5563
    %v5565 = vsel %vm5564, %v5556, %v5561
    %v5566 = vmul.f32 %v5542, %v5555
    %v5567 = vmul.f32 %v5543, %v5565
    %v5568 = vperm.slane %v38, 2
    %v5569 = vmul.f32 %v5566, %v5568
    %v5570 = vmul.f32 %v5567, %v5568
    %v5571 = vperm.slane %v39, 2
    %v5572 = vadd.f32 %v5569, %v5571
    %v5573 = vadd.f32 %v5570, %v5571
    %5574 = vst.msk [vmem:[#allocation2] sm:$0xff] %vm446, %v5572
    %5575 = vst.msk [vmem:[#allocation2 + $0x8] sm:$0xff] %vm446, %v5573
    // Predicated region
    $region42: #{advanced_transformer_block.1} parent=1 // pred_check
      _
    $region43: #{advanced_transformer_block.1} parent=1 // pred_check_branch
      %5577 = sbr.rel (0) target = $region45
    $region44: #{advanced_transformer_block.1} parent=1 // pred_region
      %5579 = vsyncadd [#allocation3], 0
      %s5580 = sshll.u32 [#allocation2], 4
      %s5581 = int_to_ptr.vmem [resolvable:$true] %s5580
      %s5582 = sshll.u32 %s10, 4
      %s5583 = int_to_ptr.hbm [resolvable:$true] %s5582
      %5588 = dma.vmem_to_hbm [thread:$0]  %s5581, 256, %s5583, [#allocation3], 128, 128, 8
    $region45: #{advanced_transformer_block.1} parent=1 // pred_fallthru
      _
    // Predicated region
    $region46: #{advanced_transformer_block.1} parent=1 // pred_check
      _
    $region47: #{advanced_transformer_block.1} parent=1 // pred_check_branch
      %5590 = sbr.rel (0) target = $region49
    $region48: #{advanced_transformer_block.1} parent=1 // pred_region
      %5592 = dma.done [#allocation3], 256
    $region49: #{advanced_transformer_block.1} parent=1 // pred_fallthru
      _
    %5593 = vsyncpa [#allocation3], 1

</llo_original>
